<compile_context>
chip_gen: v6e
topology: v6e:2x2x1
jax: 0.10.0
libtpu: 0.0.40
codegen_flags: <defaults>
</compile_context>

<pallas_src>
import jax
import jax.numpy as jnp
from jax.experimental import pallas as pl
from jax.experimental.pallas import tpu as pltpu  # noqa: F401 (kept for TPU-specific tuning hooks)

# ----------------------------- config (small ViT) ---------------------------
B = 2            # batch
C = 3            # image channels
IMG = 16         # image height/width
PATCH = 8        # patch size
NPH = IMG // PATCH
NP = NPH * NPH   # num patches = 4
S = NP + 1       # sequence length (with CLS) = 5
BS = B * S       # batch-collapsed rows = 10
D = 32           # hidden size
NHEADS = 2
DH = D // NHEADS # head dim = 16
DMLP = 64        # intermediate size
NLAYERS = 2
NCLASS = 23      # dermnet-style label count
NPAD = 128       # lane-dense (padded) classifier output width
CPP = C * PATCH * PATCH       # flattened patch length = 192
KPAD = 256                    # lane-padded embedding contraction (S + CPP = 197 -> 256)
QPAD = 128                    # per-(head, q/k/v) lane slot width
WQKV = NHEADS * 3 * QPAD      # packed qkv width = 768
EPS = 1e-12                   # HF ViT layer_norm_eps
SCALE = 1.0 / (DH ** 0.5)
NEG = -1e30                   # cross-image attention mask bias


# --------------------------- in-kernel helpers -------------------------------
def _layer_norm(x, g, b):
    mean = jnp.mean(x, axis=-1, keepdims=True)
    xc = x - mean
    var = jnp.mean(xc * xc, axis=-1, keepdims=True)
    return xc * jax.lax.rsqrt(var + EPS) * g + b


def _erf(x):
    # Abramowitz & Stegun 7.1.26 (max abs err ~1.5e-7), built only from ops
    # guaranteed to lower in Mosaic (exp/mul/add/div/where).
    a1, a2, a3, a4, a5 = 0.254829592, -0.284496736, 1.421413741, -1.453152027, 1.061405429
    pp = 0.3275911
    ax = jnp.abs(x)
    t = 1.0 / (1.0 + pp * ax)
    poly = ((((a5 * t + a4) * t + a3) * t + a2) * t + a1) * t
    y = 1.0 - poly * jnp.exp(-ax * ax)
    return jnp.where(x >= 0.0, y, -y)


def _gelu_exact(x):
    # erf-based GELU, matching HF ViT's default activation
    return 0.5 * x * (1.0 + _erf(x * 0.7071067811865476))


# ------------------------------ fused ViT kernel -----------------------------
def _vit_kernel(tok_ref, mask_ref, w_ext_ref,
                ln1_g_ref, ln1_b_ref, w_qkv_ref, b_qkv_ref, w_o_ref, b_o_ref,
                ln2_g_ref, ln2_b_ref, w1_ref, b1_ref, w2_ref, b2_ref,
                lnf_g_ref, lnf_b_ref, head_w_ref, head_b_ref,
                out_ref):
    # --- embedding: patches + CLS + conv-bias + positional, all in one matmul ---
    h = jnp.dot(tok_ref[...], w_ext_ref[...],
                preferred_element_type=jnp.float32)                 # [BS, D]
    mask = mask_ref[...]                                            # [BS, BS]

    # --- transformer encoder (pre-LN), fully unrolled in-kernel ---
    for l in range(NLAYERS):
        # attention block
        hn = _layer_norm(h, ln1_g_ref[l], ln1_b_ref[l])
        qkv = jnp.dot(hn, w_qkv_ref[l],
                      preferred_element_type=jnp.float32) + b_qkv_ref[l]   # [BS, 6*128]
        heads = []
        for hd in range(NHEADS):
            base = hd * 3 * QPAD
            # 128-aligned, 128-wide slices; lanes >= DH are exactly zero,
            # so they contribute nothing to the contractions below.
            q = qkv[:, base:base + QPAD]
            k = qkv[:, base + QPAD:base + 2 * QPAD]
            v = qkv[:, base + 2 * QPAD:base + 3 * QPAD]
            s = jax.lax.dot_general(
                q, k, (((1,), (1,)), ((), ())),
                preferred_element_type=jnp.float32) * SCALE + mask   # [BS, BS]
            m = jnp.max(s, axis=-1, keepdims=True)
            e = jnp.exp(s - m)
            prob = e * pl.reciprocal(jnp.sum(e, axis=-1, keepdims=True),
                                     approx=True)
            heads.append(jnp.dot(prob, v,
                                 preferred_element_type=jnp.float32))  # [BS, 128]
        # head-merge folded into ONE output-projection matmul
        o_cat = jnp.concatenate(heads, axis=1)                       # [BS, NHEADS*128]
        h = h + jnp.dot(o_cat, w_o_ref[l],
                        preferred_element_type=jnp.float32) + b_o_ref[l]

        # MLP block
        hn = _layer_norm(h, ln2_g_ref[l], ln2_b_ref[l])
        mid = jnp.dot(hn, w1_ref[l],
                      preferred_element_type=jnp.float32) + b1_ref[l]
        mid = _gelu_exact(mid)
        h = h + jnp.dot(mid, w2_ref[l],
                        preferred_element_type=jnp.float32) + b2_ref[l]

    # --- final layernorm + classifier, single lane-dense store for all rows ---
    hf = _layer_norm(h, lnf_g_ref[...], lnf_b_ref[...])
    out_ref[...] = (jnp.dot(hf, head_w_ref[...],
                            preferred_element_type=jnp.float32) + head_b_ref[...])


def vit_forward(tok, w):
    """tok: [B*S, KPAD] f32; w: packed weight dict -> logits-per-row [B*S, NPAD]."""
    # Single program, no grid: whole arrays resident in VMEM (~250 KB total).
    return pl.pallas_call(
        _vit_kernel,
        out_shape=jax.ShapeDtypeStruct((BS, NPAD), jnp.float32),
    )(tok, w["attn_mask"], w["w_ext"],
      w["ln1_g"], w["ln1_b"], w["w_qkv"], w["b_qkv"], w["w_o"], w["b_o"],
      w["ln2_g"], w["ln2_b"], w["w1"], w["b1"], w["w2"], w["b2"],
      w["lnf_g"], w["lnf_b"], w["head_w"], w["head_b"])


# ------------------------------ parameter init -------------------------------
def init_params(key):
    def nrm(k, shape, std=0.02):
        return std * jax.random.normal(k, shape, dtype=jnp.float32)

    keys = iter(jax.random.split(key, 16 + NLAYERS * 16))
    p = {}
    p["patch_w"] = nrm(next(keys), (CPP, D))        # conv(D,C,P,P) as matmul
    p["patch_b"] = jnp.zeros((D,), jnp.float32)
    p["cls"] = nrm(next(keys), (1, 1, D))
    p["pos"] = nrm(next(keys), (1, S, D))
    p["layers"] = []
    for _ in range(NLAYERS):
        layer = {
            "ln1_g": jnp.ones((D,), jnp.float32),
            "ln1_b": jnp.zeros((D,), jnp.float32),
            "wq": nrm(next(keys), (D, D)), "bq": jnp.zeros((D,), jnp.float32),
            "wk": nrm(next(keys), (D, D)), "bk": jnp.zeros((D,), jnp.float32),
            "wv": nrm(next(keys), (D, D)), "bv": jnp.zeros((D,), jnp.float32),
            "wo": nrm(next(keys), (D, D)), "bo": jnp.zeros((D,), jnp.float32),
            "ln2_g": jnp.ones((D,), jnp.float32),
            "ln2_b": jnp.zeros((D,), jnp.float32),
            "w1": nrm(next(keys), (D, DMLP)), "b1": jnp.zeros((DMLP,), jnp.float32),
            "w2": nrm(next(keys), (DMLP, D)), "b2": jnp.zeros((D,), jnp.float32),
        }
        p["layers"].append(layer)
    p["lnf_g"] = jnp.ones((D,), jnp.float32)
    p["lnf_b"] = jnp.zeros((D,), jnp.float32)
    p["head_w"] = nrm(next(keys), (D, NCLASS))
    p["head_b"] = jnp.zeros((NCLASS,), jnp.float32)
    return p


def pack_params(p):
    """One-time weight repack into the fused-kernel layout (done outside jit)."""
    layers = p["layers"]
    st = lambda name: jnp.stack([L[name] for L in layers])

    # Token rows of the extended embedding matrix:
    #   row 0           -> CLS embedding + pos[0]
    #   rows 1..S-1     -> pos[s] + conv bias
    #   rows S..S+CPP-1 -> conv weight (as matmul)
    #   remaining rows  -> zero (lane padding of the contraction dim)
    tok_rows = jnp.concatenate(
        [p["cls"].reshape(1, D) + p["pos"][0, 0:1, :],
         p["pos"][0, 1:, :] + p["patch_b"][None, :]], axis=0)            # [S, D]
    w_ext = jnp.concatenate(
        [tok_rows, p["patch_w"],
         jnp.zeros((KPAD - S - CPP, D), jnp.float32)], axis=0)           # [KPAD, D]

    def pack_qkv_w(L):
        segs = []
        for hd in range(NHEADS):
            for nm in ("wq", "wk", "wv"):
                seg = L[nm][:, hd * DH:(hd + 1) * DH]                    # [D, DH]
                segs.append(jnp.pad(seg, ((0, 0), (0, QPAD - DH))))
        return jnp.concatenate(segs, axis=1)                             # [D, WQKV]

    def pack_qkv_b(L):
        segs = []
        for hd in range(NHEADS):
            for nm in ("bq", "bk", "bv"):
                seg = L[nm][hd * DH:(hd + 1) * DH]
                segs.append(jnp.pad(seg, (0, QPAD - DH)))
        return jnp.concatenate(segs)[None, :]                            # [1, WQKV]

    def pack_wo(L):
        blocks = [jnp.pad(L["wo"][hd * DH:(hd + 1) * DH, :],
                          ((0, QPAD - DH), (0, 0)))
                  for hd in range(NHEADS)]
        return jnp.concatenate(blocks, axis=0)                           # [NHEADS*QPAD, D]

    # block-diagonal additive mask: tokens attend only within their own image
    rows = jnp.arange(BS) // S
    attn_mask = jnp.where(rows[:, None] == rows[None, :], 0.0, NEG).astype(jnp.float32)

    return {
        "attn_mask": attn_mask,
        "w_ext": w_ext,
        "ln1_g": st("ln1_g")[:, None, :],
        "ln1_b": st("ln1_b")[:, None, :],
        "w_qkv": jnp.stack([pack_qkv_w(L) for L in layers]),             # [L, D, WQKV]
        "b_qkv": jnp.stack([pack_qkv_b(L) for L in layers]),             # [L, 1, WQKV]
        "w_o": jnp.stack([pack_wo(L) for L in layers]),                  # [L, 2*QPAD, D]
        "b_o": st("bo")[:, None, :],
        "ln2_g": st("ln2_g")[:, None, :],
        "ln2_b": st("ln2_b")[:, None, :],
        "w1": st("w1"),
        "b1": st("b1")[:, None, :],
        "w2": st("w2"),
        "b2": st("b2")[:, None, :],
        "lnf_g": p["lnf_g"][None, :],
        "lnf_b": p["lnf_b"][None, :],
        "head_w": jnp.zeros((D, NPAD), jnp.float32).at[:, :NCLASS].set(p["head_w"]),
        "head_b": jnp.zeros((1, NPAD), jnp.float32).at[0, :NCLASS].set(p["head_b"]),
    }


# ------------------------------- ViT forward ---------------------------------
def vit_logits(x, w):
    """x: [B, C, IMG, IMG] f32 (NCHW) -> logits [B, NCLASS] f32."""
    # patch extraction (conv stride=PATCH as flatten)
    patches = (
        x.reshape(B, C, NPH, PATCH, NPH, PATCH)
        .transpose(0, 2, 4, 1, 3, 5)                 # [B, nH, nW, C, P, P]
        .reshape(B, NP, CPP)
    )
    # token matrix: [one-hot token-id columns | patch pixels | zero lane pad]
    patches = jnp.concatenate(
        [jnp.zeros((B, 1, CPP), jnp.float32), patches], axis=1)   # CLS row = zeros
    patches = patches.reshape(BS, CPP)
    one_hot = jnp.tile(jnp.eye(S, dtype=jnp.float32), (B, 1))     # [BS, S]
    pad = jnp.zeros((BS, KPAD - S - CPP), jnp.float32)
    tok = jnp.concatenate([one_hot, patches, pad], axis=1)        # [BS, KPAD]

    out = vit_forward(tok, w)                                     # [BS, NPAD]
    return out.reshape(B, S, NPAD)[:, 0, :NCLASS]                 # CLS logits [B, NCLASS]


# ----------------------------------- main -------------------------------------
if __name__ == "__main__":
    key = jax.random.PRNGKey(0)
    k_params, k_x = jax.random.split(key)
    params = init_params(k_params)
    packed = pack_params(params)
    x = jax.random.normal(k_x, (B, C, IMG, IMG), dtype=jnp.float32)

    logits = jax.jit(vit_logits)(x, packed)
    jax.block_until_ready(logits)
    assert logits.shape == (B, NCLASS)
    assert logits.dtype == jnp.float32
    print("KERNEL_OK")
</pallas_src>

<mosaic_0001>
module attributes {stable_mosaic.version = 11 : i64} {
  func.func @_vit_kernel(%arg0: memref<10x256xf32, #tpu.memory_space<vmem>>, %arg1: memref<10x10xf32, #tpu.memory_space<vmem>>, %arg2: memref<256x32xf32, #tpu.memory_space<vmem>>, %arg3: memref<2x1x32xf32, #tpu.memory_space<vmem>>, %arg4: memref<2x1x32xf32, #tpu.memory_space<vmem>>, %arg5: memref<2x32x768xf32, #tpu.memory_space<vmem>>, %arg6: memref<2x1x768xf32, #tpu.memory_space<vmem>>, %arg7: memref<2x256x32xf32, #tpu.memory_space<vmem>>, %arg8: memref<2x1x32xf32, #tpu.memory_space<vmem>>, %arg9: memref<2x1x32xf32, #tpu.memory_space<vmem>>, %arg10: memref<2x1x32xf32, #tpu.memory_space<vmem>>, %arg11: memref<2x32x64xf32, #tpu.memory_space<vmem>>, %arg12: memref<2x1x64xf32, #tpu.memory_space<vmem>>, %arg13: memref<2x64x32xf32, #tpu.memory_space<vmem>>, %arg14: memref<2x1x32xf32, #tpu.memory_space<vmem>>, %arg15: memref<1x32xf32, #tpu.memory_space<vmem>>, %arg16: memref<1x32xf32, #tpu.memory_space<vmem>>, %arg17: memref<32x128xf32, #tpu.memory_space<vmem>>, %arg18: memref<1x128xf32, #tpu.memory_space<vmem>>, %arg19: memref<10x128xf32, #tpu.memory_space<vmem>>) attributes {dimension_semantics = [], scalar_prefetch = 0 : i64, scratch_operands = 0 : i64, tpu.core_type = #tpu.core_type<tc>} {
    %c0 = arith.constant 0 : index
    %c0_0 = arith.constant 0 : index
    %0 = vector.load %arg0[%c0, %c0_0] : memref<10x256xf32, #tpu.memory_space<vmem>>, vector<10x256xf32>
    %c0_1 = arith.constant 0 : index
    %c0_2 = arith.constant 0 : index
    %1 = vector.load %arg2[%c0_1, %c0_2] : memref<256x32xf32, #tpu.memory_space<vmem>>, vector<256x32xf32>
    %cst = arith.constant dense<0.000000e+00> : vector<10x32xf32>
    %2 = tpu.matmul %0, %1, %cst {dimension_numbers = #tpu.dot_dimension_numbers<[1], [0], [0], [1], [0, 0, 1, 1], [], []>} : vector<10x256xf32>, vector<256x32xf32>, vector<10x32xf32> -> vector<10x32xf32>
    %c0_3 = arith.constant 0 : index
    %c0_4 = arith.constant 0 : index
    %3 = vector.load %arg1[%c0_3, %c0_4] : memref<10x10xf32, #tpu.memory_space<vmem>>, vector<10x10xf32>
    %c0_5 = arith.constant 0 : index
    %c0_6 = arith.constant 0 : index
    %c0_7 = arith.constant 0 : index
    %4 = vector.load %arg3[%c0_5, %c0_6, %c0_7] : memref<2x1x32xf32, #tpu.memory_space<vmem>>, vector<1x1x32xf32>
    %5 = vector.shape_cast %4 : vector<1x1x32xf32> to vector<1x32xf32>
    %c0_8 = arith.constant 0 : index
    %c0_9 = arith.constant 0 : index
    %c0_10 = arith.constant 0 : index
    %6 = vector.load %arg4[%c0_8, %c0_9, %c0_10] : memref<2x1x32xf32, #tpu.memory_space<vmem>>, vector<1x1x32xf32>
    %7 = vector.shape_cast %6 : vector<1x1x32xf32> to vector<1x32xf32>
    %cst_11 = arith.constant dense<0.000000e+00> : vector<10xf32>
    %8 = vector.multi_reduction <add>, %2, %cst_11 [1] : vector<10x32xf32> to vector<10xf32>
    %9 = vector.shape_cast %8 : vector<10xf32> to vector<10x1xf32>
    %cst_12 = arith.constant 3.200000e+01 : f32
    %10 = vector.broadcast %cst_12 : f32 to vector<10x1xf32>
    %11 = arith.divf %9, %10 : vector<10x1xf32>
    %12 = vector.broadcast %11 : vector<10x1xf32> to vector<10x32xf32>
    %13 = arith.subf %2, %12 : vector<10x32xf32>
    %14 = arith.mulf %13, %13 : vector<10x32xf32>
    %cst_13 = arith.constant dense<0.000000e+00> : vector<10xf32>
    %15 = vector.multi_reduction <add>, %14, %cst_13 [1] : vector<10x32xf32> to vector<10xf32>
    %16 = vector.shape_cast %15 : vector<10xf32> to vector<10x1xf32>
    %cst_14 = arith.constant 3.200000e+01 : f32
    %17 = vector.broadcast %cst_14 : f32 to vector<10x1xf32>
    %18 = arith.divf %16, %17 : vector<10x1xf32>
    %cst_15 = arith.constant 9.99999996E-13 : f32
    %19 = vector.broadcast %cst_15 : f32 to vector<10x1xf32>
    %20 = arith.addf %18, %19 : vector<10x1xf32>
    %21 = math.rsqrt %20 : vector<10x1xf32>
    %22 = vector.broadcast %21 : vector<10x1xf32> to vector<10x32xf32>
    %23 = arith.mulf %13, %22 : vector<10x32xf32>
    %24 = vector.broadcast %5 : vector<1x32xf32> to vector<10x32xf32>
    %25 = arith.mulf %23, %24 : vector<10x32xf32>
    %26 = vector.broadcast %7 : vector<1x32xf32> to vector<10x32xf32>
    %27 = arith.addf %25, %26 : vector<10x32xf32>
    %c0_16 = arith.constant 0 : index
    %c0_17 = arith.constant 0 : index
    %c0_18 = arith.constant 0 : index
    %28 = vector.load %arg5[%c0_16, %c0_17, %c0_18] : memref<2x32x768xf32, #tpu.memory_space<vmem>>, vector<1x32x768xf32>
    %29 = vector.shape_cast %28 : vector<1x32x768xf32> to vector<32x768xf32>
    %cst_19 = arith.constant dense<0.000000e+00> : vector<10x768xf32>
    %30 = tpu.matmul %27, %29, %cst_19 {dimension_numbers = #tpu.dot_dimension_numbers<[1], [0], [0], [1], [0, 0, 1, 1], [], []>} : vector<10x32xf32>, vector<32x768xf32>, vector<10x768xf32> -> vector<10x768xf32>
    %c0_20 = arith.constant 0 : index
    %c0_21 = arith.constant 0 : index
    %c0_22 = arith.constant 0 : index
    %31 = vector.load %arg6[%c0_20, %c0_21, %c0_22] : memref<2x1x768xf32, #tpu.memory_space<vmem>>, vector<1x1x768xf32>
    %32 = vector.shape_cast %31 : vector<1x1x768xf32> to vector<1x768xf32>
    %33 = vector.broadcast %32 : vector<1x768xf32> to vector<10x768xf32>
    %34 = arith.addf %30, %33 : vector<10x768xf32>
    %35 = vector.extract_strided_slice %34 {offsets = [0, 0], sizes = [10, 128], strides = [1, 1]} : vector<10x768xf32> to vector<10x128xf32>
    %36 = vector.extract_strided_slice %34 {offsets = [0, 128], sizes = [10, 128], strides = [1, 1]} : vector<10x768xf32> to vector<10x128xf32>
    %37 = vector.extract_strided_slice %34 {offsets = [0, 256], sizes = [10, 128], strides = [1, 1]} : vector<10x768xf32> to vector<10x128xf32>
    %cst_23 = arith.constant dense<0.000000e+00> : vector<10x10xf32>
    %38 = tpu.matmul %35, %36, %cst_23 {dimension_numbers = #tpu.dot_dimension_numbers<[1], [1], [0], [0], [0, 0, 1, 0], [], []>} : vector<10x128xf32>, vector<10x128xf32>, vector<10x10xf32> -> vector<10x10xf32>
    %cst_24 = arith.constant 2.500000e-01 : f32
    %39 = vector.broadcast %cst_24 : f32 to vector<10x10xf32>
    %40 = arith.mulf %38, %39 : vector<10x10xf32>
    %41 = arith.addf %40, %3 : vector<10x10xf32>
    %cst_25 = arith.constant dense<0xFF800000> : vector<10xf32>
    %42 = vector.multi_reduction <maximumf>, %41, %cst_25 [1] : vector<10x10xf32> to vector<10xf32>
    %43 = vector.shape_cast %42 : vector<10xf32> to vector<10x1xf32>
    %44 = vector.broadcast %43 : vector<10x1xf32> to vector<10x10xf32>
    %45 = arith.subf %41, %44 : vector<10x10xf32>
    %46 = math.exp %45 : vector<10x10xf32>
    %cst_26 = arith.constant dense<0.000000e+00> : vector<10xf32>
    %47 = vector.multi_reduction <add>, %46, %cst_26 [1] : vector<10x10xf32> to vector<10xf32>
    %48 = vector.shape_cast %47 : vector<10xf32> to vector<10x1xf32>
    %49 = tpu.reciprocal %48 {approx = true} : vector<10x1xf32> -> vector<10x1xf32>
    %50 = vector.broadcast %49 : vector<10x1xf32> to vector<10x10xf32>
    %51 = arith.mulf %46, %50 : vector<10x10xf32>
    %cst_27 = arith.constant dense<0.000000e+00> : vector<10x128xf32>
    %52 = tpu.matmul %51, %37, %cst_27 {dimension_numbers = #tpu.dot_dimension_numbers<[1], [0], [0], [1], [0, 0, 1, 1], [], []>} : vector<10x10xf32>, vector<10x128xf32>, vector<10x128xf32> -> vector<10x128xf32>
    %53 = vector.extract_strided_slice %34 {offsets = [0, 384], sizes = [10, 128], strides = [1, 1]} : vector<10x768xf32> to vector<10x128xf32>
    %54 = vector.extract_strided_slice %34 {offsets = [0, 512], sizes = [10, 128], strides = [1, 1]} : vector<10x768xf32> to vector<10x128xf32>
    %55 = vector.extract_strided_slice %34 {offsets = [0, 640], sizes = [10, 128], strides = [1, 1]} : vector<10x768xf32> to vector<10x128xf32>
    %cst_28 = arith.constant dense<0.000000e+00> : vector<10x10xf32>
    %56 = tpu.matmul %53, %54, %cst_28 {dimension_numbers = #tpu.dot_dimension_numbers<[1], [1], [0], [0], [0, 0, 1, 0], [], []>} : vector<10x128xf32>, vector<10x128xf32>, vector<10x10xf32> -> vector<10x10xf32>
    %cst_29 = arith.constant 2.500000e-01 : f32
    %57 = vector.broadcast %cst_29 : f32 to vector<10x10xf32>
    %58 = arith.mulf %56, %57 : vector<10x10xf32>
    %59 = arith.addf %58, %3 : vector<10x10xf32>
    %cst_30 = arith.constant dense<0xFF800000> : vector<10xf32>
    %60 = vector.multi_reduction <maximumf>, %59, %cst_30 [1] : vector<10x10xf32> to vector<10xf32>
    %61 = vector.shape_cast %60 : vector<10xf32> to vector<10x1xf32>
    %62 = vector.broadcast %61 : vector<10x1xf32> to vector<10x10xf32>
    %63 = arith.subf %59, %62 : vector<10x10xf32>
    %64 = math.exp %63 : vector<10x10xf32>
    %cst_31 = arith.constant dense<0.000000e+00> : vector<10xf32>
    %65 = vector.multi_reduction <add>, %64, %cst_31 [1] : vector<10x10xf32> to vector<10xf32>
    %66 = vector.shape_cast %65 : vector<10xf32> to vector<10x1xf32>
    %67 = tpu.reciprocal %66 {approx = true} : vector<10x1xf32> -> vector<10x1xf32>
    %68 = vector.broadcast %67 : vector<10x1xf32> to vector<10x10xf32>
    %69 = arith.mulf %64, %68 : vector<10x10xf32>
    %cst_32 = arith.constant dense<0.000000e+00> : vector<10x128xf32>
    %70 = tpu.matmul %69, %55, %cst_32 {dimension_numbers = #tpu.dot_dimension_numbers<[1], [0], [0], [1], [0, 0, 1, 1], [], []>} : vector<10x10xf32>, vector<10x128xf32>, vector<10x128xf32> -> vector<10x128xf32>
    %71 = tpu.concatenate %52, %70 in 1 : vector<10x128xf32>, vector<10x128xf32> -> vector<10x256xf32>
    %c0_33 = arith.constant 0 : index
    %c0_34 = arith.constant 0 : index
    %c0_35 = arith.constant 0 : index
    %72 = vector.load %arg7[%c0_33, %c0_34, %c0_35] : memref<2x256x32xf32, #tpu.memory_space<vmem>>, vector<1x256x32xf32>
    %73 = vector.shape_cast %72 : vector<1x256x32xf32> to vector<256x32xf32>
    %cst_36 = arith.constant dense<0.000000e+00> : vector<10x32xf32>
    %74 = tpu.matmul %71, %73, %cst_36 {dimension_numbers = #tpu.dot_dimension_numbers<[1], [0], [0], [1], [0, 0, 1, 1], [], []>} : vector<10x256xf32>, vector<256x32xf32>, vector<10x32xf32> -> vector<10x32xf32>
    %75 = arith.addf %2, %74 : vector<10x32xf32>
    %c0_37 = arith.constant 0 : index
    %c0_38 = arith.constant 0 : index
    %c0_39 = arith.constant 0 : index
    %76 = vector.load %arg8[%c0_37, %c0_38, %c0_39] : memref<2x1x32xf32, #tpu.memory_space<vmem>>, vector<1x1x32xf32>
    %77 = vector.shape_cast %76 : vector<1x1x32xf32> to vector<1x32xf32>
    %78 = vector.broadcast %77 : vector<1x32xf32> to vector<10x32xf32>
    %79 = arith.addf %75, %78 : vector<10x32xf32>
    %c0_40 = arith.constant 0 : index
    %c0_41 = arith.constant 0 : index
    %c0_42 = arith.constant 0 : index
    %80 = vector.load %arg9[%c0_40, %c0_41, %c0_42] : memref<2x1x32xf32, #tpu.memory_space<vmem>>, vector<1x1x32xf32>
    %81 = vector.shape_cast %80 : vector<1x1x32xf32> to vector<1x32xf32>
    %c0_43 = arith.constant 0 : index
    %c0_44 = arith.constant 0 : index
    %c0_45 = arith.constant 0 : index
    %82 = vector.load %arg10[%c0_43, %c0_44, %c0_45] : memref<2x1x32xf32, #tpu.memory_space<vmem>>, vector<1x1x32xf32>
    %83 = vector.shape_cast %82 : vector<1x1x32xf32> to vector<1x32xf32>
    %cst_46 = arith.constant dense<0.000000e+00> : vector<10xf32>
    %84 = vector.multi_reduction <add>, %79, %cst_46 [1] : vector<10x32xf32> to vector<10xf32>
    %85 = vector.shape_cast %84 : vector<10xf32> to vector<10x1xf32>
    %cst_47 = arith.constant 3.200000e+01 : f32
    %86 = vector.broadcast %cst_47 : f32 to vector<10x1xf32>
    %87 = arith.divf %85, %86 : vector<10x1xf32>
    %88 = vector.broadcast %87 : vector<10x1xf32> to vector<10x32xf32>
    %89 = arith.subf %79, %88 : vector<10x32xf32>
    %90 = arith.mulf %89, %89 : vector<10x32xf32>
    %cst_48 = arith.constant dense<0.000000e+00> : vector<10xf32>
    %91 = vector.multi_reduction <add>, %90, %cst_48 [1] : vector<10x32xf32> to vector<10xf32>
    %92 = vector.shape_cast %91 : vector<10xf32> to vector<10x1xf32>
    %cst_49 = arith.constant 3.200000e+01 : f32
    %93 = vector.broadcast %cst_49 : f32 to vector<10x1xf32>
    %94 = arith.divf %92, %93 : vector<10x1xf32>
    %cst_50 = arith.constant 9.99999996E-13 : f32
    %95 = vector.broadcast %cst_50 : f32 to vector<10x1xf32>
    %96 = arith.addf %94, %95 : vector<10x1xf32>
    %97 = math.rsqrt %96 : vector<10x1xf32>
    %98 = vector.broadcast %97 : vector<10x1xf32> to vector<10x32xf32>
    %99 = arith.mulf %89, %98 : vector<10x32xf32>
    %100 = vector.broadcast %81 : vector<1x32xf32> to vector<10x32xf32>
    %101 = arith.mulf %99, %100 : vector<10x32xf32>
    %102 = vector.broadcast %83 : vector<1x32xf32> to vector<10x32xf32>
    %103 = arith.addf %101, %102 : vector<10x32xf32>
    %c0_51 = arith.constant 0 : index
    %c0_52 = arith.constant 0 : index
    %c0_53 = arith.constant 0 : index
    %104 = vector.load %arg11[%c0_51, %c0_52, %c0_53] : memref<2x32x64xf32, #tpu.memory_space<vmem>>, vector<1x32x64xf32>
    %105 = vector.shape_cast %104 : vector<1x32x64xf32> to vector<32x64xf32>
    %cst_54 = arith.constant dense<0.000000e+00> : vector<10x64xf32>
    %106 = tpu.matmul %103, %105, %cst_54 {dimension_numbers = #tpu.dot_dimension_numbers<[1], [0], [0], [1], [0, 0, 1, 1], [], []>} : vector<10x32xf32>, vector<32x64xf32>, vector<10x64xf32> -> vector<10x64xf32>
    %c0_55 = arith.constant 0 : index
    %c0_56 = arith.constant 0 : index
    %c0_57 = arith.constant 0 : index
    %107 = vector.load %arg12[%c0_55, %c0_56, %c0_57] : memref<2x1x64xf32, #tpu.memory_space<vmem>>, vector<1x1x64xf32>
    %108 = vector.shape_cast %107 : vector<1x1x64xf32> to vector<1x64xf32>
    %109 = vector.broadcast %108 : vector<1x64xf32> to vector<10x64xf32>
    %110 = arith.addf %106, %109 : vector<10x64xf32>
    %cst_58 = arith.constant 5.000000e-01 : f32
    %111 = vector.broadcast %cst_58 : f32 to vector<10x64xf32>
    %112 = arith.mulf %111, %110 : vector<10x64xf32>
    %cst_59 = arith.constant 0.707106769 : f32
    %113 = vector.broadcast %cst_59 : f32 to vector<10x64xf32>
    %114 = arith.mulf %110, %113 : vector<10x64xf32>
    %115 = math.absf %114 : vector<10x64xf32>
    %cst_60 = arith.constant 0.327591091 : f32
    %116 = vector.broadcast %cst_60 : f32 to vector<10x64xf32>
    %117 = arith.mulf %116, %115 : vector<10x64xf32>
    %cst_61 = arith.constant 1.000000e+00 : f32
    %118 = vector.broadcast %cst_61 : f32 to vector<10x64xf32>
    %119 = arith.addf %118, %117 : vector<10x64xf32>
    %cst_62 = arith.constant 1.000000e+00 : f32
    %120 = vector.broadcast %cst_62 : f32 to vector<10x64xf32>
    %121 = arith.divf %120, %119 : vector<10x64xf32>
    %cst_63 = arith.constant 1.06140542 : f32
    %122 = vector.broadcast %cst_63 : f32 to vector<10x64xf32>
    %123 = arith.mulf %122, %121 : vector<10x64xf32>
    %cst_64 = arith.constant -1.45315206 : f32
    %124 = vector.broadcast %cst_64 : f32 to vector<10x64xf32>
    %125 = arith.addf %123, %124 : vector<10x64xf32>
    %126 = arith.mulf %125, %121 : vector<10x64xf32>
    %cst_65 = arith.constant 1.42141378 : f32
    %127 = vector.broadcast %cst_65 : f32 to vector<10x64xf32>
    %128 = arith.addf %126, %127 : vector<10x64xf32>
    %129 = arith.mulf %128, %121 : vector<10x64xf32>
    %cst_66 = arith.constant -0.284496725 : f32
    %130 = vector.broadcast %cst_66 : f32 to vector<10x64xf32>
    %131 = arith.addf %129, %130 : vector<10x64xf32>
    %132 = arith.mulf %131, %121 : vector<10x64xf32>
    %cst_67 = arith.constant 0.254829586 : f32
    %133 = vector.broadcast %cst_67 : f32 to vector<10x64xf32>
    %134 = arith.addf %132, %133 : vector<10x64xf32>
    %135 = arith.mulf %134, %121 : vector<10x64xf32>
    %cst_68 = arith.constant 0.000000e+00 : f32
    %136 = vector.broadcast %cst_68 : f32 to vector<10x64xf32>
    %137 = arith.subf %136, %115 : vector<10x64xf32>
    %138 = arith.mulf %137, %115 : vector<10x64xf32>
    %139 = math.exp %138 : vector<10x64xf32>
    %140 = arith.mulf %135, %139 : vector<10x64xf32>
    %cst_69 = arith.constant 1.000000e+00 : f32
    %141 = vector.broadcast %cst_69 : f32 to vector<10x64xf32>
    %142 = arith.subf %141, %140 : vector<10x64xf32>
    %cst_70 = arith.constant 0.000000e+00 : f32
    %143 = vector.broadcast %cst_70 : f32 to vector<10x64xf32>
    %144 = arith.cmpf oge, %114, %143 : vector<10x64xf32>
    %cst_71 = arith.constant 0.000000e+00 : f32
    %145 = vector.broadcast %cst_71 : f32 to vector<10x64xf32>
    %146 = arith.subf %145, %142 : vector<10x64xf32>
    %147 = arith.select %144, %142, %146 : vector<10x64xi1>, vector<10x64xf32>
    %cst_72 = arith.constant 1.000000e+00 : f32
    %148 = vector.broadcast %cst_72 : f32 to vector<10x64xf32>
    %149 = arith.addf %148, %147 : vector<10x64xf32>
    %150 = arith.mulf %112, %149 : vector<10x64xf32>
    %c0_73 = arith.constant 0 : index
    %c0_74 = arith.constant 0 : index
    %c0_75 = arith.constant 0 : index
    %151 = vector.load %arg13[%c0_73, %c0_74, %c0_75] : memref<2x64x32xf32, #tpu.memory_space<vmem>>, vector<1x64x32xf32>
    %152 = vector.shape_cast %151 : vector<1x64x32xf32> to vector<64x32xf32>
    %cst_76 = arith.constant dense<0.000000e+00> : vector<10x32xf32>
    %153 = tpu.matmul %150, %152, %cst_76 {dimension_numbers = #tpu.dot_dimension_numbers<[1], [0], [0], [1], [0, 0, 1, 1], [], []>} : vector<10x64xf32>, vector<64x32xf32>, vector<10x32xf32> -> vector<10x32xf32>
    %154 = arith.addf %79, %153 : vector<10x32xf32>
    %c0_77 = arith.constant 0 : index
    %c0_78 = arith.constant 0 : index
    %c0_79 = arith.constant 0 : index
    %155 = vector.load %arg14[%c0_77, %c0_78, %c0_79] : memref<2x1x32xf32, #tpu.memory_space<vmem>>, vector<1x1x32xf32>
    %156 = vector.shape_cast %155 : vector<1x1x32xf32> to vector<1x32xf32>
    %157 = vector.broadcast %156 : vector<1x32xf32> to vector<10x32xf32>
    %158 = arith.addf %154, %157 : vector<10x32xf32>
    %c1 = arith.constant 1 : index
    %c0_80 = arith.constant 0 : index
    %c0_81 = arith.constant 0 : index
    %159 = vector.load %arg3[%c1, %c0_80, %c0_81] : memref<2x1x32xf32, #tpu.memory_space<vmem>>, vector<1x1x32xf32>
    %160 = vector.shape_cast %159 : vector<1x1x32xf32> to vector<1x32xf32>
    %c1_82 = arith.constant 1 : index
    %c0_83 = arith.constant 0 : index
    %c0_84 = arith.constant 0 : index
    %161 = vector.load %arg4[%c1_82, %c0_83, %c0_84] : memref<2x1x32xf32, #tpu.memory_space<vmem>>, vector<1x1x32xf32>
    %162 = vector.shape_cast %161 : vector<1x1x32xf32> to vector<1x32xf32>
    %cst_85 = arith.constant dense<0.000000e+00> : vector<10xf32>
    %163 = vector.multi_reduction <add>, %158, %cst_85 [1] : vector<10x32xf32> to vector<10xf32>
    %164 = vector.shape_cast %163 : vector<10xf32> to vector<10x1xf32>
    %cst_86 = arith.constant 3.200000e+01 : f32
    %165 = vector.broadcast %cst_86 : f32 to vector<10x1xf32>
    %166 = arith.divf %164, %165 : vector<10x1xf32>
    %167 = vector.broadcast %166 : vector<10x1xf32> to vector<10x32xf32>
    %168 = arith.subf %158, %167 : vector<10x32xf32>
    %169 = arith.mulf %168, %168 : vector<10x32xf32>
    %cst_87 = arith.constant dense<0.000000e+00> : vector<10xf32>
    %170 = vector.multi_reduction <add>, %169, %cst_87 [1] : vector<10x32xf32> to vector<10xf32>
    %171 = vector.shape_cast %170 : vector<10xf32> to vector<10x1xf32>
    %cst_88 = arith.constant 3.200000e+01 : f32
    %172 = vector.broadcast %cst_88 : f32 to vector<10x1xf32>
    %173 = arith.divf %171, %172 : vector<10x1xf32>
    %cst_89 = arith.constant 9.99999996E-13 : f32
    %174 = vector.broadcast %cst_89 : f32 to vector<10x1xf32>
    %175 = arith.addf %173, %174 : vector<10x1xf32>
    %176 = math.rsqrt %175 : vector<10x1xf32>
    %177 = vector.broadcast %176 : vector<10x1xf32> to vector<10x32xf32>
    %178 = arith.mulf %168, %177 : vector<10x32xf32>
    %179 = vector.broadcast %160 : vector<1x32xf32> to vector<10x32xf32>
    %180 = arith.mulf %178, %179 : vector<10x32xf32>
    %181 = vector.broadcast %162 : vector<1x32xf32> to vector<10x32xf32>
    %182 = arith.addf %180, %181 : vector<10x32xf32>
    %c1_90 = arith.constant 1 : index
    %c0_91 = arith.constant 0 : index
    %c0_92 = arith.constant 0 : index
    %183 = vector.load %arg5[%c1_90, %c0_91, %c0_92] : memref<2x32x768xf32, #tpu.memory_space<vmem>>, vector<1x32x768xf32>
    %184 = vector.shape_cast %183 : vector<1x32x768xf32> to vector<32x768xf32>
    %cst_93 = arith.constant dense<0.000000e+00> : vector<10x768xf32>
    %185 = tpu.matmul %182, %184, %cst_93 {dimension_numbers = #tpu.dot_dimension_numbers<[1], [0], [0], [1], [0, 0, 1, 1], [], []>} : vector<10x32xf32>, vector<32x768xf32>, vector<10x768xf32> -> vector<10x768xf32>
    %c1_94 = arith.constant 1 : index
    %c0_95 = arith.constant 0 : index
    %c0_96 = arith.constant 0 : index
    %186 = vector.load %arg6[%c1_94, %c0_95, %c0_96] : memref<2x1x768xf32, #tpu.memory_space<vmem>>, vector<1x1x768xf32>
    %187 = vector.shape_cast %186 : vector<1x1x768xf32> to vector<1x768xf32>
    %188 = vector.broadcast %187 : vector<1x768xf32> to vector<10x768xf32>
    %189 = arith.addf %185, %188 : vector<10x768xf32>
    %190 = vector.extract_strided_slice %189 {offsets = [0, 0], sizes = [10, 128], strides = [1, 1]} : vector<10x768xf32> to vector<10x128xf32>
    %191 = vector.extract_strided_slice %189 {offsets = [0, 128], sizes = [10, 128], strides = [1, 1]} : vector<10x768xf32> to vector<10x128xf32>
    %192 = vector.extract_strided_slice %189 {offsets = [0, 256], sizes = [10, 128], strides = [1, 1]} : vector<10x768xf32> to vector<10x128xf32>
    %cst_97 = arith.constant dense<0.000000e+00> : vector<10x10xf32>
    %193 = tpu.matmul %190, %191, %cst_97 {dimension_numbers = #tpu.dot_dimension_numbers<[1], [1], [0], [0], [0, 0, 1, 0], [], []>} : vector<10x128xf32>, vector<10x128xf32>, vector<10x10xf32> -> vector<10x10xf32>
    %cst_98 = arith.constant 2.500000e-01 : f32
    %194 = vector.broadcast %cst_98 : f32 to vector<10x10xf32>
    %195 = arith.mulf %193, %194 : vector<10x10xf32>
    %196 = arith.addf %195, %3 : vector<10x10xf32>
    %cst_99 = arith.constant dense<0xFF800000> : vector<10xf32>
    %197 = vector.multi_reduction <maximumf>, %196, %cst_99 [1] : vector<10x10xf32> to vector<10xf32>
    %198 = vector.shape_cast %197 : vector<10xf32> to vector<10x1xf32>
    %199 = vector.broadcast %198 : vector<10x1xf32> to vector<10x10xf32>
    %200 = arith.subf %196, %199 : vector<10x10xf32>
    %201 = math.exp %200 : vector<10x10xf32>
    %cst_100 = arith.constant dense<0.000000e+00> : vector<10xf32>
    %202 = vector.multi_reduction <add>, %201, %cst_100 [1] : vector<10x10xf32> to vector<10xf32>
    %203 = vector.shape_cast %202 : vector<10xf32> to vector<10x1xf32>
    %204 = tpu.reciprocal %203 {approx = true} : vector<10x1xf32> -> vector<10x1xf32>
    %205 = vector.broadcast %204 : vector<10x1xf32> to vector<10x10xf32>
    %206 = arith.mulf %201, %205 : vector<10x10xf32>
    %cst_101 = arith.constant dense<0.000000e+00> : vector<10x128xf32>
    %207 = tpu.matmul %206, %192, %cst_101 {dimension_numbers = #tpu.dot_dimension_numbers<[1], [0], [0], [1], [0, 0, 1, 1], [], []>} : vector<10x10xf32>, vector<10x128xf32>, vector<10x128xf32> -> vector<10x128xf32>
    %208 = vector.extract_strided_slice %189 {offsets = [0, 384], sizes = [10, 128], strides = [1, 1]} : vector<10x768xf32> to vector<10x128xf32>
    %209 = vector.extract_strided_slice %189 {offsets = [0, 512], sizes = [10, 128], strides = [1, 1]} : vector<10x768xf32> to vector<10x128xf32>
    %210 = vector.extract_strided_slice %189 {offsets = [0, 640], sizes = [10, 128], strides = [1, 1]} : vector<10x768xf32> to vector<10x128xf32>
    %cst_102 = arith.constant dense<0.000000e+00> : vector<10x10xf32>
    %211 = tpu.matmul %208, %209, %cst_102 {dimension_numbers = #tpu.dot_dimension_numbers<[1], [1], [0], [0], [0, 0, 1, 0], [], []>} : vector<10x128xf32>, vector<10x128xf32>, vector<10x10xf32> -> vector<10x10xf32>
    %cst_103 = arith.constant 2.500000e-01 : f32
    %212 = vector.broadcast %cst_103 : f32 to vector<10x10xf32>
    %213 = arith.mulf %211, %212 : vector<10x10xf32>
    %214 = arith.addf %213, %3 : vector<10x10xf32>
    %cst_104 = arith.constant dense<0xFF800000> : vector<10xf32>
    %215 = vector.multi_reduction <maximumf>, %214, %cst_104 [1] : vector<10x10xf32> to vector<10xf32>
    %216 = vector.shape_cast %215 : vector<10xf32> to vector<10x1xf32>
    %217 = vector.broadcast %216 : vector<10x1xf32> to vector<10x10xf32>
    %218 = arith.subf %214, %217 : vector<10x10xf32>
    %219 = math.exp %218 : vector<10x10xf32>
    %cst_105 = arith.constant dense<0.000000e+00> : vector<10xf32>
    %220 = vector.multi_reduction <add>, %219, %cst_105 [1] : vector<10x10xf32> to vector<10xf32>
    %221 = vector.shape_cast %220 : vector<10xf32> to vector<10x1xf32>
    %222 = tpu.reciprocal %221 {approx = true} : vector<10x1xf32> -> vector<10x1xf32>
    %223 = vector.broadcast %222 : vector<10x1xf32> to vector<10x10xf32>
    %224 = arith.mulf %219, %223 : vector<10x10xf32>
    %cst_106 = arith.constant dense<0.000000e+00> : vector<10x128xf32>
    %225 = tpu.matmul %224, %210, %cst_106 {dimension_numbers = #tpu.dot_dimension_numbers<[1], [0], [0], [1], [0, 0, 1, 1], [], []>} : vector<10x10xf32>, vector<10x128xf32>, vector<10x128xf32> -> vector<10x128xf32>
    %226 = tpu.concatenate %207, %225 in 1 : vector<10x128xf32>, vector<10x128xf32> -> vector<10x256xf32>
    %c1_107 = arith.constant 1 : index
    %c0_108 = arith.constant 0 : index
    %c0_109 = arith.constant 0 : index
    %227 = vector.load %arg7[%c1_107, %c0_108, %c0_109] : memref<2x256x32xf32, #tpu.memory_space<vmem>>, vector<1x256x32xf32>
    %228 = vector.shape_cast %227 : vector<1x256x32xf32> to vector<256x32xf32>
    %cst_110 = arith.constant dense<0.000000e+00> : vector<10x32xf32>
    %229 = tpu.matmul %226, %228, %cst_110 {dimension_numbers = #tpu.dot_dimension_numbers<[1], [0], [0], [1], [0, 0, 1, 1], [], []>} : vector<10x256xf32>, vector<256x32xf32>, vector<10x32xf32> -> vector<10x32xf32>
    %230 = arith.addf %158, %229 : vector<10x32xf32>
    %c1_111 = arith.constant 1 : index
    %c0_112 = arith.constant 0 : index
    %c0_113 = arith.constant 0 : index
    %231 = vector.load %arg8[%c1_111, %c0_112, %c0_113] : memref<2x1x32xf32, #tpu.memory_space<vmem>>, vector<1x1x32xf32>
    %232 = vector.shape_cast %231 : vector<1x1x32xf32> to vector<1x32xf32>
    %233 = vector.broadcast %232 : vector<1x32xf32> to vector<10x32xf32>
    %234 = arith.addf %230, %233 : vector<10x32xf32>
    %c1_114 = arith.constant 1 : index
    %c0_115 = arith.constant 0 : index
    %c0_116 = arith.constant 0 : index
    %235 = vector.load %arg9[%c1_114, %c0_115, %c0_116] : memref<2x1x32xf32, #tpu.memory_space<vmem>>, vector<1x1x32xf32>
    %236 = vector.shape_cast %235 : vector<1x1x32xf32> to vector<1x32xf32>
    %c1_117 = arith.constant 1 : index
    %c0_118 = arith.constant 0 : index
    %c0_119 = arith.constant 0 : index
    %237 = vector.load %arg10[%c1_117, %c0_118, %c0_119] : memref<2x1x32xf32, #tpu.memory_space<vmem>>, vector<1x1x32xf32>
    %238 = vector.shape_cast %237 : vector<1x1x32xf32> to vector<1x32xf32>
    %cst_120 = arith.constant dense<0.000000e+00> : vector<10xf32>
    %239 = vector.multi_reduction <add>, %234, %cst_120 [1] : vector<10x32xf32> to vector<10xf32>
    %240 = vector.shape_cast %239 : vector<10xf32> to vector<10x1xf32>
    %cst_121 = arith.constant 3.200000e+01 : f32
    %241 = vector.broadcast %cst_121 : f32 to vector<10x1xf32>
    %242 = arith.divf %240, %241 : vector<10x1xf32>
    %243 = vector.broadcast %242 : vector<10x1xf32> to vector<10x32xf32>
    %244 = arith.subf %234, %243 : vector<10x32xf32>
    %245 = arith.mulf %244, %244 : vector<10x32xf32>
    %cst_122 = arith.constant dense<0.000000e+00> : vector<10xf32>
    %246 = vector.multi_reduction <add>, %245, %cst_122 [1] : vector<10x32xf32> to vector<10xf32>
    %247 = vector.shape_cast %246 : vector<10xf32> to vector<10x1xf32>
    %cst_123 = arith.constant 3.200000e+01 : f32
    %248 = vector.broadcast %cst_123 : f32 to vector<10x1xf32>
    %249 = arith.divf %247, %248 : vector<10x1xf32>
    %cst_124 = arith.constant 9.99999996E-13 : f32
    %250 = vector.broadcast %cst_124 : f32 to vector<10x1xf32>
    %251 = arith.addf %249, %250 : vector<10x1xf32>
    %252 = math.rsqrt %251 : vector<10x1xf32>
    %253 = vector.broadcast %252 : vector<10x1xf32> to vector<10x32xf32>
    %254 = arith.mulf %244, %253 : vector<10x32xf32>
    %255 = vector.broadcast %236 : vector<1x32xf32> to vector<10x32xf32>
    %256 = arith.mulf %254, %255 : vector<10x32xf32>
    %257 = vector.broadcast %238 : vector<1x32xf32> to vector<10x32xf32>
    %258 = arith.addf %256, %257 : vector<10x32xf32>
    %c1_125 = arith.constant 1 : index
    %c0_126 = arith.constant 0 : index
    %c0_127 = arith.constant 0 : index
    %259 = vector.load %arg11[%c1_125, %c0_126, %c0_127] : memref<2x32x64xf32, #tpu.memory_space<vmem>>, vector<1x32x64xf32>
    %260 = vector.shape_cast %259 : vector<1x32x64xf32> to vector<32x64xf32>
    %cst_128 = arith.constant dense<0.000000e+00> : vector<10x64xf32>
    %261 = tpu.matmul %258, %260, %cst_128 {dimension_numbers = #tpu.dot_dimension_numbers<[1], [0], [0], [1], [0, 0, 1, 1], [], []>} : vector<10x32xf32>, vector<32x64xf32>, vector<10x64xf32> -> vector<10x64xf32>
    %c1_129 = arith.constant 1 : index
    %c0_130 = arith.constant 0 : index
    %c0_131 = arith.constant 0 : index
    %262 = vector.load %arg12[%c1_129, %c0_130, %c0_131] : memref<2x1x64xf32, #tpu.memory_space<vmem>>, vector<1x1x64xf32>
    %263 = vector.shape_cast %262 : vector<1x1x64xf32> to vector<1x64xf32>
    %264 = vector.broadcast %263 : vector<1x64xf32> to vector<10x64xf32>
    %265 = arith.addf %261, %264 : vector<10x64xf32>
    %cst_132 = arith.constant 5.000000e-01 : f32
    %266 = vector.broadcast %cst_132 : f32 to vector<10x64xf32>
    %267 = arith.mulf %266, %265 : vector<10x64xf32>
    %cst_133 = arith.constant 0.707106769 : f32
    %268 = vector.broadcast %cst_133 : f32 to vector<10x64xf32>
    %269 = arith.mulf %265, %268 : vector<10x64xf32>
    %270 = math.absf %269 : vector<10x64xf32>
    %cst_134 = arith.constant 0.327591091 : f32
    %271 = vector.broadcast %cst_134 : f32 to vector<10x64xf32>
    %272 = arith.mulf %271, %270 : vector<10x64xf32>
    %cst_135 = arith.constant 1.000000e+00 : f32
    %273 = vector.broadcast %cst_135 : f32 to vector<10x64xf32>
    %274 = arith.addf %273, %272 : vector<10x64xf32>
    %cst_136 = arith.constant 1.000000e+00 : f32
    %275 = vector.broadcast %cst_136 : f32 to vector<10x64xf32>
    %276 = arith.divf %275, %274 : vector<10x64xf32>
    %cst_137 = arith.constant 1.06140542 : f32
    %277 = vector.broadcast %cst_137 : f32 to vector<10x64xf32>
    %278 = arith.mulf %277, %276 : vector<10x64xf32>
    %cst_138 = arith.constant -1.45315206 : f32
    %279 = vector.broadcast %cst_138 : f32 to vector<10x64xf32>
    %280 = arith.addf %278, %279 : vector<10x64xf32>
    %281 = arith.mulf %280, %276 : vector<10x64xf32>
    %cst_139 = arith.constant 1.42141378 : f32
    %282 = vector.broadcast %cst_139 : f32 to vector<10x64xf32>
    %283 = arith.addf %281, %282 : vector<10x64xf32>
    %284 = arith.mulf %283, %276 : vector<10x64xf32>
    %cst_140 = arith.constant -0.284496725 : f32
    %285 = vector.broadcast %cst_140 : f32 to vector<10x64xf32>
    %286 = arith.addf %284, %285 : vector<10x64xf32>
    %287 = arith.mulf %286, %276 : vector<10x64xf32>
    %cst_141 = arith.constant 0.254829586 : f32
    %288 = vector.broadcast %cst_141 : f32 to vector<10x64xf32>
    %289 = arith.addf %287, %288 : vector<10x64xf32>
    %290 = arith.mulf %289, %276 : vector<10x64xf32>
    %cst_142 = arith.constant 0.000000e+00 : f32
    %291 = vector.broadcast %cst_142 : f32 to vector<10x64xf32>
    %292 = arith.subf %291, %270 : vector<10x64xf32>
    %293 = arith.mulf %292, %270 : vector<10x64xf32>
    %294 = math.exp %293 : vector<10x64xf32>
    %295 = arith.mulf %290, %294 : vector<10x64xf32>
    %cst_143 = arith.constant 1.000000e+00 : f32
    %296 = vector.broadcast %cst_143 : f32 to vector<10x64xf32>
    %297 = arith.subf %296, %295 : vector<10x64xf32>
    %cst_144 = arith.constant 0.000000e+00 : f32
    %298 = vector.broadcast %cst_144 : f32 to vector<10x64xf32>
    %299 = arith.cmpf oge, %269, %298 : vector<10x64xf32>
    %cst_145 = arith.constant 0.000000e+00 : f32
    %300 = vector.broadcast %cst_145 : f32 to vector<10x64xf32>
    %301 = arith.subf %300, %297 : vector<10x64xf32>
    %302 = arith.select %299, %297, %301 : vector<10x64xi1>, vector<10x64xf32>
    %cst_146 = arith.constant 1.000000e+00 : f32
    %303 = vector.broadcast %cst_146 : f32 to vector<10x64xf32>
    %304 = arith.addf %303, %302 : vector<10x64xf32>
    %305 = arith.mulf %267, %304 : vector<10x64xf32>
    %c1_147 = arith.constant 1 : index
    %c0_148 = arith.constant 0 : index
    %c0_149 = arith.constant 0 : index
    %306 = vector.load %arg13[%c1_147, %c0_148, %c0_149] : memref<2x64x32xf32, #tpu.memory_space<vmem>>, vector<1x64x32xf32>
    %307 = vector.shape_cast %306 : vector<1x64x32xf32> to vector<64x32xf32>
    %cst_150 = arith.constant dense<0.000000e+00> : vector<10x32xf32>
    %308 = tpu.matmul %305, %307, %cst_150 {dimension_numbers = #tpu.dot_dimension_numbers<[1], [0], [0], [1], [0, 0, 1, 1], [], []>} : vector<10x64xf32>, vector<64x32xf32>, vector<10x32xf32> -> vector<10x32xf32>
    %309 = arith.addf %234, %308 : vector<10x32xf32>
    %c1_151 = arith.constant 1 : index
    %c0_152 = arith.constant 0 : index
    %c0_153 = arith.constant 0 : index
    %310 = vector.load %arg14[%c1_151, %c0_152, %c0_153] : memref<2x1x32xf32, #tpu.memory_space<vmem>>, vector<1x1x32xf32>
    %311 = vector.shape_cast %310 : vector<1x1x32xf32> to vector<1x32xf32>
    %312 = vector.broadcast %311 : vector<1x32xf32> to vector<10x32xf32>
    %313 = arith.addf %309, %312 : vector<10x32xf32>
    %c0_154 = arith.constant 0 : index
    %c0_155 = arith.constant 0 : index
    %314 = vector.load %arg15[%c0_154, %c0_155] : memref<1x32xf32, #tpu.memory_space<vmem>>, vector<1x32xf32>
    %c0_156 = arith.constant 0 : index
    %c0_157 = arith.constant 0 : index
    %315 = vector.load %arg16[%c0_156, %c0_157] : memref<1x32xf32, #tpu.memory_space<vmem>>, vector<1x32xf32>
    %cst_158 = arith.constant dense<0.000000e+00> : vector<10xf32>
    %316 = vector.multi_reduction <add>, %313, %cst_158 [1] : vector<10x32xf32> to vector<10xf32>
    %317 = vector.shape_cast %316 : vector<10xf32> to vector<10x1xf32>
    %cst_159 = arith.constant 3.200000e+01 : f32
    %318 = vector.broadcast %cst_159 : f32 to vector<10x1xf32>
    %319 = arith.divf %317, %318 : vector<10x1xf32>
    %320 = vector.broadcast %319 : vector<10x1xf32> to vector<10x32xf32>
    %321 = arith.subf %313, %320 : vector<10x32xf32>
    %322 = arith.mulf %321, %321 : vector<10x32xf32>
    %cst_160 = arith.constant dense<0.000000e+00> : vector<10xf32>
    %323 = vector.multi_reduction <add>, %322, %cst_160 [1] : vector<10x32xf32> to vector<10xf32>
    %324 = vector.shape_cast %323 : vector<10xf32> to vector<10x1xf32>
    %cst_161 = arith.constant 3.200000e+01 : f32
    %325 = vector.broadcast %cst_161 : f32 to vector<10x1xf32>
    %326 = arith.divf %324, %325 : vector<10x1xf32>
    %cst_162 = arith.constant 9.99999996E-13 : f32
    %327 = vector.broadcast %cst_162 : f32 to vector<10x1xf32>
    %328 = arith.addf %326, %327 : vector<10x1xf32>
    %329 = math.rsqrt %328 : vector<10x1xf32>
    %330 = vector.broadcast %329 : vector<10x1xf32> to vector<10x32xf32>
    %331 = arith.mulf %321, %330 : vector<10x32xf32>
    %332 = vector.broadcast %314 : vector<1x32xf32> to vector<10x32xf32>
    %333 = arith.mulf %331, %332 : vector<10x32xf32>
    %334 = vector.broadcast %315 : vector<1x32xf32> to vector<10x32xf32>
    %335 = arith.addf %333, %334 : vector<10x32xf32>
    %c0_163 = arith.constant 0 : index
    %c0_164 = arith.constant 0 : index
    %336 = vector.load %arg17[%c0_163, %c0_164] : memref<32x128xf32, #tpu.memory_space<vmem>>, vector<32x128xf32>
    %cst_165 = arith.constant dense<0.000000e+00> : vector<10x128xf32>
    %337 = tpu.matmul %335, %336, %cst_165 {dimension_numbers = #tpu.dot_dimension_numbers<[1], [0], [0], [1], [0, 0, 1, 1], [], []>} : vector<10x32xf32>, vector<32x128xf32>, vector<10x128xf32> -> vector<10x128xf32>
    %c0_166 = arith.constant 0 : index
    %c0_167 = arith.constant 0 : index
    %338 = vector.load %arg18[%c0_166, %c0_167] : memref<1x128xf32, #tpu.memory_space<vmem>>, vector<1x128xf32>
    %339 = vector.broadcast %338 : vector<1x128xf32> to vector<10x128xf32>
    %340 = arith.addf %337, %339 : vector<10x128xf32>
    %c0_168 = arith.constant 0 : index
    %c0_169 = arith.constant 0 : index
    %341 = vector.load %arg19[%c0_168, %c0_169] : memref<10x128xf32, #tpu.memory_space<vmem>>, vector<10x128xf32>
    tpu.vector_store %arg19[%c0_168, %c0_169], %340 {strides = array<i32>} : memref<10x128xf32, #tpu.memory_space<vmem>>, vector<10x128xf32>,
    return
  }
}

</mosaic_0001>

<llo_original>
// kernel: tile.9
$region0: #{tile.9}
  %s0 = inlined_call_operand.vmem [shape: f32[2,5,5], index: 0, kind: input, shape index: {}]
  %s1 = inlined_call_operand.vmem [shape: f32[10,5], index: 1, kind: output, shape index: {}]
  $region1: #{tile.9} parent=0
    #allocation0 [shape = 'u8[20480]{0}', space=vmem, size = 0x5000, scoped, tag = 'scoped mem for input reshape']
    %s3 = sshll.u32 1, 2
    %s4 = ssub.s32 %s3, 1
    %s5 = smul.addr 2, 4
    %s6 = scalar_lea.vmem %s0, %s5
    %v7 = vld [vmem:[%s6] sm:%s4]
    %s8 = scalar_lea.vmem [#allocation0], 32
    %9 = vst [vmem:[%s8] sm:%s4] %v7
    %s10 = smul.addr 2, 3
    %s11 = scalar_lea.vmem %s0, %s10
    %v12 = vld [vmem:[%s11] sm:%s4]
    %s13 = scalar_lea.vmem [#allocation0], 24
    %14 = vst [vmem:[%s13] sm:%s4] %v12
    %s15 = smul.addr 2, 2
    %s16 = scalar_lea.vmem %s0, %s15
    %v17 = vld [vmem:[%s16] sm:%s4]
    %s18 = scalar_lea.vmem [#allocation0], 16
    %19 = vst [vmem:[%s18] sm:%s4] %v17
    %s20 = scalar_lea.vmem %s0, 2
    %v21 = vld [vmem:[%s20] sm:%s4]
    %s22 = scalar_lea.vmem [#allocation0], 8
    %23 = vst [vmem:[%s22] sm:%s4] %v21
    %v24 = vld [vmem:[%s0] sm:%s4]
    %25 = vst [vmem:[#allocation0] sm:%s4] %v24
    %v26 = vld [vmem:[#allocation0] ss:$8 sm:$0xf]
    %s27 = scalar_lea.vmem [#allocation0], 28
    %v28 = vld [vmem:[%s27] sm:$0x10]
    %vm29 = vcmask 1044484
    %v30 = vsel %vm29, %v28, %v26
    %vm31 = vcmask 39936
    %32 = vst.msk [vmem:[%s1] sm:$0x1f] %vm31, %v30
    %s33 = scalar_lea.vmem [#allocation0], 1
    %v34 = vld [vmem:[%s33] ss:$8 sm:$0xf]
    %s35 = scalar_lea.vmem [#allocation0], 29
    %v36 = vld [vmem:[%s35] sm:$0x10]
    %vm37 = vcmask 1044484
    %v38 = vsel %vm37, %v36, %v34
    %39 = vrot.lane.b32.xlu0 %v38, 5
    %v40 = vpop.permute.xlu0 %39
    %vm41 = vcmask 80936
    %42 = vst.msk [vmem:[%s1] sm:$0x1f] %vm41, %v40

// kernel: vit_logits.1
$region0: #{vit_logits.1}
  #allocation0 [shape = 'u32[]', space=smem, size = 0x4, offset = 0x4, fixed_abs, tag = 'smem constant byte address 0x4 - core index']
  #allocation1 [shape = 'u32[144,128]{1,0:T(1,128)}', space=vmem, size = 0x12000, scoped, tag = 'internal scratch']
  %s0 = inlined_call_operand.vmem [shape: f32[10,256], index: 0, kind: input, shape index: {}]
  %s1 = inlined_call_operand.vmem [shape: f32[10,10], index: 1, kind: input, shape index: {}]
  %s2 = inlined_call_operand.vmem [shape: f32[256,32], index: 2, kind: input, shape index: {}]
  %s3 = inlined_call_operand.vmem [shape: f32[2,1,32], index: 3, kind: input, shape index: {}]
  %s4 = inlined_call_operand.vmem [shape: f32[2,1,32], index: 4, kind: input, shape index: {}]
  %s5 = inlined_call_operand.vmem [shape: f32[2,32,768], index: 5, kind: input, shape index: {}]
  %s6 = inlined_call_operand.vmem [shape: f32[2,1,768], index: 6, kind: input, shape index: {}]
  %s7 = inlined_call_operand.vmem [shape: f32[2,256,32], index: 7, kind: input, shape index: {}]
  %s8 = inlined_call_operand.vmem [shape: f32[2,1,32], index: 8, kind: input, shape index: {}]
  %s9 = inlined_call_operand.vmem [shape: f32[2,1,32], index: 9, kind: input, shape index: {}]
  %s10 = inlined_call_operand.vmem [shape: f32[2,1,32], index: 10, kind: input, shape index: {}]
  %s11 = inlined_call_operand.vmem [shape: f32[2,32,64], index: 11, kind: input, shape index: {}]
  %s12 = inlined_call_operand.vmem [shape: f32[2,1,64], index: 12, kind: input, shape index: {}]
  %s13 = inlined_call_operand.vmem [shape: f32[2,64,32], index: 13, kind: input, shape index: {}]
  %s14 = inlined_call_operand.vmem [shape: f32[2,1,32], index: 14, kind: input, shape index: {}]
  %s15 = inlined_call_operand.vmem [shape: f32[1,32], index: 15, kind: input, shape index: {}]
  %s16 = inlined_call_operand.vmem [shape: f32[1,32], index: 16, kind: input, shape index: {}]
  %s17 = inlined_call_operand.vmem [shape: f32[32,128], index: 17, kind: input, shape index: {}]
  %s18 = inlined_call_operand.vmem [shape: f32[1,128], index: 18, kind: input, shape index: {}]
  %s19 = inlined_call_operand.vmem [shape: f32[10,128], index: 19, kind: output, shape index: {}]
  %s20 = sld [smem:[#allocation0]]
  $region86: #{vit_logits.1} parent=0
    _
  %s22 = ssub.s32 1, %s20
  %s23 = scalar_select 0, %s22, %s20
  // Predicated region
  $region2: #{vit_logits.1} parent=0 // pred_check
    _
  $region3: #{vit_logits.1} parent=0 // pred_check_branch
    %25 = sbr.rel (0) target = $region5
  $region4: #{vit_logits.1} parent=0 // pred_region
    _
  $region5: #{vit_logits.1} parent=0 // pred_fallthru
    _
  // Predicated region
  $region6: #{vit_logits.1} parent=0 // pred_check
    _
  $region7: #{vit_logits.1} parent=0 // pred_check_branch
    %27 = sbr.rel (0) target = $region9
  $region8: #{vit_logits.1} parent=0 // pred_region
    _
  $region9: #{vit_logits.1} parent=0 // pred_fallthru
    _
  // Predicated region
  $region10: #{vit_logits.1} parent=0 // pred_check
    _
  $region11: #{vit_logits.1} parent=0 // pred_check_branch
    %29 = sbr.rel (0) target = $region13
  $region12: #{vit_logits.1} parent=0 // pred_region
    _
  $region13: #{vit_logits.1} parent=0 // pred_fallthru
    _
  // Predicated region
  $region14: #{vit_logits.1} parent=0 // pred_check
    _
  $region15: #{vit_logits.1} parent=0 // pred_check_branch
    %31 = sbr.rel (0) target = $region17
  $region16: #{vit_logits.1} parent=0 // pred_region
    _
  $region17: #{vit_logits.1} parent=0 // pred_fallthru
    _
  // Predicated region
  $region18: #{vit_logits.1} parent=0 // pred_check
    _
  $region19: #{vit_logits.1} parent=0 // pred_check_branch
    %33 = sbr.rel (0) target = $region21
  $region20: #{vit_logits.1} parent=0 // pred_region
    _
  $region21: #{vit_logits.1} parent=0 // pred_fallthru
    _
  // Predicated region
  $region22: #{vit_logits.1} parent=0 // pred_check
    _
  $region23: #{vit_logits.1} parent=0 // pred_check_branch
    %35 = sbr.rel (0) target = $region25
  $region24: #{vit_logits.1} parent=0 // pred_region
    _
  $region25: #{vit_logits.1} parent=0 // pred_fallthru
    _
  // Predicated region
  $region26: #{vit_logits.1} parent=0 // pred_check
    _
  $region27: #{vit_logits.1} parent=0 // pred_check_branch
    %37 = sbr.rel (0) target = $region29
  $region28: #{vit_logits.1} parent=0 // pred_region
    _
  $region29: #{vit_logits.1} parent=0 // pred_fallthru
    _
  // Predicated region
  $region30: #{vit_logits.1} parent=0 // pred_check
    _
  $region31: #{vit_logits.1} parent=0 // pred_check_branch
    %39 = sbr.rel (0) target = $region33
  $region32: #{vit_logits.1} parent=0 // pred_region
    _
  $region33: #{vit_logits.1} parent=0 // pred_fallthru
    _
  // Predicated region
  $region34: #{vit_logits.1} parent=0 // pred_check
    _
  $region35: #{vit_logits.1} parent=0 // pred_check_branch
    %41 = sbr.rel (0) target = $region37
  $region36: #{vit_logits.1} parent=0 // pred_region
    _
  $region37: #{vit_logits.1} parent=0 // pred_fallthru
    _
  // Predicated region
  $region38: #{vit_logits.1} parent=0 // pred_check
    _
  $region39: #{vit_logits.1} parent=0 // pred_check_branch
    %43 = sbr.rel (0) target = $region41
  $region40: #{vit_logits.1} parent=0 // pred_region
    _
  $region41: #{vit_logits.1} parent=0 // pred_fallthru
    _
  // Predicated region
  $region42: #{vit_logits.1} parent=0 // pred_check
    _
  $region43: #{vit_logits.1} parent=0 // pred_check_branch
    %45 = sbr.rel (0) target = $region45
  $region44: #{vit_logits.1} parent=0 // pred_region
    _
  $region45: #{vit_logits.1} parent=0 // pred_fallthru
    _
  // Predicated region
  $region46: #{vit_logits.1} parent=0 // pred_check
    _
  $region47: #{vit_logits.1} parent=0 // pred_check_branch
    %47 = sbr.rel (0) target = $region49
  $region48: #{vit_logits.1} parent=0 // pred_region
    _
  $region49: #{vit_logits.1} parent=0 // pred_fallthru
    _
  // Predicated region
  $region50: #{vit_logits.1} parent=0 // pred_check
    _
  $region51: #{vit_logits.1} parent=0 // pred_check_branch
    %49 = sbr.rel (0) target = $region53
  $region52: #{vit_logits.1} parent=0 // pred_region
    _
  $region53: #{vit_logits.1} parent=0 // pred_fallthru
    _
  // Predicated region
  $region54: #{vit_logits.1} parent=0 // pred_check
    _
  $region55: #{vit_logits.1} parent=0 // pred_check_branch
    %51 = sbr.rel (0) target = $region57
  $region56: #{vit_logits.1} parent=0 // pred_region
    _
  $region57: #{vit_logits.1} parent=0 // pred_fallthru
    _
  // Predicated region
  $region58: #{vit_logits.1} parent=0 // pred_check
    _
  $region59: #{vit_logits.1} parent=0 // pred_check_branch
    %53 = sbr.rel (0) target = $region61
  $region60: #{vit_logits.1} parent=0 // pred_region
    _
  $region61: #{vit_logits.1} parent=0 // pred_fallthru
    _
  // Predicated region
  $region62: #{vit_logits.1} parent=0 // pred_check
    _
  $region63: #{vit_logits.1} parent=0 // pred_check_branch
    %55 = sbr.rel (0) target = $region65
  $region64: #{vit_logits.1} parent=0 // pred_region
    _
  $region65: #{vit_logits.1} parent=0 // pred_fallthru
    _
  // Predicated region
  $region66: #{vit_logits.1} parent=0 // pred_check
    _
  $region67: #{vit_logits.1} parent=0 // pred_check_branch
    %57 = sbr.rel (0) target = $region69
  $region68: #{vit_logits.1} parent=0 // pred_region
    _
  $region69: #{vit_logits.1} parent=0 // pred_fallthru
    _
  // Predicated region
  $region70: #{vit_logits.1} parent=0 // pred_check
    _
  $region71: #{vit_logits.1} parent=0 // pred_check_branch
    %59 = sbr.rel (0) target = $region73
  $region72: #{vit_logits.1} parent=0 // pred_region
    _
  $region73: #{vit_logits.1} parent=0 // pred_fallthru
    _
  // Predicated region
  $region74: #{vit_logits.1} parent=0 // pred_check
    _
  $region75: #{vit_logits.1} parent=0 // pred_check_branch
    %61 = sbr.rel (0) target = $region77
  $region76: #{vit_logits.1} parent=0 // pred_region
    _
  $region77: #{vit_logits.1} parent=0 // pred_fallthru
    _
  %v62 = vld [vmem:[%s0] sm:$0xff]
  %v63 = vld [vmem:[%s0 + $0x8] sm:$0xff]
  %v64 = vld [vmem:[%s0 + $0x10] sm:$0x3]
  %v65 = vld [vmem:[%s0 + $0x18] sm:$0x3]
  %v66 = vld [vmem:[%s2] sm:$0xff]
  %v67 = vld [vmem:[%s2 + $0x8] sm:$0xff]
  %v68 = vld [vmem:[%s2 + $0x10] sm:$0xff]
  %v69 = vld [vmem:[%s2 + $0x18] sm:$0xff]
  %v70 = vld [vmem:[%s2 + $0x20] sm:$0xff]
  %v71 = vld [vmem:[%s2 + $0x28] sm:$0xff]
  %v72 = vld [vmem:[%s2 + $0x30] sm:$0xff]
  %v73 = vld [vmem:[%s2 + $0x38] sm:$0xff]
  %v74 = vld [vmem:[%s2 + $0x40] sm:$0xff]
  %v75 = vld [vmem:[%s2 + $0x48] sm:$0xff]
  %v76 = vld [vmem:[%s2 + $0x50] sm:$0xff]
  %v77 = vld [vmem:[%s2 + $0x58] sm:$0xff]
  %v78 = vld [vmem:[%s2 + $0x60] sm:$0xff]
  %v79 = vld [vmem:[%s2 + $0x68] sm:$0xff]
  %v80 = vld [vmem:[%s2 + $0x70] sm:$0xff]
  %v81 = vld [vmem:[%s2 + $0x78] sm:$0xff]
  %v82 = vld [vmem:[%s2 + $0x80] sm:$0xff]
  %v83 = vld [vmem:[%s2 + $0x88] sm:$0xff]
  %v84 = vld [vmem:[%s2 + $0x90] sm:$0xff]
  %v85 = vld [vmem:[%s2 + $0x98] sm:$0xff]
  %v86 = vld [vmem:[%s2 + $0xa0] sm:$0xff]
  %v87 = vld [vmem:[%s2 + $0xa8] sm:$0xff]
  %v88 = vld [vmem:[%s2 + $0xb0] sm:$0xff]
  %v89 = vld [vmem:[%s2 + $0xb8] sm:$0xff]
  %v90 = vld [vmem:[%s2 + $0xc0] sm:$0xff]
  %v91 = vld [vmem:[%s2 + $0xc8] sm:$0xff]
  %v92 = vld [vmem:[%s2 + $0xd0] sm:$0xff]
  %v93 = vld [vmem:[%s2 + $0xd8] sm:$0xff]
  %v94 = vld [vmem:[%s2 + $0xe0] sm:$0xff]
  %v95 = vld [vmem:[%s2 + $0xe8] sm:$0xff]
  %v96 = vld [vmem:[%s2 + $0xf0] sm:$0xff]
  %v97 = vld [vmem:[%s2 + $0xf8] sm:$0xff]
  %98 = vmatprep.subr.mxu0 0.0
  %99 = vmatpush1.msra.mxu0 %v81
  %100 = vmatprep.subr.mxu0 0.0
  %101 = vmatpush1.msra.mxu0 %v80
  %102 = vmatprep.subr.mxu0 0.0
  %103 = vmatpush1.msra.mxu0 %v79
  %104 = vmatprep.subr.mxu0 0.0
  %105 = vmatpush1.msra.mxu0 %v78
  %106 = vmatprep.subr.mxu0 0.0
  %107 = vmatpush1.msra.mxu0 %v77
  %108 = vmatprep.subr.mxu0 0.0
  %109 = vmatpush1.msra.mxu0 %v76
  %110 = vmatprep.subr.mxu0 0.0
  %111 = vmatpush1.msra.mxu0 %v75
  %112 = vmatprep.subr.mxu0 0.0
  %113 = vmatpush1.msra.mxu0 %v74
  %114 = vmatprep.subr.mxu0 0.0
  %115 = vmatpush1.msra.mxu0 %v73
  %116 = vmatprep.subr.mxu0 0.0
  %117 = vmatpush1.msra.mxu0 %v72
  %118 = vmatprep.subr.mxu0 0.0
  %119 = vmatpush1.msra.mxu0 %v71
  %120 = vmatprep.subr.mxu0 0.0
  %121 = vmatpush1.msra.mxu0 %v70
  %122 = vmatprep.subr.mxu0 0.0
  %123 = vmatpush1.msra.mxu0 %v69
  %124 = vmatprep.subr.mxu0 0.0
  %125 = vmatpush1.msra.mxu0 %v68
  %126 = vmatprep.subr.mxu0 0.0
  %127 = vmatpush1.msra.mxu0 %v67
  %128 = vmatprep.subr.mxu0 0.0
  %129 = vmatpush1.msra.mxu0 %v66
  %130 = vmatprep.subr.mxu0 0.0
  %131 = vmatpush2.msra.mxu0 %v97
  %132 = vmatprep.subr.mxu0 0.0
  %133 = vmatpush2.msra.mxu0 %v96
  %134 = vmatprep.subr.mxu0 0.0
  %135 = vmatpush2.msra.mxu0 %v95
  %136 = vmatprep.subr.mxu0 0.0
  %137 = vmatpush2.msra.mxu0 %v94
  %138 = vmatprep.subr.mxu0 0.0
  %139 = vmatpush2.msra.mxu0 %v93
  %140 = vmatprep.subr.mxu0 0.0
  %141 = vmatpush2.msra.mxu0 %v92
  %142 = vmatprep.subr.mxu0 0.0
  %143 = vmatpush2.msra.mxu0 %v91
  %144 = vmatprep.subr.mxu0 0.0
  %145 = vmatpush2.msra.mxu0 %v90
  %146 = vmatprep.subr.mxu0 0.0
  %147 = vmatpush2.msra.mxu0 %v89
  %148 = vmatprep.subr.mxu0 0.0
  %149 = vmatpush2.msra.mxu0 %v88
  %150 = vmatprep.subr.mxu0 0.0
  %151 = vmatpush2.msra.mxu0 %v87
  %152 = vmatprep.subr.mxu0 0.0
  %153 = vmatpush2.msra.mxu0 %v86
  %154 = vmatprep.subr.mxu0 0.0
  %155 = vmatpush2.msra.mxu0 %v85
  %156 = vmatprep.subr.mxu0 0.0
  %157 = vmatpush2.msra.mxu0 %v84
  %158 = vmatprep.subr.mxu0 0.0
  %159 = vmatpush2.msra.mxu0 %v83
  %160 = vmatprep.subr.mxu0 0.0
  %161 = vmatpush2.msra.mxu0 %v82
  %162 = vmatprep.mubr.f32.mxu0 %v63
  %163 = vmatmul.mubr.f32.gmra.mxu0 %v62
  %v164 = vpop.f32.mrf.mxu0
  %v165 = vadd.f32 0.0, %v164
  %v166 = vpop.f32.mrf.mxu0
  %167 = vmatprep.mubr.f32.mxu0 %v65
  %168 = vmatmul.mubr.f32.gmra.mxu0 %v64
  %v169 = vpop.f32.mrf.mxu0
  %v170 = vadd.f32 0.0, %v169
  %v171 = vpop.f32.mrf.mxu0
  %172 = vdwg.mxu0
  %v173 = vld [vmem:[%s1] sm:$0xff]
  %v174 = vld [vmem:[%s1 + $0x8] sm:$0x3]
  %v175 = vld [vmem:[%s3] sm:$0x1]
  %v176 = vld [vmem:[%s4] sm:$0x1]
  %vm177 = vcmask 261120
  %v178 = vsel %vm177, %v165, 0.0
  %179 = vadd.xlane.f32.xlu0 %v178
  %v180 = vpop.xlane.xlu0 %179
  %vm181 = vcmask 254976
  %v182 = vsel %vm181, %v170, 0.0
  %183 = vadd.xlane.f32.xlu0 %v182
  %v184 = vpop.xlane.xlu0 %183
  %v185 = vrcp.pop 32.0
  %v186 = vmul.f32 %v180, %v185
  %v187 = vmul.f32 %v184, %v185
  %v188 = vsub.f32 %v165, %v186
  %v189 = vsub.f32 %v170, %v187
  %v190 = vmul.f32 %v188, %v188
  %v191 = vmul.f32 %v189, %v189
  %v192 = vsel %vm177, %v190, 0.0
  %193 = vadd.xlane.f32.xlu0 %v192
  %v194 = vpop.xlane.xlu0 %193
  %v195 = vsel %vm181, %v191, 0.0
  %196 = vadd.xlane.f32.xlu0 %v195
  %v197 = vpop.xlane.xlu0 %196
  %v198 = vmul.f32 %v194, %v185
  %v199 = vmul.f32 %v197, %v185
  %v200 = vadd.f32 %v198, 1e-12
  %v201 = vadd.f32 %v199, 1e-12
  %v202 = vrsqrt.pop %v200
  %v203 = vrsqrt.pop %v201
  %v204 = vmul.f32 %v188, %v202
  %v205 = vmul.f32 %v189, %v203
  %v207 = vlaneseq
  %v208 = vshrl.u32 %v207, 7
  %v209 = vsub.s32 0, %v208
  %v210 = vrot.slane %v175, %v209
  %v212 = vmul.f32 %v204, %v210
  %v213 = vmul.f32 %v205, %v210
  %v215 = vlaneseq
  %v216 = vshrl.u32 %v215, 7
  %v217 = vsub.s32 0, %v216
  %v218 = vrot.slane %v176, %v217
  %v220 = vadd.f32 %v212, %v218
  %v221 = vadd.f32 %v213, %v218
  %v222 = vld [vmem:[%s5] sm:$0xff]
  %v223 = vld [vmem:[%s5 + $0x8] sm:$0xff]
  %v224 = vld [vmem:[%s5 + $0x10] sm:$0xff]
  %v225 = vld [vmem:[%s5 + $0x18] sm:$0xff]
  %v226 = vld [vmem:[%s5 + $0x20] sm:$0xff]
  %v227 = vld [vmem:[%s5 + $0x28] sm:$0xff]
  %v228 = vld [vmem:[%s5 + $0x30] sm:$0xff]
  %v229 = vld [vmem:[%s5 + $0x38] sm:$0xff]
  %v230 = vld [vmem:[%s5 + $0x40] sm:$0xff]
  %v231 = vld [vmem:[%s5 + $0x48] sm:$0xff]
  %v232 = vld [vmem:[%s5 + $0x50] sm:$0xff]
  %v233 = vld [vmem:[%s5 + $0x58] sm:$0xff]
  %v234 = vld [vmem:[%s5 + $0x60] sm:$0xff]
  %v235 = vld [vmem:[%s5 + $0x68] sm:$0xff]
  %v236 = vld [vmem:[%s5 + $0x70] sm:$0xff]
  %v237 = vld [vmem:[%s5 + $0x78] sm:$0xff]
  %v238 = vld [vmem:[%s5 + $0x80] sm:$0xff]
  %v239 = vld [vmem:[%s5 + $0x88] sm:$0xff]
  %v240 = vld [vmem:[%s5 + $0x90] sm:$0xff]
  %v241 = vld [vmem:[%s5 + $0x98] sm:$0xff]
  %v242 = vld [vmem:[%s5 + $0xa0] sm:$0xff]
  %v243 = vld [vmem:[%s5 + $0xa8] sm:$0xff]
  %v244 = vld [vmem:[%s5 + $0xb0] sm:$0xff]
  %v245 = vld [vmem:[%s5 + $0xb8] sm:$0xff]
  %v246 = vld [vmem:[%s6] sm:$0x3f]
  %v248 = vlaneseq
  %v249 = vshrl.u32 %v248, 7
  %v250 = vsub.s32 0, %v249
  %v251 = vrot.slane %v246, %v250
  %v252 = vlaneseq
  %v253 = vshrl.u32 %v252, 7
  %v254 = vsub.s32 1, %v253
  %v255 = vrot.slane %v246, %v254
  %v256 = vlaneseq
  %v257 = vshrl.u32 %v256, 7
  %v258 = vsub.s32 2, %v257
  %v259 = vrot.slane %v246, %v258
  %v260 = vlaneseq
  %v261 = vshrl.u32 %v260, 7
  %v262 = vsub.s32 3, %v261
  %v263 = vrot.slane %v246, %v262
  %v264 = vlaneseq
  %v265 = vshrl.u32 %v264, 7
  %v266 = vsub.s32 4, %v265
  %v267 = vrot.slane %v246, %v266
  %v268 = vlaneseq
  %v269 = vshrl.u32 %v268, 7
  %v270 = vsub.s32 5, %v269
  %v271 = vrot.slane %v246, %v270
  %v279 = vsel %vm177, %v220, 0
  %v282 = vsel %vm177, %v221, 0
  %284 = vmatprep.subr.mxu0 0.0
  %285 = vmatpush1.msra.mxu0 0.0
  %286 = vmatprep.subr.mxu0 0.0
  %287 = vmatpush1.msra.mxu0 0.0
  %288 = vmatprep.subr.mxu0 0.0
  %289 = vmatpush1.msra.mxu0 0.0
  %290 = vmatprep.subr.mxu0 0.0
  %291 = vmatpush1.msra.mxu0 0.0
  %292 = vmatprep.subr.mxu0 0.0
  %293 = vmatpush1.msra.mxu0 0.0
  %294 = vmatprep.subr.mxu0 0.0
  %295 = vmatpush1.msra.mxu0 0.0
  %296 = vmatprep.subr.mxu0 0.0
  %297 = vmatpush1.msra.mxu0 0.0
  %298 = vmatprep.subr.mxu0 0.0
  %299 = vmatpush1.msra.mxu0 0.0
  %300 = vmatprep.subr.mxu0 0.0
  %301 = vmatpush1.msra.mxu0 0.0
  %302 = vmatprep.subr.mxu0 0.0
  %303 = vmatpush1.msra.mxu0 0.0
  %304 = vmatprep.subr.mxu0 0.0
  %305 = vmatpush1.msra.mxu0 0.0
  %306 = vmatprep.subr.mxu0 0.0
  %307 = vmatpush1.msra.mxu0 0.0
  %308 = vmatprep.subr.mxu0 %v241
  %309 = vmatpush1.msra.mxu0 %v240
  %310 = vmatprep.subr.mxu0 %v235
  %311 = vmatpush1.msra.mxu0 %v234
  %312 = vmatprep.subr.mxu0 %v229
  %313 = vmatpush1.msra.mxu0 %v228
  %314 = vmatprep.subr.mxu0 %v223
  %315 = vmatpush1.msra.mxu0 %v222
  %316 = vmatprep.subr.mxu0 0.0
  %317 = vmatpush2.msra.mxu0 0.0
  %318 = vmatprep.subr.mxu0 0.0
  %319 = vmatpush2.msra.mxu0 0.0
  %320 = vmatprep.subr.mxu0 0.0
  %321 = vmatpush2.msra.mxu0 0.0
  %322 = vmatprep.subr.mxu0 0.0
  %323 = vmatpush2.msra.mxu0 0.0
  %324 = vmatprep.subr.mxu0 0.0
  %325 = vmatpush2.msra.mxu0 0.0
  %326 = vmatprep.subr.mxu0 0.0
  %327 = vmatpush2.msra.mxu0 0.0
  %328 = vmatprep.subr.mxu0 0.0
  %329 = vmatpush2.msra.mxu0 0.0
  %330 = vmatprep.subr.mxu0 0.0
  %331 = vmatpush2.msra.mxu0 0.0
  %332 = vmatprep.subr.mxu0 0.0
  %333 = vmatpush2.msra.mxu0 0.0
  %334 = vmatprep.subr.mxu0 0.0
  %335 = vmatpush2.msra.mxu0 0.0
  %336 = vmatprep.subr.mxu0 0.0
  %337 = vmatpush2.msra.mxu0 0.0
  %338 = vmatprep.subr.mxu0 0.0
  %339 = vmatpush2.msra.mxu0 0.0
  %340 = vmatprep.subr.mxu0 0.0
  %341 = vmatpush2.msra.mxu0 0.0
  %342 = vmatprep.subr.mxu0 0.0
  %343 = vmatpush2.msra.mxu0 0.0
  %344 = vmatprep.subr.mxu0 0.0
  %345 = vmatpush2.msra.mxu0 0.0
  %346 = vmatprep.subr.mxu0 0.0
  %347 = vmatpush2.msra.mxu0 0.0
  %348 = vmatprep.mubr.f32.mxu0 0.0
  %349 = vmatmul.mubr.f32.gmra.mxu0 %v279
  %v350 = vpop.f32.mrf.mxu0
  %v351 = vadd.f32 %v251, %v350
  %v352 = vpop.f32.mrf.mxu0
  %v353 = vadd.f32 %v255, %v352
  %354 = vmatprep.mubr.f32.mxu0 0.0
  %355 = vmatmul.mubr.f32.gmra.mxu0 %v282
  %v356 = vpop.f32.mrf.mxu0
  %v357 = vadd.f32 %v251, %v356
  %v358 = vpop.f32.mrf.mxu0
  %v359 = vadd.f32 %v255, %v358
  %360 = vdwg.mxu0
  %361 = vmatprep.subr.mxu0 0.0
  %362 = vmatpush1.msra.mxu0 0.0
  %363 = vmatprep.subr.mxu0 0.0
  %364 = vmatpush1.msra.mxu0 0.0
  %365 = vmatprep.subr.mxu0 0.0
  %366 = vmatpush1.msra.mxu0 0.0
  %367 = vmatprep.subr.mxu0 0.0
  %368 = vmatpush1.msra.mxu0 0.0
  %369 = vmatprep.subr.mxu0 0.0
  %370 = vmatpush1.msra.mxu0 0.0
  %371 = vmatprep.subr.mxu0 0.0
  %372 = vmatpush1.msra.mxu0 0.0
  %373 = vmatprep.subr.mxu0 0.0
  %374 = vmatpush1.msra.mxu0 0.0
  %375 = vmatprep.subr.mxu0 0.0
  %376 = vmatpush1.msra.mxu0 0.0
  %377 = vmatprep.subr.mxu0 0.0
  %378 = vmatpush1.msra.mxu0 0.0
  %379 = vmatprep.subr.mxu0 0.0
  %380 = vmatpush1.msra.mxu0 0.0
  %381 = vmatprep.subr.mxu0 0.0
  %382 = vmatpush1.msra.mxu0 0.0
  %383 = vmatprep.subr.mxu0 0.0
  %384 = vmatpush1.msra.mxu0 0.0
  %385 = vmatprep.subr.mxu0 %v243
  %386 = vmatpush1.msra.mxu0 %v242
  %387 = vmatprep.subr.mxu0 %v237
  %388 = vmatpush1.msra.mxu0 %v236
  %389 = vmatprep.subr.mxu0 %v231
  %390 = vmatpush1.msra.mxu0 %v230
  %391 = vmatprep.subr.mxu0 %v225
  %392 = vmatpush1.msra.mxu0 %v224
  %393 = vmatprep.subr.mxu0 0.0
  %394 = vmatpush2.msra.mxu0 0.0
  %395 = vmatprep.subr.mxu0 0.0
  %396 = vmatpush2.msra.mxu0 0.0
  %397 = vmatprep.subr.mxu0 0.0
  %398 = vmatpush2.msra.mxu0 0.0
  %399 = vmatprep.subr.mxu0 0.0
  %400 = vmatpush2.msra.mxu0 0.0
  %401 = vmatprep.subr.mxu0 0.0
  %402 = vmatpush2.msra.mxu0 0.0
  %403 = vmatprep.subr.mxu0 0.0
  %404 = vmatpush2.msra.mxu0 0.0
  %405 = vmatprep.subr.mxu0 0.0
  %406 = vmatpush2.msra.mxu0 0.0
  %407 = vmatprep.subr.mxu0 0.0
  %408 = vmatpush2.msra.mxu0 0.0
  %409 = vmatprep.subr.mxu0 0.0
  %410 = vmatpush2.msra.mxu0 0.0
  %411 = vmatprep.subr.mxu0 0.0
  %412 = vmatpush2.msra.mxu0 0.0
  %413 = vmatprep.subr.mxu0 0.0
  %414 = vmatpush2.msra.mxu0 0.0
  %415 = vmatprep.subr.mxu0 0.0
  %416 = vmatpush2.msra.mxu0 0.0
  %417 = vmatprep.subr.mxu0 0.0
  %418 = vmatpush2.msra.mxu0 0.0
  %419 = vmatprep.subr.mxu0 0.0
  %420 = vmatpush2.msra.mxu0 0.0
  %421 = vmatprep.subr.mxu0 0.0
  %422 = vmatpush2.msra.mxu0 0.0
  %423 = vmatprep.subr.mxu0 0.0
  %424 = vmatpush2.msra.mxu0 0.0
  %425 = vmatprep.mubr.f32.mxu0 0.0
  %426 = vmatmul.mubr.f32.gmra.mxu0 %v279
  %v427 = vpop.f32.mrf.mxu0
  %v428 = vadd.f32 %v259, %v427
  %v429 = vpop.f32.mrf.mxu0
  %v430 = vadd.f32 %v263, %v429
  %431 = vmatprep.mubr.f32.mxu0 0.0
  %432 = vmatmul.mubr.f32.gmra.mxu0 %v282
  %v433 = vpop.f32.mrf.mxu0
  %v434 = vadd.f32 %v259, %v433
  %v435 = vpop.f32.mrf.mxu0
  %v436 = vadd.f32 %v263, %v435
  %437 = vdwg.mxu0
  %438 = vmatprep.subr.mxu0 0.0
  %439 = vmatpush1.msra.mxu0 0.0
  %440 = vmatprep.subr.mxu0 0.0
  %441 = vmatpush1.msra.mxu0 0.0
  %442 = vmatprep.subr.mxu0 0.0
  %443 = vmatpush1.msra.mxu0 0.0
  %444 = vmatprep.subr.mxu0 0.0
  %445 = vmatpush1.msra.mxu0 0.0
  %446 = vmatprep.subr.mxu0 0.0
  %447 = vmatpush1.msra.mxu0 0.0
  %448 = vmatprep.subr.mxu0 0.0
  %449 = vmatpush1.msra.mxu0 0.0
  %450 = vmatprep.subr.mxu0 0.0
  %451 = vmatpush1.msra.mxu0 0.0
  %452 = vmatprep.subr.mxu0 0.0
  %453 = vmatpush1.msra.mxu0 0.0
  %454 = vmatprep.subr.mxu0 0.0
  %455 = vmatpush1.msra.mxu0 0.0
  %456 = vmatprep.subr.mxu0 0.0
  %457 = vmatpush1.msra.mxu0 0.0
  %458 = vmatprep.subr.mxu0 0.0
  %459 = vmatpush1.msra.mxu0 0.0
  %460 = vmatprep.subr.mxu0 0.0
  %461 = vmatpush1.msra.mxu0 0.0
  %462 = vmatprep.subr.mxu0 %v245
  %463 = vmatpush1.msra.mxu0 %v244
  %464 = vmatprep.subr.mxu0 %v239
  %465 = vmatpush1.msra.mxu0 %v238
  %466 = vmatprep.subr.mxu0 %v233
  %467 = vmatpush1.msra.mxu0 %v232
  %468 = vmatprep.subr.mxu0 %v227
  %469 = vmatpush1.msra.mxu0 %v226
  %470 = vmatprep.subr.mxu0 0.0
  %471 = vmatpush2.msra.mxu0 0.0
  %472 = vmatprep.subr.mxu0 0.0
  %473 = vmatpush2.msra.mxu0 0.0
  %474 = vmatprep.subr.mxu0 0.0
  %475 = vmatpush2.msra.mxu0 0.0
  %476 = vmatprep.subr.mxu0 0.0
  %477 = vmatpush2.msra.mxu0 0.0
  %478 = vmatprep.subr.mxu0 0.0
  %479 = vmatpush2.msra.mxu0 0.0
  %480 = vmatprep.subr.mxu0 0.0
  %481 = vmatpush2.msra.mxu0 0.0
  %482 = vmatprep.subr.mxu0 0.0
  %483 = vmatpush2.msra.mxu0 0.0
  %484 = vmatprep.subr.mxu0 0.0
  %485 = vmatpush2.msra.mxu0 0.0
  %486 = vmatprep.subr.mxu0 0.0
  %487 = vmatpush2.msra.mxu0 0.0
  %488 = vmatprep.subr.mxu0 0.0
  %489 = vmatpush2.msra.mxu0 0.0
  %490 = vmatprep.subr.mxu0 0.0
  %491 = vmatpush2.msra.mxu0 0.0
  %492 = vmatprep.subr.mxu0 0.0
  %493 = vmatpush2.msra.mxu0 0.0
  %494 = vmatprep.subr.mxu0 0.0
  %495 = vmatpush2.msra.mxu0 0.0
  %496 = vmatprep.subr.mxu0 0.0
  %497 = vmatpush2.msra.mxu0 0.0
  %498 = vmatprep.subr.mxu0 0.0
  %499 = vmatpush2.msra.mxu0 0.0
  %500 = vmatprep.subr.mxu0 0.0
  %501 = vmatpush2.msra.mxu0 0.0
  %502 = vmatprep.mubr.f32.mxu0 0.0
  %503 = vmatmul.mubr.f32.gmra.mxu0 %v279
  %v504 = vpop.f32.mrf.mxu0
  %v505 = vadd.f32 %v267, %v504
  %v506 = vpop.f32.mrf.mxu0
  %v507 = vadd.f32 %v271, %v506
  %508 = vmatprep.mubr.f32.mxu0 0.0
  %509 = vmatmul.mubr.f32.gmra.mxu0 %v282
  %v510 = vpop.f32.mrf.mxu0
  %v511 = vadd.f32 %v267, %v510
  %v512 = vpop.f32.mrf.mxu0
  %v513 = vadd.f32 %v271, %v512
  %514 = vdwg.mxu0
  %515 = vmatprep.subr.mxu0 0.0
  %516 = vmatpush1.xpose.msra.mxu0 0.0
  %517 = vmatprep.subr.mxu0 0.0
  %518 = vmatpush1.xpose.msra.mxu0 0.0
  %519 = vmatprep.subr.mxu0 0.0
  %520 = vmatpush1.xpose.msra.mxu0 0.0
  %521 = vmatprep.subr.mxu0 0.0
  %522 = vmatpush1.xpose.msra.mxu0 0.0
  %523 = vmatprep.subr.mxu0 0.0
  %524 = vmatpush1.xpose.msra.mxu0 0.0
  %525 = vmatprep.subr.mxu0 0.0
  %526 = vmatpush1.xpose.msra.mxu0 0.0
  %527 = vmatprep.subr.mxu0 0.0
  %528 = vmatpush1.xpose.msra.mxu0 0.0
  %529 = vmatprep.subr.mxu0 0.0
  %530 = vmatpush1.xpose.msra.mxu0 0.0
  %531 = vmatprep.subr.mxu0 0.0
  %532 = vmatpush1.xpose.msra.mxu0 0.0
  %533 = vmatprep.subr.mxu0 0.0
  %534 = vmatpush1.xpose.msra.mxu0 0.0
  %535 = vmatprep.subr.mxu0 0.0
  %536 = vmatpush1.xpose.msra.mxu0 0.0
  %537 = vmatprep.subr.mxu0 0.0
  %538 = vmatpush1.xpose.msra.mxu0 0.0
  %539 = vmatprep.subr.mxu0 0.0
  %540 = vmatpush1.xpose.msra.mxu0 0.0
  %541 = vmatprep.subr.mxu0 0.0
  %542 = vmatpush1.xpose.msra.mxu0 0.0
  %543 = vmatprep.subr.mxu0 0.0
  %544 = vmatpush1.xpose.msra.mxu0 %v359
  %545 = vmatprep.subr.mxu0 0.0
  %546 = vmatpush1.xpose.msra.mxu0 %v353
  %547 = vmatprep.subr.mxu0 0.0
  %548 = vmatpush2.xpose.msra.mxu0 0.0
  %549 = vmatprep.subr.mxu0 0.0
  %550 = vmatpush2.xpose.msra.mxu0 0.0
  %551 = vmatprep.subr.mxu0 0.0
  %552 = vmatpush2.xpose.msra.mxu0 0.0
  %553 = vmatprep.subr.mxu0 0.0
  %554 = vmatpush2.xpose.msra.mxu0 0.0
  %555 = vmatprep.subr.mxu0 0.0
  %556 = vmatpush2.xpose.msra.mxu0 0.0
  %557 = vmatprep.subr.mxu0 0.0
  %558 = vmatpush2.xpose.msra.mxu0 0.0
  %559 = vmatprep.subr.mxu0 0.0
  %560 = vmatpush2.xpose.msra.mxu0 0.0
  %561 = vmatprep.subr.mxu0 0.0
  %562 = vmatpush2.xpose.msra.mxu0 0.0
  %563 = vmatprep.subr.mxu0 0.0
  %564 = vmatpush2.xpose.msra.mxu0 0.0
  %565 = vmatprep.subr.mxu0 0.0
  %566 = vmatpush2.xpose.msra.mxu0 0.0
  %567 = vmatprep.subr.mxu0 0.0
  %568 = vmatpush2.xpose.msra.mxu0 0.0
  %569 = vmatprep.subr.mxu0 0.0
  %570 = vmatpush2.xpose.msra.mxu0 0.0
  %571 = vmatprep.subr.mxu0 0.0
  %572 = vmatpush2.xpose.msra.mxu0 0.0
  %573 = vmatprep.subr.mxu0 0.0
  %574 = vmatpush2.xpose.msra.mxu0 0.0
  %575 = vmatprep.subr.mxu0 0.0
  %576 = vmatpush2.xpose.msra.mxu0 0.0
  %577 = vmatprep.subr.mxu0 0.0
  %578 = vmatpush2.xpose.msra.mxu0 0.0
  %579 = vmatprep.mubr.f32.mxu0 0.0
  %580 = vmatmul.mubr.f32.gmra.mxu0 %v351
  %v581 = vpop.f32.mrf.mxu0
  %v582 = vadd.f32 0.0, %v581
  %v583 = vpop.f32.mrf.mxu0
  %584 = vmatprep.mubr.f32.mxu0 0.0
  %585 = vmatmul.mubr.f32.gmra.mxu0 %v357
  %v586 = vpop.f32.mrf.mxu0
  %v587 = vadd.f32 0.0, %v586
  %v588 = vpop.f32.mrf.mxu0
  %589 = vdwg.mxu0
  %v590 = vmul.f32 %v582, 0.25
  %v591 = vmul.f32 %v587, 0.25
  %v592 = vadd.f32 %v590, %v173
  %v593 = vadd.f32 %v591, %v174
  %vm594 = vcmask 80896
  %v595 = vsel %vm594, %v592, -inf
  %596 = vmax.xlane.f32.xlu0 %v595
  %v597 = vpop.xlane.xlu0 %596
  %vm598 = vcmask 74752
  %v599 = vsel %vm598, %v593, -inf
  %600 = vmax.xlane.f32.xlu0 %v599
  %v601 = vpop.xlane.xlu0 %600
  %v602 = vsub.f32 %v592, %v597
  %v603 = vsub.f32 %v593, %v601
  %v604 = vmul.f32 %v602, 1.442695
  %v605 = vpow.pop %v604
  %v606 = vmul.f32 %v603, 1.442695
  %v607 = vpow.pop %v606
  %v608 = vsel %vm594, %v605, 0.0
  %609 = vadd.xlane.f32.xlu0 %v608
  %v610 = vpop.xlane.xlu0 %609
  %v611 = vsel %vm598, %v607, 0.0
  %612 = vadd.xlane.f32.xlu0 %v611
  %v613 = vpop.xlane.xlu0 %612
  %v614 = vrcp.pop %v610
  %v615 = vrcp.pop %v613
  %v616 = vmul.f32 %v605, %v614
  %v617 = vmul.f32 %v607, %v615
  %v619 = vsel %vm594, %v616, 0
  %v622 = vsel %vm594, %v617, 0
  %vm624 = vcmask 1041408
  %v626 = vsel %vm624, %v434, 0
  %628 = vmatprep.subr.mxu0 0.0
  %629 = vmatpush1.msra.mxu0 0.0
  %630 = vmatprep.subr.mxu0 0.0
  %631 = vmatpush1.msra.mxu0 0.0
  %632 = vmatprep.subr.mxu0 0.0
  %633 = vmatpush1.msra.mxu0 0.0
  %634 = vmatprep.subr.mxu0 0.0
  %635 = vmatpush1.msra.mxu0 0.0
  %636 = vmatprep.subr.mxu0 0.0
  %637 = vmatpush1.msra.mxu0 0.0
  %638 = vmatprep.subr.mxu0 0.0
  %639 = vmatpush1.msra.mxu0 0.0
  %640 = vmatprep.subr.mxu0 0.0
  %641 = vmatpush1.msra.mxu0 0.0
  %642 = vmatprep.subr.mxu0 0.0
  %643 = vmatpush1.msra.mxu0 0.0
  %644 = vmatprep.subr.mxu0 0.0
  %645 = vmatpush1.msra.mxu0 0.0
  %646 = vmatprep.subr.mxu0 0.0
  %647 = vmatpush1.msra.mxu0 0.0
  %648 = vmatprep.subr.mxu0 0.0
  %649 = vmatpush1.msra.mxu0 0.0
  %650 = vmatprep.subr.mxu0 0.0
  %651 = vmatpush1.msra.mxu0 0.0
  %652 = vmatprep.subr.mxu0 0.0
  %653 = vmatpush1.msra.mxu0 0.0
  %654 = vmatprep.subr.mxu0 0.0
  %655 = vmatpush1.msra.mxu0 0.0
  %656 = vmatprep.subr.mxu0 0.0
  %657 = vmatpush1.msra.mxu0 %v626
  %658 = vmatprep.subr.mxu0 0.0
  %659 = vmatpush1.msra.mxu0 %v428
  %660 = vmatprep.subr.mxu0 0.0
  %661 = vmatpush2.msra.mxu0 0.0
  %662 = vmatprep.subr.mxu0 0.0
  %663 = vmatpush2.msra.mxu0 0.0
  %664 = vmatprep.subr.mxu0 0.0
  %665 = vmatpush2.msra.mxu0 0.0
  %666 = vmatprep.subr.mxu0 0.0
  %667 = vmatpush2.msra.mxu0 0.0
  %668 = vmatprep.subr.mxu0 0.0
  %669 = vmatpush2.msra.mxu0 0.0
  %670 = vmatprep.subr.mxu0 0.0
  %671 = vmatpush2.msra.mxu0 0.0
  %672 = vmatprep.subr.mxu0 0.0
  %673 = vmatpush2.msra.mxu0 0.0
  %674 = vmatprep.subr.mxu0 0.0
  %675 = vmatpush2.msra.mxu0 0.0
  %676 = vmatprep.subr.mxu0 0.0
  %677 = vmatpush2.msra.mxu0 0.0
  %678 = vmatprep.subr.mxu0 0.0
  %679 = vmatpush2.msra.mxu0 0.0
  %680 = vmatprep.subr.mxu0 0.0
  %681 = vmatpush2.msra.mxu0 0.0
  %682 = vmatprep.subr.mxu0 0.0
  %683 = vmatpush2.msra.mxu0 0.0
  %684 = vmatprep.subr.mxu0 0.0
  %685 = vmatpush2.msra.mxu0 0.0
  %686 = vmatprep.subr.mxu0 0.0
  %687 = vmatpush2.msra.mxu0 0.0
  %688 = vmatprep.subr.mxu0 0.0
  %689 = vmatpush2.msra.mxu0 0.0
  %690 = vmatprep.subr.mxu0 0.0
  %691 = vmatpush2.msra.mxu0 0.0
  %692 = vmatprep.mubr.f32.mxu0 0.0
  %693 = vmatmul.mubr.f32.gmra.mxu0 %v619
  %v694 = vpop.f32.mrf.mxu0
  %v695 = vadd.f32 0.0, %v694
  %v696 = vpop.f32.mrf.mxu0
  %697 = vmatprep.mubr.f32.mxu0 0.0
  %698 = vmatmul.mubr.f32.gmra.mxu0 %v622
  %v699 = vpop.f32.mrf.mxu0
  %v700 = vadd.f32 0.0, %v699
  %v701 = vpop.f32.mrf.mxu0
  %702 = vdwg.mxu0
  %703 = vmatprep.subr.mxu0 0.0
  %704 = vmatpush1.xpose.msra.mxu0 0.0
  %705 = vmatprep.subr.mxu0 0.0
  %706 = vmatpush1.xpose.msra.mxu0 0.0
  %707 = vmatprep.subr.mxu0 0.0
  %708 = vmatpush1.xpose.msra.mxu0 0.0
  %709 = vmatprep.subr.mxu0 0.0
  %710 = vmatpush1.xpose.msra.mxu0 0.0
  %711 = vmatprep.subr.mxu0 0.0
  %712 = vmatpush1.xpose.msra.mxu0 0.0
  %713 = vmatprep.subr.mxu0 0.0
  %714 = vmatpush1.xpose.msra.mxu0 0.0
  %715 = vmatprep.subr.mxu0 0.0
  %716 = vmatpush1.xpose.msra.mxu0 0.0
  %717 = vmatprep.subr.mxu0 0.0
  %718 = vmatpush1.xpose.msra.mxu0 0.0
  %719 = vmatprep.subr.mxu0 0.0
  %720 = vmatpush1.xpose.msra.mxu0 0.0
  %721 = vmatprep.subr.mxu0 0.0
  %722 = vmatpush1.xpose.msra.mxu0 0.0
  %723 = vmatprep.subr.mxu0 0.0
  %724 = vmatpush1.xpose.msra.mxu0 0.0
  %725 = vmatprep.subr.mxu0 0.0
  %726 = vmatpush1.xpose.msra.mxu0 0.0
  %727 = vmatprep.subr.mxu0 0.0
  %728 = vmatpush1.xpose.msra.mxu0 0.0
  %729 = vmatprep.subr.mxu0 0.0
  %730 = vmatpush1.xpose.msra.mxu0 0.0
  %731 = vmatprep.subr.mxu0 0.0
  %732 = vmatpush1.xpose.msra.mxu0 %v511
  %733 = vmatprep.subr.mxu0 0.0
  %734 = vmatpush1.xpose.msra.mxu0 %v505
  %735 = vmatprep.subr.mxu0 0.0
  %736 = vmatpush2.xpose.msra.mxu0 0.0
  %737 = vmatprep.subr.mxu0 0.0
  %738 = vmatpush2.xpose.msra.mxu0 0.0
  %739 = vmatprep.subr.mxu0 0.0
  %740 = vmatpush2.xpose.msra.mxu0 0.0
  %741 = vmatprep.subr.mxu0 0.0
  %742 = vmatpush2.xpose.msra.mxu0 0.0
  %743 = vmatprep.subr.mxu0 0.0
  %744 = vmatpush2.xpose.msra.mxu0 0.0
  %745 = vmatprep.subr.mxu0 0.0
  %746 = vmatpush2.xpose.msra.mxu0 0.0
  %747 = vmatprep.subr.mxu0 0.0
  %748 = vmatpush2.xpose.msra.mxu0 0.0
  %749 = vmatprep.subr.mxu0 0.0
  %750 = vmatpush2.xpose.msra.mxu0 0.0
  %751 = vmatprep.subr.mxu0 0.0
  %752 = vmatpush2.xpose.msra.mxu0 0.0
  %753 = vmatprep.subr.mxu0 0.0
  %754 = vmatpush2.xpose.msra.mxu0 0.0
  %755 = vmatprep.subr.mxu0 0.0
  %756 = vmatpush2.xpose.msra.mxu0 0.0
  %757 = vmatprep.subr.mxu0 0.0
  %758 = vmatpush2.xpose.msra.mxu0 0.0
  %759 = vmatprep.subr.mxu0 0.0
  %760 = vmatpush2.xpose.msra.mxu0 0.0
  %761 = vmatprep.subr.mxu0 0.0
  %762 = vmatpush2.xpose.msra.mxu0 0.0
  %763 = vmatprep.subr.mxu0 0.0
  %764 = vmatpush2.xpose.msra.mxu0 0.0
  %765 = vmatprep.subr.mxu0 0.0
  %766 = vmatpush2.xpose.msra.mxu0 0.0
  %767 = vmatprep.mubr.f32.mxu0 0.0
  %768 = vmatmul.mubr.f32.gmra.mxu0 %v430
  %v769 = vpop.f32.mrf.mxu0
  %v770 = vadd.f32 0.0, %v769
  %v771 = vpop.f32.mrf.mxu0
  %772 = vmatprep.mubr.f32.mxu0 0.0
  %773 = vmatmul.mubr.f32.gmra.mxu0 %v436
  %v774 = vpop.f32.mrf.mxu0
  %v775 = vadd.f32 0.0, %v774
  %v776 = vpop.f32.mrf.mxu0
  %777 = vdwg.mxu0
  %v778 = vmul.f32 %v770, 0.25
  %v779 = vmul.f32 %v775, 0.25
  %v780 = vadd.f32 %v778, %v173
  %v781 = vadd.f32 %v779, %v174
  %v782 = vsel %vm594, %v780, -inf
  %783 = vmax.xlane.f32.xlu0 %v782
  %v784 = vpop.xlane.xlu0 %783
  %v785 = vsel %vm598, %v781, -inf
  %786 = vmax.xlane.f32.xlu0 %v785
  %v787 = vpop.xlane.xlu0 %786
  %v788 = vsub.f32 %v780, %v784
  %v789 = vsub.f32 %v781, %v787
  %v790 = vmul.f32 %v788, 1.442695
  %v791 = vpow.pop %v790
  %v792 = vmul.f32 %v789, 1.442695
  %v793 = vpow.pop %v792
  %v794 = vsel %vm594, %v791, 0.0
  %795 = vadd.xlane.f32.xlu0 %v794
  %v796 = vpop.xlane.xlu0 %795
  %v797 = vsel %vm598, %v793, 0.0
  %798 = vadd.xlane.f32.xlu0 %v797
  %v799 = vpop.xlane.xlu0 %798
  %v800 = vrcp.pop %v796
  %v801 = vrcp.pop %v799
  %v802 = vmul.f32 %v791, %v800
  %v803 = vmul.f32 %v793, %v801
  %v805 = vsel %vm594, %v802, 0
  %v808 = vsel %vm594, %v803, 0
  %v811 = vsel %vm624, %v513, 0
  %813 = vmatprep.subr.mxu0 0.0
  %814 = vmatpush1.msra.mxu0 0.0
  %815 = vmatprep.subr.mxu0 0.0
  %816 = vmatpush1.msra.mxu0 0.0
  %817 = vmatprep.subr.mxu0 0.0
  %818 = vmatpush1.msra.mxu0 0.0
  %819 = vmatprep.subr.mxu0 0.0
  %820 = vmatpush1.msra.mxu0 0.0
  %821 = vmatprep.subr.mxu0 0.0
  %822 = vmatpush1.msra.mxu0 0.0
  %823 = vmatprep.subr.mxu0 0.0
  %824 = vmatpush1.msra.mxu0 0.0
  %825 = vmatprep.subr.mxu0 0.0
  %826 = vmatpush1.msra.mxu0 0.0
  %827 = vmatprep.subr.mxu0 0.0
  %828 = vmatpush1.msra.mxu0 0.0
  %829 = vmatprep.subr.mxu0 0.0
  %830 = vmatpush1.msra.mxu0 0.0
  %831 = vmatprep.subr.mxu0 0.0
  %832 = vmatpush1.msra.mxu0 0.0
  %833 = vmatprep.subr.mxu0 0.0
  %834 = vmatpush1.msra.mxu0 0.0
  %835 = vmatprep.subr.mxu0 0.0
  %836 = vmatpush1.msra.mxu0 0.0
  %837 = vmatprep.subr.mxu0 0.0
  %838 = vmatpush1.msra.mxu0 0.0
  %839 = vmatprep.subr.mxu0 0.0
  %840 = vmatpush1.msra.mxu0 0.0
  %841 = vmatprep.subr.mxu0 0.0
  %842 = vmatpush1.msra.mxu0 %v811
  %843 = vmatprep.subr.mxu0 0.0
  %844 = vmatpush1.msra.mxu0 %v507
  %845 = vmatprep.subr.mxu0 0.0
  %846 = vmatpush2.msra.mxu0 0.0
  %847 = vmatprep.subr.mxu0 0.0
  %848 = vmatpush2.msra.mxu0 0.0
  %849 = vmatprep.subr.mxu0 0.0
  %850 = vmatpush2.msra.mxu0 0.0
  %851 = vmatprep.subr.mxu0 0.0
  %852 = vmatpush2.msra.mxu0 0.0
  %853 = vmatprep.subr.mxu0 0.0
  %854 = vmatpush2.msra.mxu0 0.0
  %855 = vmatprep.subr.mxu0 0.0
  %856 = vmatpush2.msra.mxu0 0.0
  %857 = vmatprep.subr.mxu0 0.0
  %858 = vmatpush2.msra.mxu0 0.0
  %859 = vmatprep.subr.mxu0 0.0
  %860 = vmatpush2.msra.mxu0 0.0
  %861 = vmatprep.subr.mxu0 0.0
  %862 = vmatpush2.msra.mxu0 0.0
  %863 = vmatprep.subr.mxu0 0.0
  %864 = vmatpush2.msra.mxu0 0.0
  %865 = vmatprep.subr.mxu0 0.0
  %866 = vmatpush2.msra.mxu0 0.0
  %867 = vmatprep.subr.mxu0 0.0
  %868 = vmatpush2.msra.mxu0 0.0
  %869 = vmatprep.subr.mxu0 0.0
  %870 = vmatpush2.msra.mxu0 0.0
  %871 = vmatprep.subr.mxu0 0.0
  %872 = vmatpush2.msra.mxu0 0.0
  %873 = vmatprep.subr.mxu0 0.0
  %874 = vmatpush2.msra.mxu0 0.0
  %875 = vmatprep.subr.mxu0 0.0
  %876 = vmatpush2.msra.mxu0 0.0
  %877 = vmatprep.mubr.f32.mxu0 0.0
  %878 = vmatmul.mubr.f32.gmra.mxu0 %v805
  %v879 = vpop.f32.mrf.mxu0
  %v880 = vadd.f32 0.0, %v879
  %v881 = vpop.f32.mrf.mxu0
  %882 = vmatprep.mubr.f32.mxu0 0.0
  %883 = vmatmul.mubr.f32.gmra.mxu0 %v808
  %v884 = vpop.f32.mrf.mxu0
  %v885 = vadd.f32 0.0, %v884
  %v886 = vpop.f32.mrf.mxu0
  %887 = vdwg.mxu0
  %v888 = vld [vmem:[%s7] sm:$0xff]
  %v889 = vld [vmem:[%s7 + $0x8] sm:$0xff]
  %v890 = vld [vmem:[%s7 + $0x10] sm:$0xff]
  %v891 = vld [vmem:[%s7 + $0x18] sm:$0xff]
  %v892 = vld [vmem:[%s7 + $0x20] sm:$0xff]
  %v893 = vld [vmem:[%s7 + $0x28] sm:$0xff]
  %v894 = vld [vmem:[%s7 + $0x30] sm:$0xff]
  %v895 = vld [vmem:[%s7 + $0x38] sm:$0xff]
  %v896 = vld [vmem:[%s7 + $0x40] sm:$0xff]
  %v897 = vld [vmem:[%s7 + $0x48] sm:$0xff]
  %v898 = vld [vmem:[%s7 + $0x50] sm:$0xff]
  %v899 = vld [vmem:[%s7 + $0x58] sm:$0xff]
  %v900 = vld [vmem:[%s7 + $0x60] sm:$0xff]
  %v901 = vld [vmem:[%s7 + $0x68] sm:$0xff]
  %v902 = vld [vmem:[%s7 + $0x70] sm:$0xff]
  %v903 = vld [vmem:[%s7 + $0x78] sm:$0xff]
  %v904 = vld [vmem:[%s7 + $0x80] sm:$0xff]
  %v905 = vld [vmem:[%s7 + $0x88] sm:$0xff]
  %v906 = vld [vmem:[%s7 + $0x90] sm:$0xff]
  %v907 = vld [vmem:[%s7 + $0x98] sm:$0xff]
  %v908 = vld [vmem:[%s7 + $0xa0] sm:$0xff]
  %v909 = vld [vmem:[%s7 + $0xa8] sm:$0xff]
  %v910 = vld [vmem:[%s7 + $0xb0] sm:$0xff]
  %v911 = vld [vmem:[%s7 + $0xb8] sm:$0xff]
  %v912 = vld [vmem:[%s7 + $0xc0] sm:$0xff]
  %v913 = vld [vmem:[%s7 + $0xc8] sm:$0xff]
  %v914 = vld [vmem:[%s7 + $0xd0] sm:$0xff]
  %v915 = vld [vmem:[%s7 + $0xd8] sm:$0xff]
  %v916 = vld [vmem:[%s7 + $0xe0] sm:$0xff]
  %v917 = vld [vmem:[%s7 + $0xe8] sm:$0xff]
  %v918 = vld [vmem:[%s7 + $0xf0] sm:$0xff]
  %v919 = vld [vmem:[%s7 + $0xf8] sm:$0xff]
  %920 = vmatprep.subr.mxu0 0.0
  %921 = vmatpush1.msra.mxu0 %v903
  %922 = vmatprep.subr.mxu0 0.0
  %923 = vmatpush1.msra.mxu0 %v902
  %924 = vmatprep.subr.mxu0 0.0
  %925 = vmatpush1.msra.mxu0 %v901
  %926 = vmatprep.subr.mxu0 0.0
  %927 = vmatpush1.msra.mxu0 %v900
  %928 = vmatprep.subr.mxu0 0.0
  %929 = vmatpush1.msra.mxu0 %v899
  %930 = vmatprep.subr.mxu0 0.0
  %931 = vmatpush1.msra.mxu0 %v898
  %932 = vmatprep.subr.mxu0 0.0
  %933 = vmatpush1.msra.mxu0 %v897
  %934 = vmatprep.subr.mxu0 0.0
  %935 = vmatpush1.msra.mxu0 %v896
  %936 = vmatprep.subr.mxu0 0.0
  %937 = vmatpush1.msra.mxu0 %v895
  %938 = vmatprep.subr.mxu0 0.0
  %939 = vmatpush1.msra.mxu0 %v894
  %940 = vmatprep.subr.mxu0 0.0
  %941 = vmatpush1.msra.mxu0 %v893
  %942 = vmatprep.subr.mxu0 0.0
  %943 = vmatpush1.msra.mxu0 %v892
  %944 = vmatprep.subr.mxu0 0.0
  %945 = vmatpush1.msra.mxu0 %v891
  %946 = vmatprep.subr.mxu0 0.0
  %947 = vmatpush1.msra.mxu0 %v890
  %948 = vmatprep.subr.mxu0 0.0
  %949 = vmatpush1.msra.mxu0 %v889
  %950 = vmatprep.subr.mxu0 0.0
  %951 = vmatpush1.msra.mxu0 %v888
  %952 = vmatprep.subr.mxu0 0.0
  %953 = vmatpush2.msra.mxu0 %v919
  %954 = vmatprep.subr.mxu0 0.0
  %955 = vmatpush2.msra.mxu0 %v918
  %956 = vmatprep.subr.mxu0 0.0
  %957 = vmatpush2.msra.mxu0 %v917
  %958 = vmatprep.subr.mxu0 0.0
  %959 = vmatpush2.msra.mxu0 %v916
  %960 = vmatprep.subr.mxu0 0.0
  %961 = vmatpush2.msra.mxu0 %v915
  %962 = vmatprep.subr.mxu0 0.0
  %963 = vmatpush2.msra.mxu0 %v914
  %964 = vmatprep.subr.mxu0 0.0
  %965 = vmatpush2.msra.mxu0 %v913
  %966 = vmatprep.subr.mxu0 0.0
  %967 = vmatpush2.msra.mxu0 %v912
  %968 = vmatprep.subr.mxu0 0.0
  %969 = vmatpush2.msra.mxu0 %v911
  %970 = vmatprep.subr.mxu0 0.0
  %971 = vmatpush2.msra.mxu0 %v910
  %972 = vmatprep.subr.mxu0 0.0
  %973 = vmatpush2.msra.mxu0 %v909
  %974 = vmatprep.subr.mxu0 0.0
  %975 = vmatpush2.msra.mxu0 %v908
  %976 = vmatprep.subr.mxu0 0.0
  %977 = vmatpush2.msra.mxu0 %v907
  %978 = vmatprep.subr.mxu0 0.0
  %979 = vmatpush2.msra.mxu0 %v906
  %980 = vmatprep.subr.mxu0 0.0
  %981 = vmatpush2.msra.mxu0 %v905
  %982 = vmatprep.subr.mxu0 0.0
  %983 = vmatpush2.msra.mxu0 %v904
  %984 = vmatprep.mubr.f32.mxu0 %v880
  %985 = vmatmul.mubr.f32.gmra.mxu0 %v695
  %v986 = vpop.f32.mrf.mxu0
  %v987 = vadd.f32 0.0, %v986
  %v988 = vpop.f32.mrf.mxu0
  %989 = vmatprep.mubr.f32.mxu0 %v885
  %990 = vmatmul.mubr.f32.gmra.mxu0 %v700
  %v991 = vpop.f32.mrf.mxu0
  %v992 = vadd.f32 0.0, %v991
  %v993 = vpop.f32.mrf.mxu0
  %994 = vdwg.mxu0
  %v995 = vadd.f32 %v165, %v987
  %v996 = vadd.f32 %v170, %v992
  %v997 = vld [vmem:[%s8] sm:$0x1]
  %v999 = vlaneseq
  %v1000 = vshrl.u32 %v999, 7
  %v1001 = vsub.s32 0, %v1000
  %v1002 = vrot.slane %v997, %v1001
  %v1004 = vadd.f32 %v995, %v1002
  %v1005 = vadd.f32 %v996, %v1002
  %v1006 = vld [vmem:[%s9] sm:$0x1]
  %v1007 = vld [vmem:[%s10] sm:$0x1]
  %v1008 = vsel %vm177, %v1004, 0.0
  %1009 = vadd.xlane.f32.xlu0 %v1008
  %v1010 = vpop.xlane.xlu0 %1009
  %v1011 = vsel %vm181, %v1005, 0.0
  %1012 = vadd.xlane.f32.xlu0 %v1011
  %v1013 = vpop.xlane.xlu0 %1012
  %v1014 = vmul.f32 %v1010, %v185
  %v1015 = vmul.f32 %v1013, %v185
  %v1016 = vsub.f32 %v1004, %v1014
  %v1017 = vsub.f32 %v1005, %v1015
  %v1018 = vmul.f32 %v1016, %v1016
  %v1019 = vmul.f32 %v1017, %v1017
  %v1020 = vsel %vm177, %v1018, 0.0
  %1021 = vadd.xlane.f32.xlu0 %v1020
  %v1022 = vpop.xlane.xlu0 %1021
  %v1023 = vsel %vm181, %v1019, 0.0
  %1024 = vadd.xlane.f32.xlu0 %v1023
  %v1025 = vpop.xlane.xlu0 %1024
  %v1026 = vmul.f32 %v1022, %v185
  %v1027 = vmul.f32 %v1025, %v185
  %v1028 = vadd.f32 %v1026, 1e-12
  %v1029 = vadd.f32 %v1027, 1e-12
  %v1030 = vrsqrt.pop %v1028
  %v1031 = vrsqrt.pop %v1029
  %v1032 = vmul.f32 %v1016, %v1030
  %v1033 = vmul.f32 %v1017, %v1031
  %v1035 = vlaneseq
  %v1036 = vshrl.u32 %v1035, 7
  %v1037 = vsub.s32 0, %v1036
  %v1038 = vrot.slane %v1006, %v1037
  %v1040 = vmul.f32 %v1032, %v1038
  %v1041 = vmul.f32 %v1033, %v1038
  %v1043 = vlaneseq
  %v1044 = vshrl.u32 %v1043, 7
  %v1045 = vsub.s32 0, %v1044
  %v1046 = vrot.slane %v1007, %v1045
  %v1048 = vadd.f32 %v1040, %v1046
  %v1049 = vadd.f32 %v1041, %v1046
  %v1050 = vld [vmem:[%s11] sm:$0xff]
  %v1051 = vld [vmem:[%s11 + $0x8] sm:$0xff]
  %v1052 = vld [vmem:[%s11 + $0x10] sm:$0xff]
  %v1053 = vld [vmem:[%s11 + $0x18] sm:$0xff]
  %v1054 = vld [vmem:[%s12] sm:$0x1]
  %v1056 = vlaneseq
  %v1057 = vshrl.u32 %v1056, 7
  %v1058 = vsub.s32 0, %v1057
  %v1059 = vrot.slane %v1054, %v1058
  %v1062 = vsel %vm177, %v1048, 0
  %v1065 = vsel %vm177, %v1049, 0
  %1067 = vmatprep.subr.mxu0 0.0
  %1068 = vmatpush1.msra.mxu0 0.0
  %1069 = vmatprep.subr.mxu0 0.0
  %1070 = vmatpush1.msra.mxu0 0.0
  %1071 = vmatprep.subr.mxu0 0.0
  %1072 = vmatpush1.msra.mxu0 0.0
  %1073 = vmatprep.subr.mxu0 0.0
  %1074 = vmatpush1.msra.mxu0 0.0
  %1075 = vmatprep.subr.mxu0 0.0
  %1076 = vmatpush1.msra.mxu0 0.0
  %1077 = vmatprep.subr.mxu0 0.0
  %1078 = vmatpush1.msra.mxu0 0.0
  %1079 = vmatprep.subr.mxu0 0.0
  %1080 = vmatpush1.msra.mxu0 0.0
  %1081 = vmatprep.subr.mxu0 0.0
  %1082 = vmatpush1.msra.mxu0 0.0
  %1083 = vmatprep.subr.mxu0 0.0
  %1084 = vmatpush1.msra.mxu0 0.0
  %1085 = vmatprep.subr.mxu0 0.0
  %1086 = vmatpush1.msra.mxu0 0.0
  %1087 = vmatprep.subr.mxu0 0.0
  %1088 = vmatpush1.msra.mxu0 0.0
  %1089 = vmatprep.subr.mxu0 0.0
  %1090 = vmatpush1.msra.mxu0 0.0
  %1091 = vmatprep.subr.mxu0 0.0
  %1092 = vmatpush1.msra.mxu0 %v1053
  %1093 = vmatprep.subr.mxu0 0.0
  %1094 = vmatpush1.msra.mxu0 %v1052
  %1095 = vmatprep.subr.mxu0 0.0
  %1096 = vmatpush1.msra.mxu0 %v1051
  %1097 = vmatprep.subr.mxu0 0.0
  %1098 = vmatpush1.msra.mxu0 %v1050
  %1099 = vmatprep.subr.mxu0 0.0
  %1100 = vmatpush2.msra.mxu0 0.0
  %1101 = vmatprep.subr.mxu0 0.0
  %1102 = vmatpush2.msra.mxu0 0.0
  %1103 = vmatprep.subr.mxu0 0.0
  %1104 = vmatpush2.msra.mxu0 0.0
  %1105 = vmatprep.subr.mxu0 0.0
  %1106 = vmatpush2.msra.mxu0 0.0
  %1107 = vmatprep.subr.mxu0 0.0
  %1108 = vmatpush2.msra.mxu0 0.0
  %1109 = vmatprep.subr.mxu0 0.0
  %1110 = vmatpush2.msra.mxu0 0.0
  %1111 = vmatprep.subr.mxu0 0.0
  %1112 = vmatpush2.msra.mxu0 0.0
  %1113 = vmatprep.subr.mxu0 0.0
  %1114 = vmatpush2.msra.mxu0 0.0
  %1115 = vmatprep.subr.mxu0 0.0
  %1116 = vmatpush2.msra.mxu0 0.0
  %1117 = vmatprep.subr.mxu0 0.0
  %1118 = vmatpush2.msra.mxu0 0.0
  %1119 = vmatprep.subr.mxu0 0.0
  %1120 = vmatpush2.msra.mxu0 0.0
  %1121 = vmatprep.subr.mxu0 0.0
  %1122 = vmatpush2.msra.mxu0 0.0
  %1123 = vmatprep.subr.mxu0 0.0
  %1124 = vmatpush2.msra.mxu0 0.0
  %1125 = vmatprep.subr.mxu0 0.0
  %1126 = vmatpush2.msra.mxu0 0.0
  %1127 = vmatprep.subr.mxu0 0.0
  %1128 = vmatpush2.msra.mxu0 0.0
  %1129 = vmatprep.subr.mxu0 0.0
  %1130 = vmatpush2.msra.mxu0 0.0
  %1131 = vmatprep.mubr.f32.mxu0 0.0
  %1132 = vmatmul.mubr.f32.gmra.mxu0 %v1062
  %v1133 = vpop.f32.mrf.mxu0
  %v1134 = vadd.f32 %v1059, %v1133
  %v1135 = vpop.f32.mrf.mxu0
  %1136 = vmatprep.mubr.f32.mxu0 0.0
  %1137 = vmatmul.mubr.f32.gmra.mxu0 %v1065
  %v1138 = vpop.f32.mrf.mxu0
  %v1139 = vadd.f32 %v1059, %v1138
  %v1140 = vpop.f32.mrf.mxu0
  %1141 = vdwg.mxu0
  %v1142 = vmul.f32 %v1134, 0.5
  %v1143 = vmul.f32 %v1139, 0.5
  %v1144 = vmul.f32 %v1134, 0.70710677
  %v1145 = vmul.f32 %v1139, 0.70710677
  %v1146 = vand.u32 2147483647, %v1144
  %v1147 = vand.u32 2147483647, %v1145
  %v1148 = vmul.f32 %v1146, 0.3275911
  %v1149 = vmul.f32 %v1147, 0.3275911
  %v1150 = vadd.f32 %v1148, 1.0
  %v1151 = vadd.f32 %v1149, 1.0
  %v1152 = vrcp.pop %v1150
  %v1153 = vmul.f32 1.0, %v1152
  %v1154 = vrcp.pop %v1151
  %v1155 = vmul.f32 1.0, %v1154
  %v1156 = vmul.f32 %v1153, 1.0614054
  %v1157 = vmul.f32 %v1155, 1.0614054
  %v1158 = vadd.f32 %v1156, -1.4531521
  %v1159 = vadd.f32 %v1157, -1.4531521
  %v1160 = vmul.f32 %v1158, %v1153
  %v1161 = vmul.f32 %v1159, %v1155
  %v1162 = vadd.f32 %v1160, 1.4214138
  %v1163 = vadd.f32 %v1161, 1.4214138
  %v1164 = vmul.f32 %v1162, %v1153
  %v1165 = vmul.f32 %v1163, %v1155
  %v1166 = vadd.f32 %v1164, -0.28449672
  %v1167 = vadd.f32 %v1165, -0.28449672
  %v1168 = vmul.f32 %v1166, %v1153
  %v1169 = vmul.f32 %v1167, %v1155
  %v1170 = vadd.f32 %v1168, 0.2548296
  %v1171 = vadd.f32 %v1169, 0.2548296
  %v1172 = vmul.f32 %v1170, %v1153
  %v1173 = vmul.f32 %v1171, %v1155
  %v1174 = vsub.f32 0.0, %v1146
  %v1175 = vsub.f32 0.0, %v1147
  %v1176 = vmul.f32 %v1174, %v1146
  %v1177 = vmul.f32 %v1175, %v1147
  %v1178 = vmul.f32 %v1176, 1.442695
  %v1179 = vpow.pop %v1178
  %v1180 = vmul.f32 %v1177, 1.442695
  %v1181 = vpow.pop %v1180
  %v1182 = vmul.f32 %v1172, %v1179
  %v1183 = vmul.f32 %v1173, %v1181
  %v1184 = vsub.f32 1.0, %v1182
  %v1185 = vsub.f32 1.0, %v1183
  %vm1186 = vcmp.ge.f32.partialorder %v1144, 0.0
  %vm1187 = vcmp.ge.f32.partialorder %v1145, 0.0
  %v1188 = vsub.f32 0.0, %v1184
  %v1189 = vsub.f32 0.0, %v1185
  %v1190 = vsel %vm1186, %v1184, %v1188
  %v1191 = vsel %vm1187, %v1185, %v1189
  %v1192 = vadd.f32 %v1190, 1.0
  %v1193 = vadd.f32 %v1191, 1.0
  %v1194 = vmul.f32 %v1142, %v1192
  %v1195 = vmul.f32 %v1143, %v1193
  %v1196 = vld [vmem:[%s13] sm:$0xff]
  %v1197 = vld [vmem:[%s13 + $0x8] sm:$0xff]
  %v1198 = vld [vmem:[%s13 + $0x10] sm:$0xff]
  %v1199 = vld [vmem:[%s13 + $0x18] sm:$0xff]
  %v1200 = vld [vmem:[%s13 + $0x20] sm:$0xff]
  %v1201 = vld [vmem:[%s13 + $0x28] sm:$0xff]
  %v1202 = vld [vmem:[%s13 + $0x30] sm:$0xff]
  %v1203 = vld [vmem:[%s13 + $0x38] sm:$0xff]
  %vm1204 = vcmask 523264
  %v1206 = vsel %vm1204, %v1194, 0
  %v1209 = vsel %vm1204, %v1195, 0
  %1211 = vmatprep.subr.mxu0 0.0
  %1212 = vmatpush1.msra.mxu0 0.0
  %1213 = vmatprep.subr.mxu0 0.0
  %1214 = vmatpush1.msra.mxu0 0.0
  %1215 = vmatprep.subr.mxu0 0.0
  %1216 = vmatpush1.msra.mxu0 0.0
  %1217 = vmatprep.subr.mxu0 0.0
  %1218 = vmatpush1.msra.mxu0 0.0
  %1219 = vmatprep.subr.mxu0 0.0
  %1220 = vmatpush1.msra.mxu0 0.0
  %1221 = vmatprep.subr.mxu0 0.0
  %1222 = vmatpush1.msra.mxu0 0.0
  %1223 = vmatprep.subr.mxu0 0.0
  %1224 = vmatpush1.msra.mxu0 0.0
  %1225 = vmatprep.subr.mxu0 0.0
  %1226 = vmatpush1.msra.mxu0 0.0
  %1227 = vmatprep.subr.mxu0 0.0
  %1228 = vmatpush1.msra.mxu0 %v1203
  %1229 = vmatprep.subr.mxu0 0.0
  %1230 = vmatpush1.msra.mxu0 %v1202
  %1231 = vmatprep.subr.mxu0 0.0
  %1232 = vmatpush1.msra.mxu0 %v1201
  %1233 = vmatprep.subr.mxu0 0.0
  %1234 = vmatpush1.msra.mxu0 %v1200
  %1235 = vmatprep.subr.mxu0 0.0
  %1236 = vmatpush1.msra.mxu0 %v1199
  %1237 = vmatprep.subr.mxu0 0.0
  %1238 = vmatpush1.msra.mxu0 %v1198
  %1239 = vmatprep.subr.mxu0 0.0
  %1240 = vmatpush1.msra.mxu0 %v1197
  %1241 = vmatprep.subr.mxu0 0.0
  %1242 = vmatpush1.msra.mxu0 %v1196
  %1243 = vmatprep.subr.mxu0 0.0
  %1244 = vmatpush2.msra.mxu0 0.0
  %1245 = vmatprep.subr.mxu0 0.0
  %1246 = vmatpush2.msra.mxu0 0.0
  %1247 = vmatprep.subr.mxu0 0.0
  %1248 = vmatpush2.msra.mxu0 0.0
  %1249 = vmatprep.subr.mxu0 0.0
  %1250 = vmatpush2.msra.mxu0 0.0
  %1251 = vmatprep.subr.mxu0 0.0
  %1252 = vmatpush2.msra.mxu0 0.0
  %1253 = vmatprep.subr.mxu0 0.0
  %1254 = vmatpush2.msra.mxu0 0.0
  %1255 = vmatprep.subr.mxu0 0.0
  %1256 = vmatpush2.msra.mxu0 0.0
  %1257 = vmatprep.subr.mxu0 0.0
  %1258 = vmatpush2.msra.mxu0 0.0
  %1259 = vmatprep.subr.mxu0 0.0
  %1260 = vmatpush2.msra.mxu0 0.0
  %1261 = vmatprep.subr.mxu0 0.0
  %1262 = vmatpush2.msra.mxu0 0.0
  %1263 = vmatprep.subr.mxu0 0.0
  %1264 = vmatpush2.msra.mxu0 0.0
  %1265 = vmatprep.subr.mxu0 0.0
  %1266 = vmatpush2.msra.mxu0 0.0
  %1267 = vmatprep.subr.mxu0 0.0
  %1268 = vmatpush2.msra.mxu0 0.0
  %1269 = vmatprep.subr.mxu0 0.0
  %1270 = vmatpush2.msra.mxu0 0.0
  %1271 = vmatprep.subr.mxu0 0.0
  %1272 = vmatpush2.msra.mxu0 0.0
  %1273 = vmatprep.subr.mxu0 0.0
  %1274 = vmatpush2.msra.mxu0 0.0
  %1275 = vmatprep.mubr.f32.mxu0 0.0
  %1276 = vmatmul.mubr.f32.gmra.mxu0 %v1206
  %v1277 = vpop.f32.mrf.mxu0
  %v1278 = vadd.f32 0.0, %v1277
  %v1279 = vpop.f32.mrf.mxu0
  %1280 = vmatprep.mubr.f32.mxu0 0.0
  %1281 = vmatmul.mubr.f32.gmra.mxu0 %v1209
  %v1282 = vpop.f32.mrf.mxu0
  %v1283 = vadd.f32 0.0, %v1282
  %v1284 = vpop.f32.mrf.mxu0
  %1285 = vdwg.mxu0
  %v1286 = vadd.f32 %v1004, %v1278
  %v1287 = vadd.f32 %v1005, %v1283
  %v1288 = vld [vmem:[%s14] sm:$0x1]
  %v1290 = vlaneseq
  %v1291 = vshrl.u32 %v1290, 7
  %v1292 = vsub.s32 0, %v1291
  %v1293 = vrot.slane %v1288, %v1292
  %v1295 = vadd.f32 %v1286, %v1293
  %v1296 = vadd.f32 %v1287, %v1293
  %s1297 = scalar_lea.vmem %s3, 1
  %v1298 = vld [vmem:[%s1297] sm:$0x1]
  %s1299 = scalar_lea.vmem %s4, 1
  %v1300 = vld [vmem:[%s1299] sm:$0x1]
  %v1301 = vsel %vm177, %v1295, 0.0
  %1302 = vadd.xlane.f32.xlu0 %v1301
  %v1303 = vpop.xlane.xlu0 %1302
  %v1304 = vsel %vm181, %v1296, 0.0
  %1305 = vadd.xlane.f32.xlu0 %v1304
  %v1306 = vpop.xlane.xlu0 %1305
  %v1307 = vmul.f32 %v1303, %v185
  %v1308 = vmul.f32 %v1306, %v185
  %v1309 = vsub.f32 %v1295, %v1307
  %v1310 = vsub.f32 %v1296, %v1308
  %v1311 = vmul.f32 %v1309, %v1309
  %v1312 = vmul.f32 %v1310, %v1310
  %v1313 = vsel %vm177, %v1311, 0.0
  %1314 = vadd.xlane.f32.xlu0 %v1313
  %v1315 = vpop.xlane.xlu0 %1314
  %v1316 = vsel %vm181, %v1312, 0.0
  %1317 = vadd.xlane.f32.xlu0 %v1316
  %v1318 = vpop.xlane.xlu0 %1317
  %v1319 = vmul.f32 %v1315, %v185
  %v1320 = vmul.f32 %v1318, %v185
  %v1321 = vadd.f32 %v1319, 1e-12
  %v1322 = vadd.f32 %v1320, 1e-12
  %v1323 = vrsqrt.pop %v1321
  %v1324 = vrsqrt.pop %v1322
  %v1325 = vmul.f32 %v1309, %v1323
  %v1326 = vmul.f32 %v1310, %v1324
  %v1328 = vlaneseq
  %v1329 = vshrl.u32 %v1328, 7
  %v1330 = vsub.s32 0, %v1329
  %v1331 = vrot.slane %v1298, %v1330
  %v1333 = vmul.f32 %v1325, %v1331
  %v1334 = vmul.f32 %v1326, %v1331
  %v1336 = vlaneseq
  %v1337 = vshrl.u32 %v1336, 7
  %v1338 = vsub.s32 0, %v1337
  %v1339 = vrot.slane %v1300, %v1338
  %v1341 = vadd.f32 %v1333, %v1339
  %v1342 = vadd.f32 %v1334, %v1339
  %s1343 = scalar_lea.vmem %s5, 192
  %v1344 = vld [vmem:[%s1343] sm:$0xff]
  %v1345 = vld [vmem:[%s1343 + $0x8] sm:$0xff]
  %v1346 = vld [vmem:[%s1343 + $0x10] sm:$0xff]
  %v1347 = vld [vmem:[%s1343 + $0x18] sm:$0xff]
  %v1348 = vld [vmem:[%s1343 + $0x20] sm:$0xff]
  %v1349 = vld [vmem:[%s1343 + $0x28] sm:$0xff]
  %v1350 = vld [vmem:[%s1343 + $0x30] sm:$0xff]
  %v1351 = vld [vmem:[%s1343 + $0x38] sm:$0xff]
  %v1352 = vld [vmem:[%s1343 + $0x40] sm:$0xff]
  %v1353 = vld [vmem:[%s1343 + $0x48] sm:$0xff]
  %v1354 = vld [vmem:[%s1343 + $0x50] sm:$0xff]
  %v1355 = vld [vmem:[%s1343 + $0x58] sm:$0xff]
  %v1356 = vld [vmem:[%s1343 + $0x60] sm:$0xff]
  %v1357 = vld [vmem:[%s1343 + $0x68] sm:$0xff]
  %v1358 = vld [vmem:[%s1343 + $0x70] sm:$0xff]
  %v1359 = vld [vmem:[%s1343 + $0x78] sm:$0xff]
  %v1360 = vld [vmem:[%s1343 + $0x80] sm:$0xff]
  %v1361 = vld [vmem:[%s1343 + $0x88] sm:$0xff]
  %v1362 = vld [vmem:[%s1343 + $0x90] sm:$0xff]
  %v1363 = vld [vmem:[%s1343 + $0x98] sm:$0xff]
  %v1364 = vld [vmem:[%s1343 + $0xa0] sm:$0xff]
  %v1365 = vld [vmem:[%s1343 + $0xa8] sm:$0xff]
  %v1366 = vld [vmem:[%s1343 + $0xb0] sm:$0xff]
  %v1367 = vld [vmem:[%s1343 + $0xb8] sm:$0xff]
  %s1368 = scalar_lea.vmem %s6, 6
  %v1369 = vld [vmem:[%s1368] sm:$0x3f]
  %v1371 = vlaneseq
  %v1372 = vshrl.u32 %v1371, 7
  %v1373 = vsub.s32 0, %v1372
  %v1374 = vrot.slane %v1369, %v1373
  %v1375 = vlaneseq
  %v1376 = vshrl.u32 %v1375, 7
  %v1377 = vsub.s32 1, %v1376
  %v1378 = vrot.slane %v1369, %v1377
  %v1379 = vlaneseq
  %v1380 = vshrl.u32 %v1379, 7
  %v1381 = vsub.s32 2, %v1380
  %v1382 = vrot.slane %v1369, %v1381
  %v1383 = vlaneseq
  %v1384 = vshrl.u32 %v1383, 7
  %v1385 = vsub.s32 3, %v1384
  %v1386 = vrot.slane %v1369, %v1385
  %v1387 = vlaneseq
  %v1388 = vshrl.u32 %v1387, 7
  %v1389 = vsub.s32 4, %v1388
  %v1390 = vrot.slane %v1369, %v1389
  %v1391 = vlaneseq
  %v1392 = vshrl.u32 %v1391, 7
  %v1393 = vsub.s32 5, %v1392
  %v1394 = vrot.slane %v1369, %v1393
  %v1402 = vsel %vm177, %v1341, 0
  %v1405 = vsel %vm177, %v1342, 0
  %1407 = vmatprep.subr.mxu0 0.0
  %1408 = vmatpush1.msra.mxu0 0.0
  %1409 = vmatprep.subr.mxu0 0.0
  %1410 = vmatpush1.msra.mxu0 0.0
  %1411 = vmatprep.subr.mxu0 0.0
  %1412 = vmatpush1.msra.mxu0 0.0
  %1413 = vmatprep.subr.mxu0 0.0
  %1414 = vmatpush1.msra.mxu0 0.0
  %1415 = vmatprep.subr.mxu0 0.0
  %1416 = vmatpush1.msra.mxu0 0.0
  %1417 = vmatprep.subr.mxu0 0.0
  %1418 = vmatpush1.msra.mxu0 0.0
  %1419 = vmatprep.subr.mxu0 0.0
  %1420 = vmatpush1.msra.mxu0 0.0
  %1421 = vmatprep.subr.mxu0 0.0
  %1422 = vmatpush1.msra.mxu0 0.0
  %1423 = vmatprep.subr.mxu0 0.0
  %1424 = vmatpush1.msra.mxu0 0.0
  %1425 = vmatprep.subr.mxu0 0.0
  %1426 = vmatpush1.msra.mxu0 0.0
  %1427 = vmatprep.subr.mxu0 0.0
  %1428 = vmatpush1.msra.mxu0 0.0
  %1429 = vmatprep.subr.mxu0 0.0
  %1430 = vmatpush1.msra.mxu0 0.0
  %1431 = vmatprep.subr.mxu0 %v1363
  %1432 = vmatpush1.msra.mxu0 %v1362
  %1433 = vmatprep.subr.mxu0 %v1357
  %1434 = vmatpush1.msra.mxu0 %v1356
  %1435 = vmatprep.subr.mxu0 %v1351
  %1436 = vmatpush1.msra.mxu0 %v1350
  %1437 = vmatprep.subr.mxu0 %v1345
  %1438 = vmatpush1.msra.mxu0 %v1344
  %1439 = vmatprep.subr.mxu0 0.0
  %1440 = vmatpush2.msra.mxu0 0.0
  %1441 = vmatprep.subr.mxu0 0.0
  %1442 = vmatpush2.msra.mxu0 0.0
  %1443 = vmatprep.subr.mxu0 0.0
  %1444 = vmatpush2.msra.mxu0 0.0
  %1445 = vmatprep.subr.mxu0 0.0
  %1446 = vmatpush2.msra.mxu0 0.0
  %1447 = vmatprep.subr.mxu0 0.0
  %1448 = vmatpush2.msra.mxu0 0.0
  %1449 = vmatprep.subr.mxu0 0.0
  %1450 = vmatpush2.msra.mxu0 0.0
  %1451 = vmatprep.subr.mxu0 0.0
  %1452 = vmatpush2.msra.mxu0 0.0
  %1453 = vmatprep.subr.mxu0 0.0
  %1454 = vmatpush2.msra.mxu0 0.0
  %1455 = vmatprep.subr.mxu0 0.0
  %1456 = vmatpush2.msra.mxu0 0.0
  %1457 = vmatprep.subr.mxu0 0.0
  %1458 = vmatpush2.msra.mxu0 0.0
  %1459 = vmatprep.subr.mxu0 0.0
  %1460 = vmatpush2.msra.mxu0 0.0
  %1461 = vmatprep.subr.mxu0 0.0
  %1462 = vmatpush2.msra.mxu0 0.0
  %1463 = vmatprep.subr.mxu0 0.0
  %1464 = vmatpush2.msra.mxu0 0.0
  %1465 = vmatprep.subr.mxu0 0.0
  %1466 = vmatpush2.msra.mxu0 0.0
  %1467 = vmatprep.subr.mxu0 0.0
  %1468 = vmatpush2.msra.mxu0 0.0
  %1469 = vmatprep.subr.mxu0 0.0
  %1470 = vmatpush2.msra.mxu0 0.0
  %1471 = vmatprep.mubr.f32.mxu0 0.0
  %1472 = vmatmul.mubr.f32.gmra.mxu0 %v1402
  %v1473 = vpop.f32.mrf.mxu0
  %v1474 = vadd.f32 %v1374, %v1473
  %v1475 = vpop.f32.mrf.mxu0
  %v1476 = vadd.f32 %v1378, %v1475
  %1477 = vmatprep.mubr.f32.mxu0 0.0
  %1478 = vmatmul.mubr.f32.gmra.mxu0 %v1405
  %v1479 = vpop.f32.mrf.mxu0
  %v1480 = vadd.f32 %v1374, %v1479
  %v1481 = vpop.f32.mrf.mxu0
  %v1482 = vadd.f32 %v1378, %v1481
  %1483 = vdwg.mxu0
  %1484 = vmatprep.subr.mxu0 0.0
  %1485 = vmatpush1.msra.mxu0 0.0
  %1486 = vmatprep.subr.mxu0 0.0
  %1487 = vmatpush1.msra.mxu0 0.0
  %1488 = vmatprep.subr.mxu0 0.0
  %1489 = vmatpush1.msra.mxu0 0.0
  %1490 = vmatprep.subr.mxu0 0.0
  %1491 = vmatpush1.msra.mxu0 0.0
  %1492 = vmatprep.subr.mxu0 0.0
  %1493 = vmatpush1.msra.mxu0 0.0
  %1494 = vmatprep.subr.mxu0 0.0
  %1495 = vmatpush1.msra.mxu0 0.0
  %1496 = vmatprep.subr.mxu0 0.0
  %1497 = vmatpush1.msra.mxu0 0.0
  %1498 = vmatprep.subr.mxu0 0.0
  %1499 = vmatpush1.msra.mxu0 0.0
  %1500 = vmatprep.subr.mxu0 0.0
  %1501 = vmatpush1.msra.mxu0 0.0
  %1502 = vmatprep.subr.mxu0 0.0
  %1503 = vmatpush1.msra.mxu0 0.0
  %1504 = vmatprep.subr.mxu0 0.0
  %1505 = vmatpush1.msra.mxu0 0.0
  %1506 = vmatprep.subr.mxu0 0.0
  %1507 = vmatpush1.msra.mxu0 0.0
  %1508 = vmatprep.subr.mxu0 %v1365
  %1509 = vmatpush1.msra.mxu0 %v1364
  %1510 = vmatprep.subr.mxu0 %v1359
  %1511 = vmatpush1.msra.mxu0 %v1358
  %1512 = vmatprep.subr.mxu0 %v1353
  %1513 = vmatpush1.msra.mxu0 %v1352
  %1514 = vmatprep.subr.mxu0 %v1347
  %1515 = vmatpush1.msra.mxu0 %v1346
  %1516 = vmatprep.subr.mxu0 0.0
  %1517 = vmatpush2.msra.mxu0 0.0
  %1518 = vmatprep.subr.mxu0 0.0
  %1519 = vmatpush2.msra.mxu0 0.0
  %1520 = vmatprep.subr.mxu0 0.0
  %1521 = vmatpush2.msra.mxu0 0.0
  %1522 = vmatprep.subr.mxu0 0.0
  %1523 = vmatpush2.msra.mxu0 0.0
  %1524 = vmatprep.subr.mxu0 0.0
  %1525 = vmatpush2.msra.mxu0 0.0
  %1526 = vmatprep.subr.mxu0 0.0
  %1527 = vmatpush2.msra.mxu0 0.0
  %1528 = vmatprep.subr.mxu0 0.0
  %1529 = vmatpush2.msra.mxu0 0.0
  %1530 = vmatprep.subr.mxu0 0.0
  %1531 = vmatpush2.msra.mxu0 0.0
  %1532 = vmatprep.subr.mxu0 0.0
  %1533 = vmatpush2.msra.mxu0 0.0
  %1534 = vmatprep.subr.mxu0 0.0
  %1535 = vmatpush2.msra.mxu0 0.0
  %1536 = vmatprep.subr.mxu0 0.0
  %1537 = vmatpush2.msra.mxu0 0.0
  %1538 = vmatprep.subr.mxu0 0.0
  %1539 = vmatpush2.msra.mxu0 0.0
  %1540 = vmatprep.subr.mxu0 0.0
  %1541 = vmatpush2.msra.mxu0 0.0
  %1542 = vmatprep.subr.mxu0 0.0
  %1543 = vmatpush2.msra.mxu0 0.0
  %1544 = vmatprep.subr.mxu0 0.0
  %1545 = vmatpush2.msra.mxu0 0.0
  %1546 = vmatprep.subr.mxu0 0.0
  %1547 = vmatpush2.msra.mxu0 0.0
  %1548 = vmatprep.mubr.f32.mxu0 0.0
  %1549 = vmatmul.mubr.f32.gmra.mxu0 %v1402
  %v1550 = vpop.f32.mrf.mxu0
  %v1551 = vadd.f32 %v1382, %v1550
  %v1552 = vpop.f32.mrf.mxu0
  %v1553 = vadd.f32 %v1386, %v1552
  %1554 = vmatprep.mubr.f32.mxu0 0.0
  %1555 = vmatmul.mubr.f32.gmra.mxu0 %v1405
  %v1556 = vpop.f32.mrf.mxu0
  %v1557 = vadd.f32 %v1382, %v1556
  %v1558 = vpop.f32.mrf.mxu0
  %v1559 = vadd.f32 %v1386, %v1558
  %1560 = vdwg.mxu0
  %1561 = vmatprep.subr.mxu0 0.0
  %1562 = vmatpush1.msra.mxu0 0.0
  %1563 = vmatprep.subr.mxu0 0.0
  %1564 = vmatpush1.msra.mxu0 0.0
  %1565 = vmatprep.subr.mxu0 0.0
  %1566 = vmatpush1.msra.mxu0 0.0
  %1567 = vmatprep.subr.mxu0 0.0
  %1568 = vmatpush1.msra.mxu0 0.0
  %1569 = vmatprep.subr.mxu0 0.0
  %1570 = vmatpush1.msra.mxu0 0.0
  %1571 = vmatprep.subr.mxu0 0.0
  %1572 = vmatpush1.msra.mxu0 0.0
  %1573 = vmatprep.subr.mxu0 0.0
  %1574 = vmatpush1.msra.mxu0 0.0
  %1575 = vmatprep.subr.mxu0 0.0
  %1576 = vmatpush1.msra.mxu0 0.0
  %1577 = vmatprep.subr.mxu0 0.0
  %1578 = vmatpush1.msra.mxu0 0.0
  %1579 = vmatprep.subr.mxu0 0.0
  %1580 = vmatpush1.msra.mxu0 0.0
  %1581 = vmatprep.subr.mxu0 0.0
  %1582 = vmatpush1.msra.mxu0 0.0
  %1583 = vmatprep.subr.mxu0 0.0
  %1584 = vmatpush1.msra.mxu0 0.0
  %1585 = vmatprep.subr.mxu0 %v1367
  %1586 = vmatpush1.msra.mxu0 %v1366
  %1587 = vmatprep.subr.mxu0 %v1361
  %1588 = vmatpush1.msra.mxu0 %v1360
  %1589 = vmatprep.subr.mxu0 %v1355
  %1590 = vmatpush1.msra.mxu0 %v1354
  %1591 = vmatprep.subr.mxu0 %v1349
  %1592 = vmatpush1.msra.mxu0 %v1348
  %1593 = vmatprep.subr.mxu0 0.0
  %1594 = vmatpush2.msra.mxu0 0.0
  %1595 = vmatprep.subr.mxu0 0.0
  %1596 = vmatpush2.msra.mxu0 0.0
  %1597 = vmatprep.subr.mxu0 0.0
  %1598 = vmatpush2.msra.mxu0 0.0
  %1599 = vmatprep.subr.mxu0 0.0
  %1600 = vmatpush2.msra.mxu0 0.0
  %1601 = vmatprep.subr.mxu0 0.0
  %1602 = vmatpush2.msra.mxu0 0.0
  %1603 = vmatprep.subr.mxu0 0.0
  %1604 = vmatpush2.msra.mxu0 0.0
  %1605 = vmatprep.subr.mxu0 0.0
  %1606 = vmatpush2.msra.mxu0 0.0
  %1607 = vmatprep.subr.mxu0 0.0
  %1608 = vmatpush2.msra.mxu0 0.0
  %1609 = vmatprep.subr.mxu0 0.0
  %1610 = vmatpush2.msra.mxu0 0.0
  %1611 = vmatprep.subr.mxu0 0.0
  %1612 = vmatpush2.msra.mxu0 0.0
  %1613 = vmatprep.subr.mxu0 0.0
  %1614 = vmatpush2.msra.mxu0 0.0
  %1615 = vmatprep.subr.mxu0 0.0
  %1616 = vmatpush2.msra.mxu0 0.0
  %1617 = vmatprep.subr.mxu0 0.0
  %1618 = vmatpush2.msra.mxu0 0.0
  %1619 = vmatprep.subr.mxu0 0.0
  %1620 = vmatpush2.msra.mxu0 0.0
  %1621 = vmatprep.subr.mxu0 0.0
  %1622 = vmatpush2.msra.mxu0 0.0
  %1623 = vmatprep.subr.mxu0 0.0
  %1624 = vmatpush2.msra.mxu0 0.0
  %1625 = vmatprep.mubr.f32.mxu0 0.0
  %1626 = vmatmul.mubr.f32.gmra.mxu0 %v1402
  %v1627 = vpop.f32.mrf.mxu0
  %v1628 = vadd.f32 %v1390, %v1627
  %v1629 = vpop.f32.mrf.mxu0
  %v1630 = vadd.f32 %v1394, %v1629
  %1631 = vmatprep.mubr.f32.mxu0 0.0
  %1632 = vmatmul.mubr.f32.gmra.mxu0 %v1405
  %v1633 = vpop.f32.mrf.mxu0
  %v1634 = vadd.f32 %v1390, %v1633
  %v1635 = vpop.f32.mrf.mxu0
  %v1636 = vadd.f32 %v1394, %v1635
  %1637 = vdwg.mxu0
  %1638 = vmatprep.subr.mxu0 0.0
  %1639 = vmatpush1.xpose.msra.mxu0 0.0
  %1640 = vmatprep.subr.mxu0 0.0
  %1641 = vmatpush1.xpose.msra.mxu0 0.0
  %1642 = vmatprep.subr.mxu0 0.0
  %1643 = vmatpush1.xpose.msra.mxu0 0.0
  %1644 = vmatprep.subr.mxu0 0.0
  %1645 = vmatpush1.xpose.msra.mxu0 0.0
  %1646 = vmatprep.subr.mxu0 0.0
  %1647 = vmatpush1.xpose.msra.mxu0 0.0
  %1648 = vmatprep.subr.mxu0 0.0
  %1649 = vmatpush1.xpose.msra.mxu0 0.0
  %1650 = vmatprep.subr.mxu0 0.0
  %1651 = vmatpush1.xpose.msra.mxu0 0.0
  %1652 = vmatprep.subr.mxu0 0.0
  %1653 = vmatpush1.xpose.msra.mxu0 0.0
  %1654 = vmatprep.subr.mxu0 0.0
  %1655 = vmatpush1.xpose.msra.mxu0 0.0
  %1656 = vmatprep.subr.mxu0 0.0
  %1657 = vmatpush1.xpose.msra.mxu0 0.0
  %1658 = vmatprep.subr.mxu0 0.0
  %1659 = vmatpush1.xpose.msra.mxu0 0.0
  %1660 = vmatprep.subr.mxu0 0.0
  %1661 = vmatpush1.xpose.msra.mxu0 0.0
  %1662 = vmatprep.subr.mxu0 0.0
  %1663 = vmatpush1.xpose.msra.mxu0 0.0
  %1664 = vmatprep.subr.mxu0 0.0
  %1665 = vmatpush1.xpose.msra.mxu0 0.0
  %1666 = vmatprep.subr.mxu0 0.0
  %1667 = vmatpush1.xpose.msra.mxu0 %v1482
  %1668 = vmatprep.subr.mxu0 0.0
  %1669 = vmatpush1.xpose.msra.mxu0 %v1476
  %1670 = vmatprep.subr.mxu0 0.0
  %1671 = vmatpush2.xpose.msra.mxu0 0.0
  %1672 = vmatprep.subr.mxu0 0.0
  %1673 = vmatpush2.xpose.msra.mxu0 0.0
  %1674 = vmatprep.subr.mxu0 0.0
  %1675 = vmatpush2.xpose.msra.mxu0 0.0
  %1676 = vmatprep.subr.mxu0 0.0
  %1677 = vmatpush2.xpose.msra.mxu0 0.0
  %1678 = vmatprep.subr.mxu0 0.0
  %1679 = vmatpush2.xpose.msra.mxu0 0.0
  %1680 = vmatprep.subr.mxu0 0.0
  %1681 = vmatpush2.xpose.msra.mxu0 0.0
  %1682 = vmatprep.subr.mxu0 0.0
  %1683 = vmatpush2.xpose.msra.mxu0 0.0
  %1684 = vmatprep.subr.mxu0 0.0
  %1685 = vmatpush2.xpose.msra.mxu0 0.0
  %1686 = vmatprep.subr.mxu0 0.0
  %1687 = vmatpush2.xpose.msra.mxu0 0.0
  %1688 = vmatprep.subr.mxu0 0.0
  %1689 = vmatpush2.xpose.msra.mxu0 0.0
  %1690 = vmatprep.subr.mxu0 0.0
  %1691 = vmatpush2.xpose.msra.mxu0 0.0
  %1692 = vmatprep.subr.mxu0 0.0
  %1693 = vmatpush2.xpose.msra.mxu0 0.0
  %1694 = vmatprep.subr.mxu0 0.0
  %1695 = vmatpush2.xpose.msra.mxu0 0.0
  %1696 = vmatprep.subr.mxu0 0.0
  %1697 = vmatpush2.xpose.msra.mxu0 0.0
  %1698 = vmatprep.subr.mxu0 0.0
  %1699 = vmatpush2.xpose.msra.mxu0 0.0
  %1700 = vmatprep.subr.mxu0 0.0
  %1701 = vmatpush2.xpose.msra.mxu0 0.0
  %1702 = vmatprep.mubr.f32.mxu0 0.0
  %1703 = vmatmul.mubr.f32.gmra.mxu0 %v1474
  %v1704 = vpop.f32.mrf.mxu0
  %v1705 = vadd.f32 0.0, %v1704
  %v1706 = vpop.f32.mrf.mxu0
  %1707 = vmatprep.mubr.f32.mxu0 0.0
  %1708 = vmatmul.mubr.f32.gmra.mxu0 %v1480
  %v1709 = vpop.f32.mrf.mxu0
  %v1710 = vadd.f32 0.0, %v1709
  %v1711 = vpop.f32.mrf.mxu0
  %1712 = vdwg.mxu0
  %v1713 = vmul.f32 %v1705, 0.25
  %v1714 = vmul.f32 %v1710, 0.25
  %v1715 = vadd.f32 %v1713, %v173
  %v1716 = vadd.f32 %v1714, %v174
  %v1717 = vsel %vm594, %v1715, -inf
  %1718 = vmax.xlane.f32.xlu0 %v1717
  %v1719 = vpop.xlane.xlu0 %1718
  %v1720 = vsel %vm598, %v1716, -inf
  %1721 = vmax.xlane.f32.xlu0 %v1720
  %v1722 = vpop.xlane.xlu0 %1721
  %v1723 = vsub.f32 %v1715, %v1719
  %v1724 = vsub.f32 %v1716, %v1722
  %v1725 = vmul.f32 %v1723, 1.442695
  %v1726 = vpow.pop %v1725
  %v1727 = vmul.f32 %v1724, 1.442695
  %v1728 = vpow.pop %v1727
  %v1729 = vsel %vm594, %v1726, 0.0
  %1730 = vadd.xlane.f32.xlu0 %v1729
  %v1731 = vpop.xlane.xlu0 %1730
  %v1732 = vsel %vm598, %v1728, 0.0
  %1733 = vadd.xlane.f32.xlu0 %v1732
  %v1734 = vpop.xlane.xlu0 %1733
  %v1735 = vrcp.pop %v1731
  %v1736 = vrcp.pop %v1734
  %v1737 = vmul.f32 %v1726, %v1735
  %v1738 = vmul.f32 %v1728, %v1736
  %v1740 = vsel %vm594, %v1737, 0
  %v1743 = vsel %vm594, %v1738, 0
  %v1746 = vsel %vm624, %v1557, 0
  %1748 = vmatprep.subr.mxu0 0.0
  %1749 = vmatpush1.msra.mxu0 0.0
  %1750 = vmatprep.subr.mxu0 0.0
  %1751 = vmatpush1.msra.mxu0 0.0
  %1752 = vmatprep.subr.mxu0 0.0
  %1753 = vmatpush1.msra.mxu0 0.0
  %1754 = vmatprep.subr.mxu0 0.0
  %1755 = vmatpush1.msra.mxu0 0.0
  %1756 = vmatprep.subr.mxu0 0.0
  %1757 = vmatpush1.msra.mxu0 0.0
  %1758 = vmatprep.subr.mxu0 0.0
  %1759 = vmatpush1.msra.mxu0 0.0
  %1760 = vmatprep.subr.mxu0 0.0
  %1761 = vmatpush1.msra.mxu0 0.0
  %1762 = vmatprep.subr.mxu0 0.0
  %1763 = vmatpush1.msra.mxu0 0.0
  %1764 = vmatprep.subr.mxu0 0.0
  %1765 = vmatpush1.msra.mxu0 0.0
  %1766 = vmatprep.subr.mxu0 0.0
  %1767 = vmatpush1.msra.mxu0 0.0
  %1768 = vmatprep.subr.mxu0 0.0
  %1769 = vmatpush1.msra.mxu0 0.0
  %1770 = vmatprep.subr.mxu0 0.0
  %1771 = vmatpush1.msra.mxu0 0.0
  %1772 = vmatprep.subr.mxu0 0.0
  %1773 = vmatpush1.msra.mxu0 0.0
  %1774 = vmatprep.subr.mxu0 0.0
  %1775 = vmatpush1.msra.mxu0 0.0
  %1776 = vmatprep.subr.mxu0 0.0
  %1777 = vmatpush1.msra.mxu0 %v1746
  %1778 = vmatprep.subr.mxu0 0.0
  %1779 = vmatpush1.msra.mxu0 %v1551
  %1780 = vmatprep.subr.mxu0 0.0
  %1781 = vmatpush2.msra.mxu0 0.0
  %1782 = vmatprep.subr.mxu0 0.0
  %1783 = vmatpush2.msra.mxu0 0.0
  %1784 = vmatprep.subr.mxu0 0.0
  %1785 = vmatpush2.msra.mxu0 0.0
  %1786 = vmatprep.subr.mxu0 0.0
  %1787 = vmatpush2.msra.mxu0 0.0
  %1788 = vmatprep.subr.mxu0 0.0
  %1789 = vmatpush2.msra.mxu0 0.0
  %1790 = vmatprep.subr.mxu0 0.0
  %1791 = vmatpush2.msra.mxu0 0.0
  %1792 = vmatprep.subr.mxu0 0.0
  %1793 = vmatpush2.msra.mxu0 0.0
  %1794 = vmatprep.subr.mxu0 0.0
  %1795 = vmatpush2.msra.mxu0 0.0
  %1796 = vmatprep.subr.mxu0 0.0
  %1797 = vmatpush2.msra.mxu0 0.0
  %1798 = vmatprep.subr.mxu0 0.0
  %1799 = vmatpush2.msra.mxu0 0.0
  %1800 = vmatprep.subr.mxu0 0.0
  %1801 = vmatpush2.msra.mxu0 0.0
  %1802 = vmatprep.subr.mxu0 0.0
  %1803 = vmatpush2.msra.mxu0 0.0
  %1804 = vmatprep.subr.mxu0 0.0
  %1805 = vmatpush2.msra.mxu0 0.0
  %1806 = vmatprep.subr.mxu0 0.0
  %1807 = vmatpush2.msra.mxu0 0.0
  %1808 = vmatprep.subr.mxu0 0.0
  %1809 = vmatpush2.msra.mxu0 0.0
  %1810 = vmatprep.subr.mxu0 0.0
  %1811 = vmatpush2.msra.mxu0 0.0
  %1812 = vmatprep.mubr.f32.mxu0 0.0
  %1813 = vmatmul.mubr.f32.gmra.mxu0 %v1740
  %v1814 = vpop.f32.mrf.mxu0
  %v1815 = vadd.f32 0.0, %v1814
  %v1816 = vpop.f32.mrf.mxu0
  %1817 = vmatprep.mubr.f32.mxu0 0.0
  %1818 = vmatmul.mubr.f32.gmra.mxu0 %v1743
  %v1819 = vpop.f32.mrf.mxu0
  %v1820 = vadd.f32 0.0, %v1819
  %v1821 = vpop.f32.mrf.mxu0
  %1822 = vdwg.mxu0
  %1823 = vmatprep.subr.mxu0 0.0
  %1824 = vmatpush1.xpose.msra.mxu0 0.0
  %1825 = vmatprep.subr.mxu0 0.0
  %1826 = vmatpush1.xpose.msra.mxu0 0.0
  %1827 = vmatprep.subr.mxu0 0.0
  %1828 = vmatpush1.xpose.msra.mxu0 0.0
  %1829 = vmatprep.subr.mxu0 0.0
  %1830 = vmatpush1.xpose.msra.mxu0 0.0
  %1831 = vmatprep.subr.mxu0 0.0
  %1832 = vmatpush1.xpose.msra.mxu0 0.0
  %1833 = vmatprep.subr.mxu0 0.0
  %1834 = vmatpush1.xpose.msra.mxu0 0.0
  %1835 = vmatprep.subr.mxu0 0.0
  %1836 = vmatpush1.xpose.msra.mxu0 0.0
  %1837 = vmatprep.subr.mxu0 0.0
  %1838 = vmatpush1.xpose.msra.mxu0 0.0
  %1839 = vmatprep.subr.mxu0 0.0
  %1840 = vmatpush1.xpose.msra.mxu0 0.0
  %1841 = vmatprep.subr.mxu0 0.0
  %1842 = vmatpush1.xpose.msra.mxu0 0.0
  %1843 = vmatprep.subr.mxu0 0.0
  %1844 = vmatpush1.xpose.msra.mxu0 0.0
  %1845 = vmatprep.subr.mxu0 0.0
  %1846 = vmatpush1.xpose.msra.mxu0 0.0
  %1847 = vmatprep.subr.mxu0 0.0
  %1848 = vmatpush1.xpose.msra.mxu0 0.0
  %1849 = vmatprep.subr.mxu0 0.0
  %1850 = vmatpush1.xpose.msra.mxu0 0.0
  %1851 = vmatprep.subr.mxu0 0.0
  %1852 = vmatpush1.xpose.msra.mxu0 %v1634
  %1853 = vmatprep.subr.mxu0 0.0
  %1854 = vmatpush1.xpose.msra.mxu0 %v1628
  %1855 = vmatprep.subr.mxu0 0.0
  %1856 = vmatpush2.xpose.msra.mxu0 0.0
  %1857 = vmatprep.subr.mxu0 0.0
  %1858 = vmatpush2.xpose.msra.mxu0 0.0
  %1859 = vmatprep.subr.mxu0 0.0
  %1860 = vmatpush2.xpose.msra.mxu0 0.0
  %1861 = vmatprep.subr.mxu0 0.0
  %1862 = vmatpush2.xpose.msra.mxu0 0.0
  %1863 = vmatprep.subr.mxu0 0.0
  %1864 = vmatpush2.xpose.msra.mxu0 0.0
  %1865 = vmatprep.subr.mxu0 0.0
  %1866 = vmatpush2.xpose.msra.mxu0 0.0
  %1867 = vmatprep.subr.mxu0 0.0
  %1868 = vmatpush2.xpose.msra.mxu0 0.0
  %1869 = vmatprep.subr.mxu0 0.0
  %1870 = vmatpush2.xpose.msra.mxu0 0.0
  %1871 = vmatprep.subr.mxu0 0.0
  %1872 = vmatpush2.xpose.msra.mxu0 0.0
  %1873 = vmatprep.subr.mxu0 0.0
  %1874 = vmatpush2.xpose.msra.mxu0 0.0
  %1875 = vmatprep.subr.mxu0 0.0
  %1876 = vmatpush2.xpose.msra.mxu0 0.0
  %1877 = vmatprep.subr.mxu0 0.0
  %1878 = vmatpush2.xpose.msra.mxu0 0.0
  %1879 = vmatprep.subr.mxu0 0.0
  %1880 = vmatpush2.xpose.msra.mxu0 0.0
  %1881 = vmatprep.subr.mxu0 0.0
  %1882 = vmatpush2.xpose.msra.mxu0 0.0
  %1883 = vmatprep.subr.mxu0 0.0
  %1884 = vmatpush2.xpose.msra.mxu0 0.0
  %1885 = vmatprep.subr.mxu0 0.0
  %1886 = vmatpush2.xpose.msra.mxu0 0.0
  %1887 = vmatprep.mubr.f32.mxu0 0.0
  %1888 = vmatmul.mubr.f32.gmra.mxu0 %v1553
  %v1889 = vpop.f32.mrf.mxu0
  %v1890 = vadd.f32 0.0, %v1889
  %v1891 = vpop.f32.mrf.mxu0
  %1892 = vmatprep.mubr.f32.mxu0 0.0
  %1893 = vmatmul.mubr.f32.gmra.mxu0 %v1559
  %v1894 = vpop.f32.mrf.mxu0
  %v1895 = vadd.f32 0.0, %v1894
  %v1896 = vpop.f32.mrf.mxu0
  %1897 = vdwg.mxu0
  %v1898 = vmul.f32 %v1890, 0.25
  %v1899 = vmul.f32 %v1895, 0.25
  %v1900 = vadd.f32 %v1898, %v173
  %v1901 = vadd.f32 %v1899, %v174
  %v1902 = vsel %vm594, %v1900, -inf
  %1903 = vmax.xlane.f32.xlu0 %v1902
  %v1904 = vpop.xlane.xlu0 %1903
  %v1905 = vsel %vm598, %v1901, -inf
  %1906 = vmax.xlane.f32.xlu0 %v1905
  %v1907 = vpop.xlane.xlu0 %1906
  %v1908 = vsub.f32 %v1900, %v1904
  %v1909 = vsub.f32 %v1901, %v1907
  %v1910 = vmul.f32 %v1908, 1.442695
  %v1911 = vpow.pop %v1910
  %v1912 = vmul.f32 %v1909, 1.442695
  %v1913 = vpow.pop %v1912
  %v1914 = vsel %vm594, %v1911, 0.0
  %1915 = vadd.xlane.f32.xlu0 %v1914
  %v1916 = vpop.xlane.xlu0 %1915
  %v1917 = vsel %vm598, %v1913, 0.0
  %1918 = vadd.xlane.f32.xlu0 %v1917
  %v1919 = vpop.xlane.xlu0 %1918
  %v1920 = vrcp.pop %v1916
  %v1921 = vrcp.pop %v1919
  %v1922 = vmul.f32 %v1911, %v1920
  %v1923 = vmul.f32 %v1913, %v1921
  %v1925 = vsel %vm594, %v1922, 0
  %v1928 = vsel %vm594, %v1923, 0
  %v1931 = vsel %vm624, %v1636, 0
  %1933 = vmatprep.subr.mxu0 0.0
  %1934 = vmatpush1.msra.mxu0 0.0
  %1935 = vmatprep.subr.mxu0 0.0
  %1936 = vmatpush1.msra.mxu0 0.0
  %1937 = vmatprep.subr.mxu0 0.0
  %1938 = vmatpush1.msra.mxu0 0.0
  %1939 = vmatprep.subr.mxu0 0.0
  %1940 = vmatpush1.msra.mxu0 0.0
  %1941 = vmatprep.subr.mxu0 0.0
  %1942 = vmatpush1.msra.mxu0 0.0
  %1943 = vmatprep.subr.mxu0 0.0
  %1944 = vmatpush1.msra.mxu0 0.0
  %1945 = vmatprep.subr.mxu0 0.0
  %1946 = vmatpush1.msra.mxu0 0.0
  %1947 = vmatprep.subr.mxu0 0.0
  %1948 = vmatpush1.msra.mxu0 0.0
  %1949 = vmatprep.subr.mxu0 0.0
  %1950 = vmatpush1.msra.mxu0 0.0
  %1951 = vmatprep.subr.mxu0 0.0
  %1952 = vmatpush1.msra.mxu0 0.0
  %1953 = vmatprep.subr.mxu0 0.0
  %1954 = vmatpush1.msra.mxu0 0.0
  %1955 = vmatprep.subr.mxu0 0.0
  %1956 = vmatpush1.msra.mxu0 0.0
  %1957 = vmatprep.subr.mxu0 0.0
  %1958 = vmatpush1.msra.mxu0 0.0
  %1959 = vmatprep.subr.mxu0 0.0
  %1960 = vmatpush1.msra.mxu0 0.0
  %1961 = vmatprep.subr.mxu0 0.0
  %1962 = vmatpush1.msra.mxu0 %v1931
  %1963 = vmatprep.subr.mxu0 0.0
  %1964 = vmatpush1.msra.mxu0 %v1630
  %1965 = vmatprep.subr.mxu0 0.0
  %1966 = vmatpush2.msra.mxu0 0.0
  %1967 = vmatprep.subr.mxu0 0.0
  %1968 = vmatpush2.msra.mxu0 0.0
  %1969 = vmatprep.subr.mxu0 0.0
  %1970 = vmatpush2.msra.mxu0 0.0
  %1971 = vmatprep.subr.mxu0 0.0
  %1972 = vmatpush2.msra.mxu0 0.0
  %1973 = vmatprep.subr.mxu0 0.0
  %1974 = vmatpush2.msra.mxu0 0.0
  %1975 = vmatprep.subr.mxu0 0.0
  %1976 = vmatpush2.msra.mxu0 0.0
  %1977 = vmatprep.subr.mxu0 0.0
  %1978 = vmatpush2.msra.mxu0 0.0
  %1979 = vmatprep.subr.mxu0 0.0
  %1980 = vmatpush2.msra.mxu0 0.0
  %1981 = vmatprep.subr.mxu0 0.0
  %1982 = vmatpush2.msra.mxu0 0.0
  %1983 = vmatprep.subr.mxu0 0.0
  %1984 = vmatpush2.msra.mxu0 0.0
  %1985 = vmatprep.subr.mxu0 0.0
  %1986 = vmatpush2.msra.mxu0 0.0
  %1987 = vmatprep.subr.mxu0 0.0
  %1988 = vmatpush2.msra.mxu0 0.0
  %1989 = vmatprep.subr.mxu0 0.0
  %1990 = vmatpush2.msra.mxu0 0.0
  %1991 = vmatprep.subr.mxu0 0.0
  %1992 = vmatpush2.msra.mxu0 0.0
  %1993 = vmatprep.subr.mxu0 0.0
  %1994 = vmatpush2.msra.mxu0 0.0
  %1995 = vmatprep.subr.mxu0 0.0
  %1996 = vmatpush2.msra.mxu0 0.0
  %1997 = vmatprep.mubr.f32.mxu0 0.0
  %1998 = vmatmul.mubr.f32.gmra.mxu0 %v1925
  %v1999 = vpop.f32.mrf.mxu0
  %v2000 = vadd.f32 0.0, %v1999
  %v2001 = vpop.f32.mrf.mxu0
  %2002 = vmatprep.mubr.f32.mxu0 0.0
  %2003 = vmatmul.mubr.f32.gmra.mxu0 %v1928
  %v2004 = vpop.f32.mrf.mxu0
  %v2005 = vadd.f32 0.0, %v2004
  %v2006 = vpop.f32.mrf.mxu0
  %2007 = vdwg.mxu0
  %s2008 = scalar_lea.vmem %s7, 256
  %v2009 = vld [vmem:[%s2008] sm:$0xff]
  %v2010 = vld [vmem:[%s2008 + $0x8] sm:$0xff]
  %v2011 = vld [vmem:[%s2008 + $0x10] sm:$0xff]
  %v2012 = vld [vmem:[%s2008 + $0x18] sm:$0xff]
  %v2013 = vld [vmem:[%s2008 + $0x20] sm:$0xff]
  %v2014 = vld [vmem:[%s2008 + $0x28] sm:$0xff]
  %v2015 = vld [vmem:[%s2008 + $0x30] sm:$0xff]
  %v2016 = vld [vmem:[%s2008 + $0x38] sm:$0xff]
  %v2017 = vld [vmem:[%s2008 + $0x40] sm:$0xff]
  %v2018 = vld [vmem:[%s2008 + $0x48] sm:$0xff]
  %v2019 = vld [vmem:[%s2008 + $0x50] sm:$0xff]
  %v2020 = vld [vmem:[%s2008 + $0x58] sm:$0xff]
  %v2021 = vld [vmem:[%s2008 + $0x60] sm:$0xff]
  %v2022 = vld [vmem:[%s2008 + $0x68] sm:$0xff]
  %v2023 = vld [vmem:[%s2008 + $0x70] sm:$0xff]
  %v2024 = vld [vmem:[%s2008 + $0x78] sm:$0xff]
  %v2025 = vld [vmem:[%s2008 + $0x80] sm:$0xff]
  %v2026 = vld [vmem:[%s2008 + $0x88] sm:$0xff]
  %v2027 = vld [vmem:[%s2008 + $0x90] sm:$0xff]
  %v2028 = vld [vmem:[%s2008 + $0x98] sm:$0xff]
  %v2029 = vld [vmem:[%s2008 + $0xa0] sm:$0xff]
  %v2030 = vld [vmem:[%s2008 + $0xa8] sm:$0xff]
  %v2031 = vld [vmem:[%s2008 + $0xb0] sm:$0xff]
  %v2032 = vld [vmem:[%s2008 + $0xb8] sm:$0xff]
  %v2033 = vld [vmem:[%s2008 + $0xc0] sm:$0xff]
  %v2034 = vld [vmem:[%s2008 + $0xc8] sm:$0xff]
  %v2035 = vld [vmem:[%s2008 + $0xd0] sm:$0xff]
  %v2036 = vld [vmem:[%s2008 + $0xd8] sm:$0xff]
  %v2037 = vld [vmem:[%s2008 + $0xe0] sm:$0xff]
  %v2038 = vld [vmem:[%s2008 + $0xe8] sm:$0xff]
  %v2039 = vld [vmem:[%s2008 + $0xf0] sm:$0xff]
  %v2040 = vld [vmem:[%s2008 + $0xf8] sm:$0xff]
  %2041 = vmatprep.subr.mxu0 0.0
  %2042 = vmatpush1.msra.mxu0 %v2024
  %2043 = vmatprep.subr.mxu0 0.0
  %2044 = vmatpush1.msra.mxu0 %v2023
  %2045 = vmatprep.subr.mxu0 0.0
  %2046 = vmatpush1.msra.mxu0 %v2022
  %2047 = vmatprep.subr.mxu0 0.0
  %2048 = vmatpush1.msra.mxu0 %v2021
  %2049 = vmatprep.subr.mxu0 0.0
  %2050 = vmatpush1.msra.mxu0 %v2020
  %2051 = vmatprep.subr.mxu0 0.0
  %2052 = vmatpush1.msra.mxu0 %v2019
  %2053 = vmatprep.subr.mxu0 0.0
  %2054 = vmatpush1.msra.mxu0 %v2018
  %2055 = vmatprep.subr.mxu0 0.0
  %2056 = vmatpush1.msra.mxu0 %v2017
  %2057 = vmatprep.subr.mxu0 0.0
  %2058 = vmatpush1.msra.mxu0 %v2016
  %2059 = vmatprep.subr.mxu0 0.0
  %2060 = vmatpush1.msra.mxu0 %v2015
  %2061 = vmatprep.subr.mxu0 0.0
  %2062 = vmatpush1.msra.mxu0 %v2014
  %2063 = vmatprep.subr.mxu0 0.0
  %2064 = vmatpush1.msra.mxu0 %v2013
  %2065 = vmatprep.subr.mxu0 0.0
  %2066 = vmatpush1.msra.mxu0 %v2012
  %2067 = vmatprep.subr.mxu0 0.0
  %2068 = vmatpush1.msra.mxu0 %v2011
  %2069 = vmatprep.subr.mxu0 0.0
  %2070 = vmatpush1.msra.mxu0 %v2010
  %2071 = vmatprep.subr.mxu0 0.0
  %2072 = vmatpush1.msra.mxu0 %v2009
  %2073 = vmatprep.subr.mxu0 0.0
  %2074 = vmatpush2.msra.mxu0 %v2040
  %2075 = vmatprep.subr.mxu0 0.0
  %2076 = vmatpush2.msra.mxu0 %v2039
  %2077 = vmatprep.subr.mxu0 0.0
  %2078 = vmatpush2.msra.mxu0 %v2038
  %2079 = vmatprep.subr.mxu0 0.0
  %2080 = vmatpush2.msra.mxu0 %v2037
  %2081 = vmatprep.subr.mxu0 0.0
  %2082 = vmatpush2.msra.mxu0 %v2036
  %2083 = vmatprep.subr.mxu0 0.0
  %2084 = vmatpush2.msra.mxu0 %v2035
  %2085 = vmatprep.subr.mxu0 0.0
  %2086 = vmatpush2.msra.mxu0 %v2034
  %2087 = vmatprep.subr.mxu0 0.0
  %2088 = vmatpush2.msra.mxu0 %v2033
  %2089 = vmatprep.subr.mxu0 0.0
  %2090 = vmatpush2.msra.mxu0 %v2032
  %2091 = vmatprep.subr.mxu0 0.0
  %2092 = vmatpush2.msra.mxu0 %v2031
  %2093 = vmatprep.subr.mxu0 0.0
  %2094 = vmatpush2.msra.mxu0 %v2030
  %2095 = vmatprep.subr.mxu0 0.0
  %2096 = vmatpush2.msra.mxu0 %v2029
  %2097 = vmatprep.subr.mxu0 0.0
  %2098 = vmatpush2.msra.mxu0 %v2028
  %2099 = vmatprep.subr.mxu0 0.0
  %2100 = vmatpush2.msra.mxu0 %v2027
  %2101 = vmatprep.subr.mxu0 0.0
  %2102 = vmatpush2.msra.mxu0 %v2026
  %2103 = vmatprep.subr.mxu0 0.0
  %2104 = vmatpush2.msra.mxu0 %v2025
  %2105 = vmatprep.mubr.f32.mxu0 %v2000
  %2106 = vmatmul.mubr.f32.gmra.mxu0 %v1815
  %v2107 = vpop.f32.mrf.mxu0
  %v2108 = vadd.f32 0.0, %v2107
  %v2109 = vpop.f32.mrf.mxu0
  %2110 = vmatprep.mubr.f32.mxu0 %v2005
  %2111 = vmatmul.mubr.f32.gmra.mxu0 %v1820
  %v2112 = vpop.f32.mrf.mxu0
  %v2113 = vadd.f32 0.0, %v2112
  %v2114 = vpop.f32.mrf.mxu0
  %2115 = vdwg.mxu0
  %v2116 = vadd.f32 %v1295, %v2108
  %v2117 = vadd.f32 %v1296, %v2113
  %s2118 = scalar_lea.vmem %s8, 1
  %v2119 = vld [vmem:[%s2118] sm:$0x1]
  %v2121 = vlaneseq
  %v2122 = vshrl.u32 %v2121, 7
  %v2123 = vsub.s32 0, %v2122
  %v2124 = vrot.slane %v2119, %v2123
  %v2126 = vadd.f32 %v2116, %v2124
  %v2127 = vadd.f32 %v2117, %v2124
  %s2128 = scalar_lea.vmem %s9, 1
  %v2129 = vld [vmem:[%s2128] sm:$0x1]
  %s2130 = scalar_lea.vmem %s10, 1
  %v2131 = vld [vmem:[%s2130] sm:$0x1]
  %v2132 = vsel %vm177, %v2126, 0.0
  %2133 = vadd.xlane.f32.xlu0 %v2132
  %v2134 = vpop.xlane.xlu0 %2133
  %v2135 = vsel %vm181, %v2127, 0.0
  %2136 = vadd.xlane.f32.xlu0 %v2135
  %v2137 = vpop.xlane.xlu0 %2136
  %v2138 = vmul.f32 %v2134, %v185
  %v2139 = vmul.f32 %v2137, %v185
  %v2140 = vsub.f32 %v2126, %v2138
  %v2141 = vsub.f32 %v2127, %v2139
  %v2142 = vmul.f32 %v2140, %v2140
  %v2143 = vmul.f32 %v2141, %v2141
  %v2144 = vsel %vm177, %v2142, 0.0
  %2145 = vadd.xlane.f32.xlu0 %v2144
  %v2146 = vpop.xlane.xlu0 %2145
  %v2147 = vsel %vm181, %v2143, 0.0
  %2148 = vadd.xlane.f32.xlu0 %v2147
  %v2149 = vpop.xlane.xlu0 %2148
  %v2150 = vmul.f32 %v2146, %v185
  %v2151 = vmul.f32 %v2149, %v185
  %v2152 = vadd.f32 %v2150, 1e-12
  %v2153 = vadd.f32 %v2151, 1e-12
  %v2154 = vrsqrt.pop %v2152
  %v2155 = vrsqrt.pop %v2153
  %v2156 = vmul.f32 %v2140, %v2154
  %v2157 = vmul.f32 %v2141, %v2155
  %v2159 = vlaneseq
  %v2160 = vshrl.u32 %v2159, 7
  %v2161 = vsub.s32 0, %v2160
  %v2162 = vrot.slane %v2129, %v2161
  %v2164 = vmul.f32 %v2156, %v2162
  %v2165 = vmul.f32 %v2157, %v2162
  %v2167 = vlaneseq
  %v2168 = vshrl.u32 %v2167, 7
  %v2169 = vsub.s32 0, %v2168
  %v2170 = vrot.slane %v2131, %v2169
  %v2172 = vadd.f32 %v2164, %v2170
  %v2173 = vadd.f32 %v2165, %v2170
  %s2174 = scalar_lea.vmem %s11, 32
  %v2175 = vld [vmem:[%s2174] sm:$0xff]
  %v2176 = vld [vmem:[%s2174 + $0x8] sm:$0xff]
  %v2177 = vld [vmem:[%s2174 + $0x10] sm:$0xff]
  %v2178 = vld [vmem:[%s2174 + $0x18] sm:$0xff]
  %s2179 = scalar_lea.vmem %s12, 1
  %v2180 = vld [vmem:[%s2179] sm:$0x1]
  %v2182 = vlaneseq
  %v2183 = vshrl.u32 %v2182, 7
  %v2184 = vsub.s32 0, %v2183
  %v2185 = vrot.slane %v2180, %v2184
  %v2188 = vsel %vm177, %v2172, 0
  %v2191 = vsel %vm177, %v2173, 0
  %2193 = vmatprep.subr.mxu0 0.0
  %2194 = vmatpush1.msra.mxu0 0.0
  %2195 = vmatprep.subr.mxu0 0.0
  %2196 = vmatpush1.msra.mxu0 0.0
  %2197 = vmatprep.subr.mxu0 0.0
  %2198 = vmatpush1.msra.mxu0 0.0
  %2199 = vmatprep.subr.mxu0 0.0
  %2200 = vmatpush1.msra.mxu0 0.0
  %2201 = vmatprep.subr.mxu0 0.0
  %2202 = vmatpush1.msra.mxu0 0.0
  %2203 = vmatprep.subr.mxu0 0.0
  %2204 = vmatpush1.msra.mxu0 0.0
  %2205 = vmatprep.subr.mxu0 0.0
  %2206 = vmatpush1.msra.mxu0 0.0
  %2207 = vmatprep.subr.mxu0 0.0
  %2208 = vmatpush1.msra.mxu0 0.0
  %2209 = vmatprep.subr.mxu0 0.0
  %2210 = vmatpush1.msra.mxu0 0.0
  %2211 = vmatprep.subr.mxu0 0.0
  %2212 = vmatpush1.msra.mxu0 0.0
  %2213 = vmatprep.subr.mxu0 0.0
  %2214 = vmatpush1.msra.mxu0 0.0
  %2215 = vmatprep.subr.mxu0 0.0
  %2216 = vmatpush1.msra.mxu0 0.0
  %2217 = vmatprep.subr.mxu0 0.0
  %2218 = vmatpush1.msra.mxu0 %v2178
  %2219 = vmatprep.subr.mxu0 0.0
  %2220 = vmatpush1.msra.mxu0 %v2177
  %2221 = vmatprep.subr.mxu0 0.0
  %2222 = vmatpush1.msra.mxu0 %v2176
  %2223 = vmatprep.subr.mxu0 0.0
  %2224 = vmatpush1.msra.mxu0 %v2175
  %2225 = vmatprep.subr.mxu0 0.0
  %2226 = vmatpush2.msra.mxu0 0.0
  %2227 = vmatprep.subr.mxu0 0.0
  %2228 = vmatpush2.msra.mxu0 0.0
  %2229 = vmatprep.subr.mxu0 0.0
  %2230 = vmatpush2.msra.mxu0 0.0
  %2231 = vmatprep.subr.mxu0 0.0
  %2232 = vmatpush2.msra.mxu0 0.0
  %2233 = vmatprep.subr.mxu0 0.0
  %2234 = vmatpush2.msra.mxu0 0.0
  %2235 = vmatprep.subr.mxu0 0.0
  %2236 = vmatpush2.msra.mxu0 0.0
  %2237 = vmatprep.subr.mxu0 0.0
  %2238 = vmatpush2.msra.mxu0 0.0
  %2239 = vmatprep.subr.mxu0 0.0
  %2240 = vmatpush2.msra.mxu0 0.0
  %2241 = vmatprep.subr.mxu0 0.0
  %2242 = vmatpush2.msra.mxu0 0.0
  %2243 = vmatprep.subr.mxu0 0.0
  %2244 = vmatpush2.msra.mxu0 0.0
  %2245 = vmatprep.subr.mxu0 0.0
  %2246 = vmatpush2.msra.mxu0 0.0
  %2247 = vmatprep.subr.mxu0 0.0
  %2248 = vmatpush2.msra.mxu0 0.0
  %2249 = vmatprep.subr.mxu0 0.0
  %2250 = vmatpush2.msra.mxu0 0.0
  %2251 = vmatprep.subr.mxu0 0.0
  %2252 = vmatpush2.msra.mxu0 0.0
  %2253 = vmatprep.subr.mxu0 0.0
  %2254 = vmatpush2.msra.mxu0 0.0
  %2255 = vmatprep.subr.mxu0 0.0
  %2256 = vmatpush2.msra.mxu0 0.0
  %2257 = vmatprep.mubr.f32.mxu0 0.0
  %2258 = vmatmul.mubr.f32.gmra.mxu0 %v2188
  %v2259 = vpop.f32.mrf.mxu0
  %v2260 = vadd.f32 %v2185, %v2259
  %v2261 = vpop.f32.mrf.mxu0
  %2262 = vmatprep.mubr.f32.mxu0 0.0
  %2263 = vmatmul.mubr.f32.gmra.mxu0 %v2191
  %v2264 = vpop.f32.mrf.mxu0
  %v2265 = vadd.f32 %v2185, %v2264
  %v2266 = vpop.f32.mrf.mxu0
  %2267 = vdwg.mxu0
  %v2268 = vmul.f32 %v2260, 0.5
  %v2269 = vmul.f32 %v2265, 0.5
  %v2270 = vmul.f32 %v2260, 0.70710677
  %v2271 = vmul.f32 %v2265, 0.70710677
  %v2272 = vand.u32 2147483647, %v2270
  %v2273 = vand.u32 2147483647, %v2271
  %v2274 = vmul.f32 %v2272, 0.3275911
  %v2275 = vmul.f32 %v2273, 0.3275911
  %v2276 = vadd.f32 %v2274, 1.0
  %v2277 = vadd.f32 %v2275, 1.0
  %v2278 = vrcp.pop %v2276
  %v2279 = vmul.f32 1.0, %v2278
  %v2280 = vrcp.pop %v2277
  %v2281 = vmul.f32 1.0, %v2280
  %v2282 = vmul.f32 %v2279, 1.0614054
  %v2283 = vmul.f32 %v2281, 1.0614054
  %v2284 = vadd.f32 %v2282, -1.4531521
  %v2285 = vadd.f32 %v2283, -1.4531521
  %v2286 = vmul.f32 %v2284, %v2279
  %v2287 = vmul.f32 %v2285, %v2281
  %v2288 = vadd.f32 %v2286, 1.4214138
  %v2289 = vadd.f32 %v2287, 1.4214138
  %v2290 = vmul.f32 %v2288, %v2279
  %v2291 = vmul.f32 %v2289, %v2281
  %v2292 = vadd.f32 %v2290, -0.28449672
  %v2293 = vadd.f32 %v2291, -0.28449672
  %v2294 = vmul.f32 %v2292, %v2279
  %v2295 = vmul.f32 %v2293, %v2281
  %v2296 = vadd.f32 %v2294, 0.2548296
  %v2297 = vadd.f32 %v2295, 0.2548296
  %v2298 = vmul.f32 %v2296, %v2279
  %v2299 = vmul.f32 %v2297, %v2281
  %v2300 = vsub.f32 0.0, %v2272
  %v2301 = vsub.f32 0.0, %v2273
  %v2302 = vmul.f32 %v2300, %v2272
  %v2303 = vmul.f32 %v2301, %v2273
  %v2304 = vmul.f32 %v2302, 1.442695
  %v2305 = vpow.pop %v2304
  %v2306 = vmul.f32 %v2303, 1.442695
  %v2307 = vpow.pop %v2306
  %v2308 = vmul.f32 %v2298, %v2305
  %v2309 = vmul.f32 %v2299, %v2307
  %v2310 = vsub.f32 1.0, %v2308
  %v2311 = vsub.f32 1.0, %v2309
  %vm2312 = vcmp.ge.f32.partialorder %v2270, 0.0
  %vm2313 = vcmp.ge.f32.partialorder %v2271, 0.0
  %v2314 = vsub.f32 0.0, %v2310
  %v2315 = vsub.f32 0.0, %v2311
  %v2316 = vsel %vm2312, %v2310, %v2314
  %v2317 = vsel %vm2313, %v2311, %v2315
  %v2318 = vadd.f32 %v2316, 1.0
  %v2319 = vadd.f32 %v2317, 1.0
  %v2320 = vmul.f32 %v2268, %v2318
  %v2321 = vmul.f32 %v2269, %v2319
  %s2322 = scalar_lea.vmem %s13, 64
  %v2323 = vld [vmem:[%s2322] sm:$0xff]
  %v2324 = vld [vmem:[%s2322 + $0x8] sm:$0xff]
  %v2325 = vld [vmem:[%s2322 + $0x10] sm:$0xff]
  %v2326 = vld [vmem:[%s2322 + $0x18] sm:$0xff]
  %v2327 = vld [vmem:[%s2322 + $0x20] sm:$0xff]
  %v2328 = vld [vmem:[%s2322 + $0x28] sm:$0xff]
  %v2329 = vld [vmem:[%s2322 + $0x30] sm:$0xff]
  %v2330 = vld [vmem:[%s2322 + $0x38] sm:$0xff]
  %v2332 = vsel %vm1204, %v2320, 0
  %v2335 = vsel %vm1204, %v2321, 0
  %2337 = vmatprep.subr.mxu0 0.0
  %2338 = vmatpush1.msra.mxu0 0.0
  %2339 = vmatprep.subr.mxu0 0.0
  %2340 = vmatpush1.msra.mxu0 0.0
  %2341 = vmatprep.subr.mxu0 0.0
  %2342 = vmatpush1.msra.mxu0 0.0
  %2343 = vmatprep.subr.mxu0 0.0
  %2344 = vmatpush1.msra.mxu0 0.0
  %2345 = vmatprep.subr.mxu0 0.0
  %2346 = vmatpush1.msra.mxu0 0.0
  %2347 = vmatprep.subr.mxu0 0.0
  %2348 = vmatpush1.msra.mxu0 0.0
  %2349 = vmatprep.subr.mxu0 0.0
  %2350 = vmatpush1.msra.mxu0 0.0
  %2351 = vmatprep.subr.mxu0 0.0
  %2352 = vmatpush1.msra.mxu0 0.0
  %2353 = vmatprep.subr.mxu0 0.0
  %2354 = vmatpush1.msra.mxu0 %v2330
  %2355 = vmatprep.subr.mxu0 0.0
  %2356 = vmatpush1.msra.mxu0 %v2329
  %2357 = vmatprep.subr.mxu0 0.0
  %2358 = vmatpush1.msra.mxu0 %v2328
  %2359 = vmatprep.subr.mxu0 0.0
  %2360 = vmatpush1.msra.mxu0 %v2327
  %2361 = vmatprep.subr.mxu0 0.0
  %2362 = vmatpush1.msra.mxu0 %v2326
  %2363 = vmatprep.subr.mxu0 0.0
  %2364 = vmatpush1.msra.mxu0 %v2325
  %2365 = vmatprep.subr.mxu0 0.0
  %2366 = vmatpush1.msra.mxu0 %v2324
  %2367 = vmatprep.subr.mxu0 0.0
  %2368 = vmatpush1.msra.mxu0 %v2323
  %2369 = vmatprep.subr.mxu0 0.0
  %2370 = vmatpush2.msra.mxu0 0.0
  %2371 = vmatprep.subr.mxu0 0.0
  %2372 = vmatpush2.msra.mxu0 0.0
  %2373 = vmatprep.subr.mxu0 0.0
  %2374 = vmatpush2.msra.mxu0 0.0
  %2375 = vmatprep.subr.mxu0 0.0
  %2376 = vmatpush2.msra.mxu0 0.0
  %2377 = vmatprep.subr.mxu0 0.0
  %2378 = vmatpush2.msra.mxu0 0.0
  %2379 = vmatprep.subr.mxu0 0.0
  %2380 = vmatpush2.msra.mxu0 0.0
  %2381 = vmatprep.subr.mxu0 0.0
  %2382 = vmatpush2.msra.mxu0 0.0
  %2383 = vmatprep.subr.mxu0 0.0
  %2384 = vmatpush2.msra.mxu0 0.0
  %2385 = vmatprep.subr.mxu0 0.0
  %2386 = vmatpush2.msra.mxu0 0.0
  %2387 = vmatprep.subr.mxu0 0.0
  %2388 = vmatpush2.msra.mxu0 0.0
  %2389 = vmatprep.subr.mxu0 0.0
  %2390 = vmatpush2.msra.mxu0 0.0
  %2391 = vmatprep.subr.mxu0 0.0
  %2392 = vmatpush2.msra.mxu0 0.0
  %2393 = vmatprep.subr.mxu0 0.0
  %2394 = vmatpush2.msra.mxu0 0.0
  %2395 = vmatprep.subr.mxu0 0.0
  %2396 = vmatpush2.msra.mxu0 0.0
  %2397 = vmatprep.subr.mxu0 0.0
  %2398 = vmatpush2.msra.mxu0 0.0
  %2399 = vmatprep.subr.mxu0 0.0
  %2400 = vmatpush2.msra.mxu0 0.0
  %2401 = vmatprep.mubr.f32.mxu0 0.0
  %2402 = vmatmul.mubr.f32.gmra.mxu0 %v2332
  %v2403 = vpop.f32.mrf.mxu0
  %v2404 = vadd.f32 0.0, %v2403
  %v2405 = vpop.f32.mrf.mxu0
  %2406 = vmatprep.mubr.f32.mxu0 0.0
  %2407 = vmatmul.mubr.f32.gmra.mxu0 %v2335
  %v2408 = vpop.f32.mrf.mxu0
  %v2409 = vadd.f32 0.0, %v2408
  %v2410 = vpop.f32.mrf.mxu0
  %2411 = vdwg.mxu0
  %v2412 = vadd.f32 %v2126, %v2404
  %v2413 = vadd.f32 %v2127, %v2409
  %s2414 = scalar_lea.vmem %s14, 1
  %v2415 = vld [vmem:[%s2414] sm:$0x1]
  %v2417 = vlaneseq
  %v2418 = vshrl.u32 %v2417, 7
  %v2419 = vsub.s32 0, %v2418
  %v2420 = vrot.slane %v2415, %v2419
  %v2422 = vadd.f32 %v2412, %v2420
  %v2423 = vadd.f32 %v2413, %v2420
  %v2424 = vld [vmem:[%s15] sm:$0x1]
  %v2425 = vld [vmem:[%s16] sm:$0x1]
  %v2426 = vsel %vm177, %v2422, 0.0
  %2427 = vadd.xlane.f32.xlu0 %v2426
  %v2428 = vpop.xlane.xlu0 %2427
  %v2429 = vsel %vm181, %v2423, 0.0
  %2430 = vadd.xlane.f32.xlu0 %v2429
  %v2431 = vpop.xlane.xlu0 %2430
  %v2432 = vmul.f32 %v2428, %v185
  %v2433 = vmul.f32 %v2431, %v185
  %v2434 = vsub.f32 %v2422, %v2432
  %v2435 = vsub.f32 %v2423, %v2433
  %v2436 = vmul.f32 %v2434, %v2434
  %v2437 = vmul.f32 %v2435, %v2435
  %v2438 = vsel %vm177, %v2436, 0.0
  %2439 = vadd.xlane.f32.xlu0 %v2438
  %v2440 = vpop.xlane.xlu0 %2439
  %v2441 = vsel %vm181, %v2437, 0.0
  %2442 = vadd.xlane.f32.xlu0 %v2441
  %v2443 = vpop.xlane.xlu0 %2442
  %v2444 = vmul.f32 %v2440, %v185
  %v2445 = vmul.f32 %v2443, %v185
  %v2446 = vadd.f32 %v2444, 1e-12
  %v2447 = vadd.f32 %v2445, 1e-12
  %v2448 = vrsqrt.pop %v2446
  %v2449 = vrsqrt.pop %v2447
  %v2450 = vmul.f32 %v2434, %v2448
  %v2451 = vmul.f32 %v2435, %v2449
  %v2453 = vlaneseq
  %v2454 = vshrl.u32 %v2453, 7
  %v2455 = vsub.s32 0, %v2454
  %v2456 = vrot.slane %v2424, %v2455
  %v2458 = vmul.f32 %v2450, %v2456
  %v2459 = vmul.f32 %v2451, %v2456
  %v2461 = vlaneseq
  %v2462 = vshrl.u32 %v2461, 7
  %v2463 = vsub.s32 0, %v2462
  %v2464 = vrot.slane %v2425, %v2463
  %v2466 = vadd.f32 %v2458, %v2464
  %v2467 = vadd.f32 %v2459, %v2464
  %v2468 = vld [vmem:[%s17] sm:$0xff]
  %v2469 = vld [vmem:[%s17 + $0x8] sm:$0xff]
  %v2470 = vld [vmem:[%s17 + $0x10] sm:$0xff]
  %v2471 = vld [vmem:[%s17 + $0x18] sm:$0xff]
  %v2472 = vld [vmem:[%s18] sm:$0x1]
  %v2474 = vlaneseq
  %v2475 = vshrl.u32 %v2474, 7
  %v2476 = vsub.s32 0, %v2475
  %v2477 = vrot.slane %v2472, %v2476
  %v2480 = vsel %vm177, %v2466, 0
  %v2483 = vsel %vm177, %v2467, 0
  %2485 = vmatprep.subr.mxu0 0.0
  %2486 = vmatpush1.msra.mxu0 0.0
  %2487 = vmatprep.subr.mxu0 0.0
  %2488 = vmatpush1.msra.mxu0 0.0
  %2489 = vmatprep.subr.mxu0 0.0
  %2490 = vmatpush1.msra.mxu0 0.0
  %2491 = vmatprep.subr.mxu0 0.0
  %2492 = vmatpush1.msra.mxu0 0.0
  %2493 = vmatprep.subr.mxu0 0.0
  %2494 = vmatpush1.msra.mxu0 0.0
  %2495 = vmatprep.subr.mxu0 0.0
  %2496 = vmatpush1.msra.mxu0 0.0
  %2497 = vmatprep.subr.mxu0 0.0
  %2498 = vmatpush1.msra.mxu0 0.0
  %2499 = vmatprep.subr.mxu0 0.0
  %2500 = vmatpush1.msra.mxu0 0.0
  %2501 = vmatprep.subr.mxu0 0.0
  %2502 = vmatpush1.msra.mxu0 0.0
  %2503 = vmatprep.subr.mxu0 0.0
  %2504 = vmatpush1.msra.mxu0 0.0
  %2505 = vmatprep.subr.mxu0 0.0
  %2506 = vmatpush1.msra.mxu0 0.0
  %2507 = vmatprep.subr.mxu0 0.0
  %2508 = vmatpush1.msra.mxu0 0.0
  %2509 = vmatprep.subr.mxu0 0.0
  %2510 = vmatpush1.msra.mxu0 %v2471
  %2511 = vmatprep.subr.mxu0 0.0
  %2512 = vmatpush1.msra.mxu0 %v2470
  %2513 = vmatprep.subr.mxu0 0.0
  %2514 = vmatpush1.msra.mxu0 %v2469
  %2515 = vmatprep.subr.mxu0 0.0
  %2516 = vmatpush1.msra.mxu0 %v2468
  %2517 = vmatprep.subr.mxu0 0.0
  %2518 = vmatpush2.msra.mxu0 0.0
  %2519 = vmatprep.subr.mxu0 0.0
  %2520 = vmatpush2.msra.mxu0 0.0
  %2521 = vmatprep.subr.mxu0 0.0
  %2522 = vmatpush2.msra.mxu0 0.0
  %2523 = vmatprep.subr.mxu0 0.0
  %2524 = vmatpush2.msra.mxu0 0.0
  %2525 = vmatprep.subr.mxu0 0.0
  %2526 = vmatpush2.msra.mxu0 0.0
  %2527 = vmatprep.subr.mxu0 0.0
  %2528 = vmatpush2.msra.mxu0 0.0
  %2529 = vmatprep.subr.mxu0 0.0
  %2530 = vmatpush2.msra.mxu0 0.0
  %2531 = vmatprep.subr.mxu0 0.0
  %2532 = vmatpush2.msra.mxu0 0.0
  %2533 = vmatprep.subr.mxu0 0.0
  %2534 = vmatpush2.msra.mxu0 0.0
  %2535 = vmatprep.subr.mxu0 0.0
  %2536 = vmatpush2.msra.mxu0 0.0
  %2537 = vmatprep.subr.mxu0 0.0
  %2538 = vmatpush2.msra.mxu0 0.0
  %2539 = vmatprep.subr.mxu0 0.0
  %2540 = vmatpush2.msra.mxu0 0.0
  %2541 = vmatprep.subr.mxu0 0.0
  %2542 = vmatpush2.msra.mxu0 0.0
  %2543 = vmatprep.subr.mxu0 0.0
  %2544 = vmatpush2.msra.mxu0 0.0
  %2545 = vmatprep.subr.mxu0 0.0
  %2546 = vmatpush2.msra.mxu0 0.0
  %2547 = vmatprep.subr.mxu0 0.0
  %2548 = vmatpush2.msra.mxu0 0.0
  %2549 = vmatprep.mubr.f32.mxu0 0.0
  %2550 = vmatmul.mubr.f32.gmra.mxu0 %v2480
  %v2551 = vpop.f32.mrf.mxu0
  %v2552 = vadd.f32 %v2477, %v2551
  %v2553 = vpop.f32.mrf.mxu0
  %2554 = vmatprep.mubr.f32.mxu0 0.0
  %2555 = vmatmul.mubr.f32.gmra.mxu0 %v2483
  %v2556 = vpop.f32.mrf.mxu0
  %v2557 = vadd.f32 %v2477, %v2556
  %v2558 = vpop.f32.mrf.mxu0
  %2559 = vdwg.mxu0
  %2560 = vst [vmem:[%s19] sm:$0xff] %v2552
  %2561 = vst [vmem:[%s19 + $0x8] sm:$0x3] %v2557
  // Predicated region
  $region78: #{vit_logits.1} parent=0 // pred_check
    _
  $region79: #{vit_logits.1} parent=0 // pred_check_branch
    %2563 = sbr.rel (0) target = $region81
  $region80: #{vit_logits.1} parent=0 // pred_region
    _
  $region81: #{vit_logits.1} parent=0 // pred_fallthru
    _
  // Predicated region
  $region82: #{vit_logits.1} parent=0 // pred_check
    _
  $region83: #{vit_logits.1} parent=0 // pred_check_branch
    %2565 = sbr.rel (0) target = $region85
  $region84: #{vit_logits.1} parent=0 // pred_region
    _
  $region85: #{vit_logits.1} parent=0 // pred_fallthru
    _

</llo_original>
